<compile_context>
chip_gen: v7x
topology: tpu7x:2x2x1
jax: 0.10.0
libtpu: 0.0.40
codegen_flags: <defaults>
</compile_context>

<pallas_src>
import jax
import jax.numpy as jnp
from jax.experimental import pallas as pl
from jax.experimental.pallas import tpu as pltpu

NOISE_DIM = 100
EMB_DIM = 10
OUT_DIM = 784
LAYERS = [(110, 256), (256, 512), (512, 1024), (1024, 784)]


def _leaky_relu(x, slope=0.2):
    # Equivalent to LeakyReLU for slope < 1; cheaper than where(cmp, ., .).
    return jnp.maximum(x, slope * x)


def _round_up(n, m):
    return ((n + m - 1) // m) * m


def generator_kernel(x_ref, cproj_ref,
                     w1x_ref, b1_ref,
                     w2_ref, b2_ref,
                     w3_ref, b3_ref,
                     w4_ref, b4_ref,
                     o_ref):
    # hidden0: Linear(110 -> 256) + LeakyReLU(0.2).  The embedding half of the
    # concat is pre-projected (cproj = emb[label] @ W1[100:]) and added like a bias.
    h = jnp.dot(x_ref[...], w1x_ref[...], preferred_element_type=jnp.float32)
    h = _leaky_relu(h + cproj_ref[...] + b1_ref[...])
    # hidden1: Linear(256 -> 512) + LeakyReLU(0.2)
    h = jnp.dot(h.astype(jnp.bfloat16), w2_ref[...],
                preferred_element_type=jnp.float32)
    h = _leaky_relu(h + b2_ref[...])
    # hidden2: Linear(512 -> 1024) + LeakyReLU(0.2)
    h = jnp.dot(h.astype(jnp.bfloat16), w3_ref[...],
                preferred_element_type=jnp.float32)
    h = _leaky_relu(h + b3_ref[...])
    # out: Linear(1024 -> 784) + Tanh  (tanh in f32, stored bf16)
    h = jnp.dot(h.astype(jnp.bfloat16), w4_ref[...],
                preferred_element_type=jnp.float32)
    o_ref[...] = jnp.tanh(h + b4_ref[...]).astype(o_ref.dtype)


def _pick_tm(B, tm_max):
    """Batch tile: >=2 grid steps whenever B > 16 (v7x megacore / pipelining),
    capped at tm_max; small batches pad to 16 (bf16 sublane packing)."""
    if B <= 16:
        return 16
    if B >= 2 * tm_max:
        return tm_max
    return max(16, _round_up(pl.cdiv(B, 2), 16))


def generator_pallas(x_b, cproj, prepared, tm_max=256):
    """x_b: [B,100] bf16 noise; cproj: [B,256] f32 pre-projected label embedding."""
    B = x_b.shape[0]
    w1x = prepared["w1x"]
    b1, b2, b3, b4 = prepared["b1"], prepared["b2"], prepared["b3"], prepared["b4"]
    w2b, w3b, w4b = prepared["w2"], prepared["w3"], prepared["w4"]

    TM = _pick_tm(B, tm_max)
    Bp = _round_up(B, TM)
    if Bp != B:
        pad = Bp - B
        x_b = jnp.pad(x_b, ((0, pad), (0, 0)))
        cproj = jnp.pad(cproj, ((0, pad), (0, 0)))

    grid = (Bp // TM,)

    # Weights / biases: full-array blocks, constant index_map -> VMEM resident.
    const_spec = lambda a: pl.BlockSpec(a.shape, lambda i: (0,) * a.ndim)

    flops = 2 * Bp * sum(k * n for k, n in LAYERS)
    weight_bytes = sum(w.size * w.dtype.itemsize for w in (w1x, w2b, w3b, w4b))
    bias_bytes = sum(b.size * 4 for b in (b1, b2, b3, b4))
    io_bytes = x_b.size * 2 + cproj.size * 4 + Bp * OUT_DIM * 2
    cost = pl.CostEstimate(flops=flops,
                           transcendentals=Bp * OUT_DIM,
                           bytes_accessed=weight_bytes + bias_bytes + io_bytes)

    out = pl.pallas_call(
        generator_kernel,
        out_shape=jax.ShapeDtypeStruct((Bp, OUT_DIM), jnp.bfloat16),
        grid_spec=pltpu.PrefetchScalarGridSpec(
            num_scalar_prefetch=0,
            grid=grid,
            in_specs=[
                pl.BlockSpec((TM, NOISE_DIM), lambda i: (i, 0)),
                pl.BlockSpec((TM, LAYERS[0][1]), lambda i: (i, 0)),
                const_spec(w1x), const_spec(b1),
                const_spec(w2b), const_spec(b2),
                const_spec(w3b), const_spec(b3),
                const_spec(w4b), const_spec(b4),
            ],
            out_specs=pl.BlockSpec((TM, OUT_DIM), lambda i: (i, 0)),
        ),
        compiler_params=pltpu.CompilerParams(
            dimension_semantics=("parallel",),
            vmem_limit_bytes=(32 << 20) if TM > 256 else (24 << 20),
        ),
        cost_estimate=cost,
    )(x_b, cproj, w1x, b1, w2b, b2, w3b, b3, w4b, b4)

    return out[:B] if Bp != B else out


def init_params(key):
    """Deterministic synthetic parameters with the module's shapes (f32 masters)."""
    params = []
    for i, (fan_in, fan_out) in enumerate(LAYERS):
        kw, kb = jax.random.split(jax.random.fold_in(key, i))
        bound = 1.0 / jnp.sqrt(fan_in)
        w = jax.random.uniform(kw, (fan_in, fan_out), jnp.float32, -bound, bound)
        # biases kept as (1, fan_out) for clean 2-D broadcasting inside the kernel
        b = jax.random.uniform(kb, (1, fan_out), jnp.float32, -bound, bound)
        params.append((w, b))
    return params


def prepare_params(params, emb_table):
    """One-time conversion: bf16 weights for the MXU, f32 biases, and the embedding
    table pre-projected through the embedding half of W1 (folds Embedding + concat)."""
    (w1, b1), (w2, b2), (w3, b3), (w4, b4) = params
    to_bf16 = lambda a: a.astype(jnp.bfloat16)
    prepared = {
        "w1x": to_bf16(w1[:NOISE_DIM]),                 # (100, 256) bf16
        "cproj_table": emb_table @ w1[NOISE_DIM:],      # (10, 256)  f32, exact
        "b1": b1, "b2": b2, "b3": b3, "b4": b4,         # f32
        "w2": to_bf16(w2), "w3": to_bf16(w3), "w4": to_bf16(w4),
    }
    return jax.tree_util.tree_map(jnp.asarray, prepared)


def generator_forward(x, label, prepared, tm_max=256):
    # nn.Embedding(10,10) lookup + first-layer projection of the label half,
    # as a tiny (B,256) gather from the precomputed table (plain JAX).
    cproj = prepared["cproj_table"][label]              # [B, 256] f32
    return generator_pallas(x.astype(jnp.bfloat16), cproj, prepared, tm_max=tm_max)


def reference_forward(x, label, prepared):
    """Plain-JAX reference with the same bf16-weight / f32-accumulation math."""
    h = jnp.dot(x.astype(jnp.bfloat16), prepared["w1x"],
                preferred_element_type=jnp.float32)
    h = _leaky_relu(h + prepared["cproj_table"][label] + prepared["b1"])
    h = jnp.dot(h.astype(jnp.bfloat16), prepared["w2"],
                preferred_element_type=jnp.float32)
    h = _leaky_relu(h + prepared["b2"])
    h = jnp.dot(h.astype(jnp.bfloat16), prepared["w3"],
                preferred_element_type=jnp.float32)
    h = _leaky_relu(h + prepared["b3"])
    h = jnp.dot(h.astype(jnp.bfloat16), prepared["w4"],
                preferred_element_type=jnp.float32)
    return jnp.tanh(h + prepared["b4"])


if __name__ == "__main__":
    key = jax.random.PRNGKey(0)
    k_x, k_lbl, k_emb, k_par = jax.random.split(key, 4)

    B = 8
    x = jax.random.normal(k_x, (B, NOISE_DIM), jnp.float32)       # noise
    label = jax.random.randint(k_lbl, (B,), 0, 10, jnp.int32)     # class ids
    emb_table = jax.random.normal(k_emb, (10, EMB_DIM), jnp.float32)
    params = init_params(k_par)
    prepared = prepare_params(params, emb_table)                  # one-time bf16 prep

    out = generator_forward(x, label, prepared)
    out = jax.block_until_ready(out)

    assert out.shape == (B, OUT_DIM), out.shape
    assert out.dtype == jnp.bfloat16, out.dtype
    out_f32 = out.astype(jnp.float32)
    assert bool(jnp.all(jnp.isfinite(out_f32)))
    assert bool(jnp.all(jnp.abs(out_f32) <= 1.0))                 # tanh output range

    # Parity vs. plain JAX with identical bf16 math (relaxed tol: bf16 weights).
    ref = reference_forward(x, label, prepared)
    assert bool(jnp.allclose(out_f32, ref, atol=2e-2, rtol=0.0))

    print("KERNEL_OK")
</pallas_src>

<mosaic_0001>
module attributes {stable_mosaic.version = 11 : i64} {
  func.func @generator_kernel(%arg0: i32, %arg1: memref<16x100xbf16, #tpu.memory_space<vmem>>, %arg2: memref<16x256xf32, #tpu.memory_space<vmem>>, %arg3: memref<100x256xbf16, #tpu.memory_space<vmem>>, %arg4: memref<1x256xf32, #tpu.memory_space<vmem>>, %arg5: memref<256x512xbf16, #tpu.memory_space<vmem>>, %arg6: memref<1x512xf32, #tpu.memory_space<vmem>>, %arg7: memref<512x1024xbf16, #tpu.memory_space<vmem>>, %arg8: memref<1x1024xf32, #tpu.memory_space<vmem>>, %arg9: memref<1024x784xbf16, #tpu.memory_space<vmem>>, %arg10: memref<1x784xf32, #tpu.memory_space<vmem>>, %arg11: memref<16x784xbf16, #tpu.memory_space<vmem>>) attributes {dimension_semantics = [#tpu.dimension_semantics<parallel>], iteration_bounds = array<i64: 1>, scalar_prefetch = 0 : i64, scratch_operands = 0 : i64, tpu.core_type = #tpu.core_type<tc>, window_params = [{transform_indices = @transform_0, window_bounds = array<i64: 16, 100>}, {transform_indices = @transform_1, window_bounds = array<i64: 16, 256>}, {pipeline_mode = #tpu.pipeline_mode<synchronous>, transform_indices = @transform_2, window_bounds = array<i64: 100, 256>}, {pipeline_mode = #tpu.pipeline_mode<synchronous>, transform_indices = @transform_3, window_bounds = array<i64: 1, 256>}, {pipeline_mode = #tpu.pipeline_mode<synchronous>, transform_indices = @transform_4, window_bounds = array<i64: 256, 512>}, {pipeline_mode = #tpu.pipeline_mode<synchronous>, transform_indices = @transform_5, window_bounds = array<i64: 1, 512>}, {pipeline_mode = #tpu.pipeline_mode<synchronous>, transform_indices = @transform_6, window_bounds = array<i64: 512, 1024>}, {pipeline_mode = #tpu.pipeline_mode<synchronous>, transform_indices = @transform_7, window_bounds = array<i64: 1, 1024>}, {pipeline_mode = #tpu.pipeline_mode<synchronous>, transform_indices = @transform_8, window_bounds = array<i64: 1024, 784>}, {pipeline_mode = #tpu.pipeline_mode<synchronous>, transform_indices = @transform_9, window_bounds = array<i64: 1, 784>}, {transform_indices = @transform_10, window_bounds = array<i64: 16, 784>}]} {
    %c0 = arith.constant 0 : index
    %c0_0 = arith.constant 0 : index
    %0 = vector.load %arg1[%c0, %c0_0] : memref<16x100xbf16, #tpu.memory_space<vmem>>, vector<16x100xbf16>
    %c0_1 = arith.constant 0 : index
    %c0_2 = arith.constant 0 : index
    %1 = vector.load %arg3[%c0_1, %c0_2] : memref<100x256xbf16, #tpu.memory_space<vmem>>, vector<100x256xbf16>
    %cst = arith.constant dense<0.000000e+00> : vector<16x256xf32>
    %2 = tpu.matmul %0, %1, %cst {dimension_numbers = #tpu.dot_dimension_numbers<[1], [0], [0], [1], [0, 0, 1, 1], [], []>} : vector<16x100xbf16>, vector<100x256xbf16>, vector<16x256xf32> -> vector<16x256xf32>
    %c0_3 = arith.constant 0 : index
    %c0_4 = arith.constant 0 : index
    %3 = vector.load %arg2[%c0_3, %c0_4] : memref<16x256xf32, #tpu.memory_space<vmem>>, vector<16x256xf32>
    %4 = arith.addf %2, %3 : vector<16x256xf32>
    %c0_5 = arith.constant 0 : index
    %c0_6 = arith.constant 0 : index
    %5 = vector.load %arg4[%c0_5, %c0_6] : memref<1x256xf32, #tpu.memory_space<vmem>>, vector<1x256xf32>
    %6 = vector.broadcast %5 : vector<1x256xf32> to vector<16x256xf32>
    %7 = arith.addf %4, %6 : vector<16x256xf32>
    %cst_7 = arith.constant 2.000000e-01 : f32
    %8 = vector.broadcast %cst_7 : f32 to vector<16x256xf32>
    %9 = arith.mulf %8, %7 : vector<16x256xf32>
    %10 = arith.maximumf %7, %9 : vector<16x256xf32>
    %11 = arith.truncf %10 : vector<16x256xf32> to vector<16x256xbf16>
    %c0_8 = arith.constant 0 : index
    %c0_9 = arith.constant 0 : index
    %12 = vector.load %arg5[%c0_8, %c0_9] : memref<256x512xbf16, #tpu.memory_space<vmem>>, vector<256x512xbf16>
    %cst_10 = arith.constant dense<0.000000e+00> : vector<16x512xf32>
    %13 = tpu.matmul %11, %12, %cst_10 {dimension_numbers = #tpu.dot_dimension_numbers<[1], [0], [0], [1], [0, 0, 1, 1], [], []>} : vector<16x256xbf16>, vector<256x512xbf16>, vector<16x512xf32> -> vector<16x512xf32>
    %c0_11 = arith.constant 0 : index
    %c0_12 = arith.constant 0 : index
    %14 = vector.load %arg6[%c0_11, %c0_12] : memref<1x512xf32, #tpu.memory_space<vmem>>, vector<1x512xf32>
    %15 = vector.broadcast %14 : vector<1x512xf32> to vector<16x512xf32>
    %16 = arith.addf %13, %15 : vector<16x512xf32>
    %cst_13 = arith.constant 2.000000e-01 : f32
    %17 = vector.broadcast %cst_13 : f32 to vector<16x512xf32>
    %18 = arith.mulf %17, %16 : vector<16x512xf32>
    %19 = arith.maximumf %16, %18 : vector<16x512xf32>
    %20 = arith.truncf %19 : vector<16x512xf32> to vector<16x512xbf16>
    %c0_14 = arith.constant 0 : index
    %c0_15 = arith.constant 0 : index
    %21 = vector.load %arg7[%c0_14, %c0_15] : memref<512x1024xbf16, #tpu.memory_space<vmem>>, vector<512x1024xbf16>
    %cst_16 = arith.constant dense<0.000000e+00> : vector<16x1024xf32>
    %22 = tpu.matmul %20, %21, %cst_16 {dimension_numbers = #tpu.dot_dimension_numbers<[1], [0], [0], [1], [0, 0, 1, 1], [], []>} : vector<16x512xbf16>, vector<512x1024xbf16>, vector<16x1024xf32> -> vector<16x1024xf32>
    %c0_17 = arith.constant 0 : index
    %c0_18 = arith.constant 0 : index
    %23 = vector.load %arg8[%c0_17, %c0_18] : memref<1x1024xf32, #tpu.memory_space<vmem>>, vector<1x1024xf32>
    %24 = vector.broadcast %23 : vector<1x1024xf32> to vector<16x1024xf32>
    %25 = arith.addf %22, %24 : vector<16x1024xf32>
    %cst_19 = arith.constant 2.000000e-01 : f32
    %26 = vector.broadcast %cst_19 : f32 to vector<16x1024xf32>
    %27 = arith.mulf %26, %25 : vector<16x1024xf32>
    %28 = arith.maximumf %25, %27 : vector<16x1024xf32>
    %29 = arith.truncf %28 : vector<16x1024xf32> to vector<16x1024xbf16>
    %c0_20 = arith.constant 0 : index
    %c0_21 = arith.constant 0 : index
    %30 = vector.load %arg9[%c0_20, %c0_21] : memref<1024x784xbf16, #tpu.memory_space<vmem>>, vector<1024x784xbf16>
    %cst_22 = arith.constant dense<0.000000e+00> : vector<16x784xf32>
    %31 = tpu.matmul %29, %30, %cst_22 {dimension_numbers = #tpu.dot_dimension_numbers<[1], [0], [0], [1], [0, 0, 1, 1], [], []>} : vector<16x1024xbf16>, vector<1024x784xbf16>, vector<16x784xf32> -> vector<16x784xf32>
    %c0_23 = arith.constant 0 : index
    %c0_24 = arith.constant 0 : index
    %32 = vector.load %arg10[%c0_23, %c0_24] : memref<1x784xf32, #tpu.memory_space<vmem>>, vector<1x784xf32>
    %33 = vector.broadcast %32 : vector<1x784xf32> to vector<16x784xf32>
    %34 = arith.addf %31, %33 : vector<16x784xf32>
    %35 = math.tanh %34 : vector<16x784xf32>
    %36 = arith.truncf %35 : vector<16x784xf32> to vector<16x784xbf16>
    %c0_25 = arith.constant 0 : index
    %c0_26 = arith.constant 0 : index
    %37 = vector.load %arg11[%c0_25, %c0_26] : memref<16x784xbf16, #tpu.memory_space<vmem>>, vector<16x784xbf16>
    tpu.vector_store %arg11[%c0_25, %c0_26], %36 {strides = array<i32>} : memref<16x784xbf16, #tpu.memory_space<vmem>>, vector<16x784xbf16>,
    return
  }
  func.func @transform_0(%arg0: i32) -> (i32, i32) {
    %c0_i32 = arith.constant 0 : i32
    %c0_i32_0 = arith.constant 0 : i32
    return %arg0, %c0_i32 : i32, i32
  }
  func.func @transform_1(%arg0: i32) -> (i32, i32) {
    %c0_i32 = arith.constant 0 : i32
    %c0_i32_0 = arith.constant 0 : i32
    return %arg0, %c0_i32 : i32, i32
  }
  func.func @transform_2(%arg0: i32) -> (i32, i32) {
    %c0_i32 = arith.constant 0 : i32
    %c0_i32_0 = arith.constant 0 : i32
    %c0_i32_1 = arith.constant 0 : i32
    return %c0_i32, %c0_i32_0 : i32, i32
  }
  func.func @transform_3(%arg0: i32) -> (i32, i32) {
    %c0_i32 = arith.constant 0 : i32
    %c0_i32_0 = arith.constant 0 : i32
    %c0_i32_1 = arith.constant 0 : i32
    return %c0_i32, %c0_i32_0 : i32, i32
  }
  func.func @transform_4(%arg0: i32) -> (i32, i32) {
    %c0_i32 = arith.constant 0 : i32
    %c0_i32_0 = arith.constant 0 : i32
    %c0_i32_1 = arith.constant 0 : i32
    return %c0_i32, %c0_i32_0 : i32, i32
  }
  func.func @transform_5(%arg0: i32) -> (i32, i32) {
    %c0_i32 = arith.constant 0 : i32
    %c0_i32_0 = arith.constant 0 : i32
    %c0_i32_1 = arith.constant 0 : i32
    return %c0_i32, %c0_i32_0 : i32, i32
  }
  func.func @transform_6(%arg0: i32) -> (i32, i32) {
    %c0_i32 = arith.constant 0 : i32
    %c0_i32_0 = arith.constant 0 : i32
    %c0_i32_1 = arith.constant 0 : i32
    return %c0_i32, %c0_i32_0 : i32, i32
  }
  func.func @transform_7(%arg0: i32) -> (i32, i32) {
    %c0_i32 = arith.constant 0 : i32
    %c0_i32_0 = arith.constant 0 : i32
    %c0_i32_1 = arith.constant 0 : i32
    return %c0_i32, %c0_i32_0 : i32, i32
  }
  func.func @transform_8(%arg0: i32) -> (i32, i32) {
    %c0_i32 = arith.constant 0 : i32
    %c0_i32_0 = arith.constant 0 : i32
    %c0_i32_1 = arith.constant 0 : i32
    return %c0_i32, %c0_i32_0 : i32, i32
  }
  func.func @transform_9(%arg0: i32) -> (i32, i32) {
    %c0_i32 = arith.constant 0 : i32
    %c0_i32_0 = arith.constant 0 : i32
    %c0_i32_1 = arith.constant 0 : i32
    return %c0_i32, %c0_i32_0 : i32, i32
  }
  func.func @transform_10(%arg0: i32) -> (i32, i32) {
    %c0_i32 = arith.constant 0 : i32
    %c0_i32_0 = arith.constant 0 : i32
    return %arg0, %c0_i32 : i32, i32
  }
}

</mosaic_0001>

<llo_original>
// kernel: tpu_custom_call.1
$region0: #{tpu_custom_call.1}
  #allocation0 [shape = 'u32[]', space=smem, size = 0x4, offset = 0x4, fixed_abs, tag = 'smem constant byte address 0x4 - core index']
  #allocation1 [shape = 'u32[144,128]{1,0:T(1,128)}', space=vmem, size = 0x12000, scoped, tag = 'internal scratch']
  %s0 = inlined_call_operand.vmem [shape: bf16[16,100], index: 0, kind: input, shape index: {}]
  %s1 = inlined_call_operand.vmem [shape: f32[16,256], index: 1, kind: input, shape index: {}]
  %s2 = inlined_call_operand.vmem [shape: bf16[100,256], index: 2, kind: input, shape index: {}]
  %s3 = inlined_call_operand.vmem [shape: f32[1,256], index: 3, kind: input, shape index: {}]
  %s4 = inlined_call_operand.vmem [shape: bf16[256,512], index: 4, kind: input, shape index: {}]
  %s5 = inlined_call_operand.vmem [shape: f32[1,512], index: 5, kind: input, shape index: {}]
  %s6 = inlined_call_operand.vmem [shape: bf16[512,1024], index: 6, kind: input, shape index: {}]
  %s7 = inlined_call_operand.vmem [shape: f32[1,1024], index: 7, kind: input, shape index: {}]
  %s8 = inlined_call_operand.vmem [shape: bf16[1024,784], index: 8, kind: input, shape index: {}]
  %s9 = inlined_call_operand.vmem [shape: f32[1,784], index: 9, kind: input, shape index: {}]
  %s10 = inlined_call_operand.hbm [shape: bf16[16,784], index: 10, kind: output, shape index: {}]
  %s11 = sld [smem:[#allocation0]]
  $region50: #{tpu_custom_call.1} parent=0
    _
  %s13 = ssub.s32 1, %s11
  %s14 = scalar_select 0, %s13, %s11
  $region1: #{tpu_custom_call.1} parent=0
    #allocation2 [shape = 'u8[28672]{0}', space=vmem, size = 0x7000, scoped, tag = 'output window, operand 0, single buffered']
    #allocation3 [shape = 's32[1]{0}', space=sflag, size = 0x4, scoped, tag = 'scoped memory for tpu_custom_call.1']
    %15 = vsyncpa [#allocation3], 0
    // Predicated region
    $region2: #{tpu_custom_call.1} parent=1 // pred_check
      _
    $region3: #{tpu_custom_call.1} parent=1 // pred_check_branch
      %17 = sbr.rel (0) target = $region5
    $region4: #{tpu_custom_call.1} parent=1 // pred_region
      _
    $region5: #{tpu_custom_call.1} parent=1 // pred_fallthru
      _
    // Predicated region
    $region6: #{tpu_custom_call.1} parent=1 // pred_check
      _
    $region7: #{tpu_custom_call.1} parent=1 // pred_check_branch
      %19 = sbr.rel (0) target = $region9
    $region8: #{tpu_custom_call.1} parent=1 // pred_region
      _
    $region9: #{tpu_custom_call.1} parent=1 // pred_fallthru
      _
    // Predicated region
    $region10: #{tpu_custom_call.1} parent=1 // pred_check
      _
    $region11: #{tpu_custom_call.1} parent=1 // pred_check_branch
      %21 = sbr.rel (0) target = $region13
    $region12: #{tpu_custom_call.1} parent=1 // pred_region
      _
    $region13: #{tpu_custom_call.1} parent=1 // pred_fallthru
      _
    // Predicated region
    $region14: #{tpu_custom_call.1} parent=1 // pred_check
      _
    $region15: #{tpu_custom_call.1} parent=1 // pred_check_branch
      %23 = sbr.rel (0) target = $region17
    $region16: #{tpu_custom_call.1} parent=1 // pred_region
      _
    $region17: #{tpu_custom_call.1} parent=1 // pred_fallthru
      _
    // Predicated region
    $region18: #{tpu_custom_call.1} parent=1 // pred_check
      _
    $region19: #{tpu_custom_call.1} parent=1 // pred_check_branch
      %25 = sbr.rel (0) target = $region21
    $region20: #{tpu_custom_call.1} parent=1 // pred_region
      _
    $region21: #{tpu_custom_call.1} parent=1 // pred_fallthru
      _
    // Predicated region
    $region22: #{tpu_custom_call.1} parent=1 // pred_check
      _
    $region23: #{tpu_custom_call.1} parent=1 // pred_check_branch
      %27 = sbr.rel (0) target = $region25
    $region24: #{tpu_custom_call.1} parent=1 // pred_region
      _
    $region25: #{tpu_custom_call.1} parent=1 // pred_fallthru
      _
    // Predicated region
    $region26: #{tpu_custom_call.1} parent=1 // pred_check
      _
    $region27: #{tpu_custom_call.1} parent=1 // pred_check_branch
      %29 = sbr.rel (0) target = $region29
    $region28: #{tpu_custom_call.1} parent=1 // pred_region
      _
    $region29: #{tpu_custom_call.1} parent=1 // pred_fallthru
      _
    // Predicated region
    $region30: #{tpu_custom_call.1} parent=1 // pred_check
      _
    $region31: #{tpu_custom_call.1} parent=1 // pred_check_branch
      %31 = sbr.rel (0) target = $region33
    $region32: #{tpu_custom_call.1} parent=1 // pred_region
      _
    $region33: #{tpu_custom_call.1} parent=1 // pred_fallthru
      _
    // Predicated region
    $region34: #{tpu_custom_call.1} parent=1 // pred_check
      _
    $region35: #{tpu_custom_call.1} parent=1 // pred_check_branch
      %33 = sbr.rel (0) target = $region37
    $region36: #{tpu_custom_call.1} parent=1 // pred_region
      _
    $region37: #{tpu_custom_call.1} parent=1 // pred_fallthru
      _
    // Predicated region
    $region38: #{tpu_custom_call.1} parent=1 // pred_check
      _
    $region39: #{tpu_custom_call.1} parent=1 // pred_check_branch
      %35 = sbr.rel (0) target = $region41
    $region40: #{tpu_custom_call.1} parent=1 // pred_region
      _
    $region41: #{tpu_custom_call.1} parent=1 // pred_fallthru
      _
    %v37 = vld [vmem:[%s0] sm:$0xf]
    %v38 = vld [vmem:[%s0 + $0x4] sm:$0xf]
    %v39 = vld [vmem:[%s2] sm:$0xff]
    %v40 = vld [vmem:[%s2 + $0x8] sm:$0xff]
    %v41 = vld [vmem:[%s2 + $0x10] sm:$0xff]
    %v42 = vld [vmem:[%s2 + $0x18] sm:$0xff]
    %v43 = vld [vmem:[%s2 + $0x20] sm:$0xff]
    %v44 = vld [vmem:[%s2 + $0x28] sm:$0xff]
    %v45 = vld [vmem:[%s2 + $0x30] sm:$0xff]
    %v46 = vld [vmem:[%s2 + $0x38] sm:$0xff]
    %v47 = vld [vmem:[%s2 + $0x40] sm:$0xff]
    %v48 = vld [vmem:[%s2 + $0x48] sm:$0xff]
    %v49 = vld [vmem:[%s2 + $0x50] sm:$0xff]
    %v50 = vld [vmem:[%s2 + $0x58] sm:$0xff]
    %v51 = vld [vmem:[%s2 + $0x60] sm:$0x33]
    %v52 = vld [vmem:[%s1] sm:$0xff]
    %v53 = vld [vmem:[%s1 + $0x8] sm:$0xff]
    %v54 = vld [vmem:[%s1 + $0x10] sm:$0xff]
    %v55 = vld [vmem:[%s1 + $0x18] sm:$0xff]
    %v58 = vunpack.c.l.b16 %v37
    %v59 = vunpack.c.l.b16 %v38
    %v60 = vpack.c.b16 %v59, %v58
    %v74 = vunpack.c.l.b16 %v39
    %v75 = vunpack.c.h.b16 %v39
    %v76 = vunpack.c.l.b16 %v40
    %v77 = vunpack.c.h.b16 %v40
    %v78 = vunpack.c.l.b16 %v41
    %v79 = vunpack.c.h.b16 %v41
    %v80 = vunpack.c.l.b16 %v42
    %v81 = vunpack.c.h.b16 %v42
    %v82 = vunpack.c.l.b16 %v43
    %v83 = vunpack.c.h.b16 %v43
    %v84 = vunpack.c.l.b16 %v44
    %v85 = vunpack.c.h.b16 %v44
    %v86 = vunpack.c.l.b16 %v45
    %v87 = vunpack.c.h.b16 %v45
    %v88 = vunpack.c.l.b16 %v46
    %v89 = vunpack.c.h.b16 %v46
    %v90 = vunpack.c.l.b16 %v47
    %v91 = vunpack.c.h.b16 %v47
    %v92 = vunpack.c.l.b16 %v48
    %v93 = vunpack.c.h.b16 %v48
    %v94 = vunpack.c.l.b16 %v49
    %v95 = vunpack.c.h.b16 %v49
    %v96 = vunpack.c.l.b16 %v50
    %v97 = vunpack.c.h.b16 %v50
    %v98 = vunpack.c.l.b16 %v51
    %v99 = vunpack.c.h.b16 %v51
    %v100 = vpack.c.b16 %v76, %v74
    %v101 = vpack.c.b16 %v77, %v75
    %v102 = vpack.c.b16 %v80, %v78
    %v103 = vpack.c.b16 %v81, %v79
    %v104 = vpack.c.b16 %v84, %v82
    %v105 = vpack.c.b16 %v85, %v83
    %v106 = vpack.c.b16 %v88, %v86
    %v107 = vpack.c.b16 %v89, %v87
    %v108 = vpack.c.b16 %v92, %v90
    %v109 = vpack.c.b16 %v93, %v91
    %v110 = vpack.c.b16 %v96, %v94
    %v111 = vpack.c.b16 %v97, %v95
    %v112 = vpack.c.b16 %v98, %v98
    %v113 = vpack.c.b16 %v99, %v99
    %vm126 = vcmask 818176
    %v128 = vsel %vm126, %v60, 0
    %vm130 = vcmask 1041408
    %v132 = vsel %vm130, %v112, 0
    %v135 = vsel %vm130, %v113, 0
    %137 = vmatprep.subr.bf16.mxu0 %v101
    %138 = vmatpush1.bf16.msra.mxu0 %v100
    %139 = vmatprep.subr.bf16.mxu0 %v103
    %140 = vmatpush1.bf16.msra.mxu0 %v102
    %141 = vmatprep.subr.bf16.mxu0 %v105
    %142 = vmatpush1.bf16.msra.mxu0 %v104
    %143 = vmatprep.subr.bf16.mxu0 %v107
    %144 = vmatpush1.bf16.msra.mxu0 %v106
    %145 = vmatprep.subr.bf16.mxu0 %v109
    %146 = vmatpush1.bf16.msra.mxu0 %v108
    %147 = vmatprep.subr.bf16.mxu0 %v111
    %148 = vmatpush1.bf16.msra.mxu0 %v110
    %149 = vmatprep.subr.bf16.mxu0 %v135
    %150 = vmatpush1.bf16.msra.mxu0 %v132
    %151 = vmatprep.subr.bf16.mxu0 0
    %152 = vmatpush1.bf16.msra.mxu0 0
    %153 = vmatprep.subr.bf16.mxu0 0
    %154 = vmatpush1.bf16.msra.mxu0 0
    %155 = vmatprep.subr.bf16.mxu0 0
    %156 = vmatpush1.bf16.msra.mxu0 0
    %157 = vmatprep.subr.bf16.mxu0 0
    %158 = vmatpush1.bf16.msra.mxu0 0
    %159 = vmatprep.subr.bf16.mxu0 0
    %160 = vmatpush1.bf16.msra.mxu0 0
    %161 = vmatprep.subr.bf16.mxu0 0
    %162 = vmatpush1.bf16.msra.mxu0 0
    %163 = vmatprep.subr.bf16.mxu0 0
    %164 = vmatpush1.bf16.msra.mxu0 0
    %165 = vmatprep.subr.bf16.mxu0 0
    %166 = vmatpush1.bf16.msra.mxu0 0
    %167 = vmatprep.subr.bf16.mxu0 0
    %168 = vmatpush1.bf16.msra.mxu0 0
    %169 = vmatprep.mubr.bf16.mxu0 0
    %170 = vmatmul.mubr.bf16.gmra.mrb[0].mxu0 %v128
    %v171 = vpop.f32.mrb[0].mxu0
    %v172 = vadd.f32 %v52, %v171
    %v173 = vpop.f32.mrb[0].mxu0
    %v174 = vadd.f32 %v53, %v173
    %v175 = vpop.f32.mrb[0].mxu0
    %v176 = vadd.f32 %v54, %v175
    %v177 = vpop.f32.mrb[0].mxu0
    %v178 = vadd.f32 %v55, %v177
    %179 = vdwg.mxu0
    %v180 = vld [vmem:[%s3] sm:$0x3]
    %v182 = vlaneseq
    %v183 = vshrl.u32 %v182, 7
    %v184 = vsub.s32 0, %v183
    %v185 = vrot.slane %v180, %v184
    %v186 = vlaneseq
    %v187 = vshrl.u32 %v186, 7
    %v188 = vsub.s32 1, %v187
    %v189 = vrot.slane %v180, %v188
    %v192 = vadd.f32 %v172, %v185
    %v193 = vadd.f32 %v174, %v189
    %v194 = vadd.f32 %v176, %v185
    %v195 = vadd.f32 %v178, %v189
    %v196 = vmul.f32 %v192, 0.2
    %v197 = vmul.f32 %v193, 0.2
    %v198 = vmul.f32 %v194, 0.2
    %v199 = vmul.f32 %v195, 0.2
    %v200 = vmax.f32 %v192, %v196
    %v201 = vmax.f32 %v193, %v197
    %v202 = vmax.f32 %v194, %v198
    %v203 = vmax.f32 %v195, %v199
    %v204 = vpack.c.bf16 %v202, %v200
    %v205 = vpack.c.bf16 %v203, %v201
    %v206 = vld [vmem:[%s4] sm:$0xff]
    %v207 = vld [vmem:[%s4 + $0x8] sm:$0xff]
    %v208 = vld [vmem:[%s4 + $0x10] sm:$0xff]
    %v209 = vld [vmem:[%s4 + $0x18] sm:$0xff]
    %v210 = vld [vmem:[%s4 + $0x20] sm:$0xff]
    %v211 = vld [vmem:[%s4 + $0x28] sm:$0xff]
    %v212 = vld [vmem:[%s4 + $0x30] sm:$0xff]
    %v213 = vld [vmem:[%s4 + $0x38] sm:$0xff]
    %v214 = vld [vmem:[%s4 + $0x40] sm:$0xff]
    %v215 = vld [vmem:[%s4 + $0x48] sm:$0xff]
    %v216 = vld [vmem:[%s4 + $0x50] sm:$0xff]
    %v217 = vld [vmem:[%s4 + $0x58] sm:$0xff]
    %v218 = vld [vmem:[%s4 + $0x60] sm:$0xff]
    %v219 = vld [vmem:[%s4 + $0x68] sm:$0xff]
    %v220 = vld [vmem:[%s4 + $0x70] sm:$0xff]
    %v221 = vld [vmem:[%s4 + $0x78] sm:$0xff]
    %v222 = vld [vmem:[%s4 + $0x80] sm:$0xff]
    %v223 = vld [vmem:[%s4 + $0x88] sm:$0xff]
    %v224 = vld [vmem:[%s4 + $0x90] sm:$0xff]
    %v225 = vld [vmem:[%s4 + $0x98] sm:$0xff]
    %v226 = vld [vmem:[%s4 + $0xa0] sm:$0xff]
    %v227 = vld [vmem:[%s4 + $0xa8] sm:$0xff]
    %v228 = vld [vmem:[%s4 + $0xb0] sm:$0xff]
    %v229 = vld [vmem:[%s4 + $0xb8] sm:$0xff]
    %v230 = vld [vmem:[%s4 + $0xc0] sm:$0xff]
    %v231 = vld [vmem:[%s4 + $0xc8] sm:$0xff]
    %v232 = vld [vmem:[%s4 + $0xd0] sm:$0xff]
    %v233 = vld [vmem:[%s4 + $0xd8] sm:$0xff]
    %v234 = vld [vmem:[%s4 + $0xe0] sm:$0xff]
    %v235 = vld [vmem:[%s4 + $0xe8] sm:$0xff]
    %v236 = vld [vmem:[%s4 + $0xf0] sm:$0xff]
    %v237 = vld [vmem:[%s4 + $0xf8] sm:$0xff]
    %v238 = vld [vmem:[%s4 + $0x100] sm:$0xff]
    %v239 = vld [vmem:[%s4 + $0x108] sm:$0xff]
    %v240 = vld [vmem:[%s4 + $0x110] sm:$0xff]
    %v241 = vld [vmem:[%s4 + $0x118] sm:$0xff]
    %v242 = vld [vmem:[%s4 + $0x120] sm:$0xff]
    %v243 = vld [vmem:[%s4 + $0x128] sm:$0xff]
    %v244 = vld [vmem:[%s4 + $0x130] sm:$0xff]
    %v245 = vld [vmem:[%s4 + $0x138] sm:$0xff]
    %v246 = vld [vmem:[%s4 + $0x140] sm:$0xff]
    %v247 = vld [vmem:[%s4 + $0x148] sm:$0xff]
    %v248 = vld [vmem:[%s4 + $0x150] sm:$0xff]
    %v249 = vld [vmem:[%s4 + $0x158] sm:$0xff]
    %v250 = vld [vmem:[%s4 + $0x160] sm:$0xff]
    %v251 = vld [vmem:[%s4 + $0x168] sm:$0xff]
    %v252 = vld [vmem:[%s4 + $0x170] sm:$0xff]
    %v253 = vld [vmem:[%s4 + $0x178] sm:$0xff]
    %v254 = vld [vmem:[%s4 + $0x180] sm:$0xff]
    %v255 = vld [vmem:[%s4 + $0x188] sm:$0xff]
    %v256 = vld [vmem:[%s4 + $0x190] sm:$0xff]
    %v257 = vld [vmem:[%s4 + $0x198] sm:$0xff]
    %v258 = vld [vmem:[%s4 + $0x1a0] sm:$0xff]
    %v259 = vld [vmem:[%s4 + $0x1a8] sm:$0xff]
    %v260 = vld [vmem:[%s4 + $0x1b0] sm:$0xff]
    %v261 = vld [vmem:[%s4 + $0x1b8] sm:$0xff]
    %v262 = vld [vmem:[%s4 + $0x1c0] sm:$0xff]
    %v263 = vld [vmem:[%s4 + $0x1c8] sm:$0xff]
    %v264 = vld [vmem:[%s4 + $0x1d0] sm:$0xff]
    %v265 = vld [vmem:[%s4 + $0x1d8] sm:$0xff]
    %v266 = vld [vmem:[%s4 + $0x1e0] sm:$0xff]
    %v267 = vld [vmem:[%s4 + $0x1e8] sm:$0xff]
    %v268 = vld [vmem:[%s4 + $0x1f0] sm:$0xff]
    %v269 = vld [vmem:[%s4 + $0x1f8] sm:$0xff]
    %v270 = vld [vmem:[%s5] sm:$0xf]
    %v272 = vlaneseq
    %v273 = vshrl.u32 %v272, 7
    %v274 = vsub.s32 0, %v273
    %v275 = vrot.slane %v270, %v274
    %v276 = vlaneseq
    %v277 = vshrl.u32 %v276, 7
    %v278 = vsub.s32 1, %v277
    %v279 = vrot.slane %v270, %v278
    %v280 = vlaneseq
    %v281 = vshrl.u32 %v280, 7
    %v282 = vsub.s32 2, %v281
    %v283 = vrot.slane %v270, %v282
    %v284 = vlaneseq
    %v285 = vshrl.u32 %v284, 7
    %v286 = vsub.s32 3, %v285
    %v287 = vrot.slane %v270, %v286
    %v356 = vunpack.c.l.b16 %v206
    %v357 = vunpack.c.h.b16 %v206
    %v358 = vunpack.c.l.b16 %v207
    %v359 = vunpack.c.h.b16 %v207
    %v360 = vunpack.c.l.b16 %v208
    %v361 = vunpack.c.h.b16 %v208
    %v362 = vunpack.c.l.b16 %v209
    %v363 = vunpack.c.h.b16 %v209
    %v364 = vunpack.c.l.b16 %v210
    %v365 = vunpack.c.h.b16 %v210
    %v366 = vunpack.c.l.b16 %v211
    %v367 = vunpack.c.h.b16 %v211
    %v368 = vunpack.c.l.b16 %v212
    %v369 = vunpack.c.h.b16 %v212
    %v370 = vunpack.c.l.b16 %v213
    %v371 = vunpack.c.h.b16 %v213
    %v372 = vunpack.c.l.b16 %v214
    %v373 = vunpack.c.h.b16 %v214
    %v374 = vunpack.c.l.b16 %v215
    %v375 = vunpack.c.h.b16 %v215
    %v376 = vunpack.c.l.b16 %v216
    %v377 = vunpack.c.h.b16 %v216
    %v378 = vunpack.c.l.b16 %v217
    %v379 = vunpack.c.h.b16 %v217
    %v380 = vunpack.c.l.b16 %v218
    %v381 = vunpack.c.h.b16 %v218
    %v382 = vunpack.c.l.b16 %v219
    %v383 = vunpack.c.h.b16 %v219
    %v384 = vunpack.c.l.b16 %v220
    %v385 = vunpack.c.h.b16 %v220
    %v386 = vunpack.c.l.b16 %v221
    %v387 = vunpack.c.h.b16 %v221
    %v388 = vunpack.c.l.b16 %v222
    %v389 = vunpack.c.h.b16 %v222
    %v390 = vunpack.c.l.b16 %v223
    %v391 = vunpack.c.h.b16 %v223
    %v392 = vunpack.c.l.b16 %v224
    %v393 = vunpack.c.h.b16 %v224
    %v394 = vunpack.c.l.b16 %v225
    %v395 = vunpack.c.h.b16 %v225
    %v396 = vunpack.c.l.b16 %v226
    %v397 = vunpack.c.h.b16 %v226
    %v398 = vunpack.c.l.b16 %v227
    %v399 = vunpack.c.h.b16 %v227
    %v400 = vunpack.c.l.b16 %v228
    %v401 = vunpack.c.h.b16 %v228
    %v402 = vunpack.c.l.b16 %v229
    %v403 = vunpack.c.h.b16 %v229
    %v404 = vunpack.c.l.b16 %v230
    %v405 = vunpack.c.h.b16 %v230
    %v406 = vunpack.c.l.b16 %v231
    %v407 = vunpack.c.h.b16 %v231
    %v408 = vunpack.c.l.b16 %v232
    %v409 = vunpack.c.h.b16 %v232
    %v410 = vunpack.c.l.b16 %v233
    %v411 = vunpack.c.h.b16 %v233
    %v412 = vunpack.c.l.b16 %v234
    %v413 = vunpack.c.h.b16 %v234
    %v414 = vunpack.c.l.b16 %v235
    %v415 = vunpack.c.h.b16 %v235
    %v416 = vunpack.c.l.b16 %v236
    %v417 = vunpack.c.h.b16 %v236
    %v418 = vunpack.c.l.b16 %v237
    %v419 = vunpack.c.h.b16 %v237
    %v420 = vunpack.c.l.b16 %v238
    %v421 = vunpack.c.h.b16 %v238
    %v422 = vunpack.c.l.b16 %v239
    %v423 = vunpack.c.h.b16 %v239
    %v424 = vunpack.c.l.b16 %v240
    %v425 = vunpack.c.h.b16 %v240
    %v426 = vunpack.c.l.b16 %v241
    %v427 = vunpack.c.h.b16 %v241
    %v428 = vunpack.c.l.b16 %v242
    %v429 = vunpack.c.h.b16 %v242
    %v430 = vunpack.c.l.b16 %v243
    %v431 = vunpack.c.h.b16 %v243
    %v432 = vunpack.c.l.b16 %v244
    %v433 = vunpack.c.h.b16 %v244
    %v434 = vunpack.c.l.b16 %v245
    %v435 = vunpack.c.h.b16 %v245
    %v436 = vunpack.c.l.b16 %v246
    %v437 = vunpack.c.h.b16 %v246
    %v438 = vunpack.c.l.b16 %v247
    %v439 = vunpack.c.h.b16 %v247
    %v440 = vunpack.c.l.b16 %v248
    %v441 = vunpack.c.h.b16 %v248
    %v442 = vunpack.c.l.b16 %v249
    %v443 = vunpack.c.h.b16 %v249
    %v444 = vunpack.c.l.b16 %v250
    %v445 = vunpack.c.h.b16 %v250
    %v446 = vunpack.c.l.b16 %v251
    %v447 = vunpack.c.h.b16 %v251
    %v448 = vunpack.c.l.b16 %v252
    %v449 = vunpack.c.h.b16 %v252
    %v450 = vunpack.c.l.b16 %v253
    %v451 = vunpack.c.h.b16 %v253
    %v452 = vunpack.c.l.b16 %v254
    %v453 = vunpack.c.h.b16 %v254
    %v454 = vunpack.c.l.b16 %v255
    %v455 = vunpack.c.h.b16 %v255
    %v456 = vunpack.c.l.b16 %v256
    %v457 = vunpack.c.h.b16 %v256
    %v458 = vunpack.c.l.b16 %v257
    %v459 = vunpack.c.h.b16 %v257
    %v460 = vunpack.c.l.b16 %v258
    %v461 = vunpack.c.h.b16 %v258
    %v462 = vunpack.c.l.b16 %v259
    %v463 = vunpack.c.h.b16 %v259
    %v464 = vunpack.c.l.b16 %v260
    %v465 = vunpack.c.h.b16 %v260
    %v466 = vunpack.c.l.b16 %v261
    %v467 = vunpack.c.h.b16 %v261
    %v468 = vunpack.c.l.b16 %v262
    %v469 = vunpack.c.h.b16 %v262
    %v470 = vunpack.c.l.b16 %v263
    %v471 = vunpack.c.h.b16 %v263
    %v472 = vunpack.c.l.b16 %v264
    %v473 = vunpack.c.h.b16 %v264
    %v474 = vunpack.c.l.b16 %v265
    %v475 = vunpack.c.h.b16 %v265
    %v476 = vunpack.c.l.b16 %v266
    %v477 = vunpack.c.h.b16 %v266
    %v478 = vunpack.c.l.b16 %v267
    %v479 = vunpack.c.h.b16 %v267
    %v480 = vunpack.c.l.b16 %v268
    %v481 = vunpack.c.h.b16 %v268
    %v482 = vunpack.c.l.b16 %v269
    %v483 = vunpack.c.h.b16 %v269
    %v484 = vpack.c.b16 %v360, %v356
    %v485 = vpack.c.b16 %v361, %v357
    %v486 = vpack.c.b16 %v362, %v358
    %v487 = vpack.c.b16 %v363, %v359
    %v488 = vpack.c.b16 %v368, %v364
    %v489 = vpack.c.b16 %v369, %v365
    %v490 = vpack.c.b16 %v370, %v366
    %v491 = vpack.c.b16 %v371, %v367
    %v492 = vpack.c.b16 %v376, %v372
    %v493 = vpack.c.b16 %v377, %v373
    %v494 = vpack.c.b16 %v378, %v374
    %v495 = vpack.c.b16 %v379, %v375
    %v496 = vpack.c.b16 %v384, %v380
    %v497 = vpack.c.b16 %v385, %v381
    %v498 = vpack.c.b16 %v386, %v382
    %v499 = vpack.c.b16 %v387, %v383
    %v500 = vpack.c.b16 %v392, %v388
    %v501 = vpack.c.b16 %v393, %v389
    %v502 = vpack.c.b16 %v394, %v390
    %v503 = vpack.c.b16 %v395, %v391
    %v504 = vpack.c.b16 %v400, %v396
    %v505 = vpack.c.b16 %v401, %v397
    %v506 = vpack.c.b16 %v402, %v398
    %v507 = vpack.c.b16 %v403, %v399
    %v508 = vpack.c.b16 %v408, %v404
    %v509 = vpack.c.b16 %v409, %v405
    %v510 = vpack.c.b16 %v410, %v406
    %v511 = vpack.c.b16 %v411, %v407
    %v512 = vpack.c.b16 %v416, %v412
    %v513 = vpack.c.b16 %v417, %v413
    %v514 = vpack.c.b16 %v418, %v414
    %v515 = vpack.c.b16 %v419, %v415
    %v516 = vpack.c.b16 %v424, %v420
    %v517 = vpack.c.b16 %v425, %v421
    %v518 = vpack.c.b16 %v426, %v422
    %v519 = vpack.c.b16 %v427, %v423
    %v520 = vpack.c.b16 %v432, %v428
    %v521 = vpack.c.b16 %v433, %v429
    %v522 = vpack.c.b16 %v434, %v430
    %v523 = vpack.c.b16 %v435, %v431
    %v524 = vpack.c.b16 %v440, %v436
    %v525 = vpack.c.b16 %v441, %v437
    %v526 = vpack.c.b16 %v442, %v438
    %v527 = vpack.c.b16 %v443, %v439
    %v528 = vpack.c.b16 %v448, %v444
    %v529 = vpack.c.b16 %v449, %v445
    %v530 = vpack.c.b16 %v450, %v446
    %v531 = vpack.c.b16 %v451, %v447
    %v532 = vpack.c.b16 %v456, %v452
    %v533 = vpack.c.b16 %v457, %v453
    %v534 = vpack.c.b16 %v458, %v454
    %v535 = vpack.c.b16 %v459, %v455
    %v536 = vpack.c.b16 %v464, %v460
    %v537 = vpack.c.b16 %v465, %v461
    %v538 = vpack.c.b16 %v466, %v462
    %v539 = vpack.c.b16 %v467, %v463
    %v540 = vpack.c.b16 %v472, %v468
    %v541 = vpack.c.b16 %v473, %v469
    %v542 = vpack.c.b16 %v474, %v470
    %v543 = vpack.c.b16 %v475, %v471
    %v544 = vpack.c.b16 %v480, %v476
    %v545 = vpack.c.b16 %v481, %v477
    %v546 = vpack.c.b16 %v482, %v478
    %v547 = vpack.c.b16 %v483, %v479
    %612 = vmatprep.subr.bf16.mxu0 %v485
    %613 = vmatpush1.bf16.msra.mxu0 %v484
    %614 = vmatprep.subr.bf16.mxu0 %v489
    %615 = vmatpush1.bf16.msra.mxu0 %v488
    %616 = vmatprep.subr.bf16.mxu0 %v493
    %617 = vmatpush1.bf16.msra.mxu0 %v492
    %618 = vmatprep.subr.bf16.mxu0 %v497
    %619 = vmatpush1.bf16.msra.mxu0 %v496
    %620 = vmatprep.subr.bf16.mxu0 %v501
    %621 = vmatpush1.bf16.msra.mxu0 %v500
    %622 = vmatprep.subr.bf16.mxu0 %v505
    %623 = vmatpush1.bf16.msra.mxu0 %v504
    %624 = vmatprep.subr.bf16.mxu0 %v509
    %625 = vmatpush1.bf16.msra.mxu0 %v508
    %626 = vmatprep.subr.bf16.mxu0 %v513
    %627 = vmatpush1.bf16.msra.mxu0 %v512
    %628 = vmatprep.subr.bf16.mxu0 %v517
    %629 = vmatpush1.bf16.msra.mxu0 %v516
    %630 = vmatprep.subr.bf16.mxu0 %v521
    %631 = vmatpush1.bf16.msra.mxu0 %v520
    %632 = vmatprep.subr.bf16.mxu0 %v525
    %633 = vmatpush1.bf16.msra.mxu0 %v524
    %634 = vmatprep.subr.bf16.mxu0 %v529
    %635 = vmatpush1.bf16.msra.mxu0 %v528
    %636 = vmatprep.subr.bf16.mxu0 %v533
    %637 = vmatpush1.bf16.msra.mxu0 %v532
    %638 = vmatprep.subr.bf16.mxu0 %v537
    %639 = vmatpush1.bf16.msra.mxu0 %v536
    %640 = vmatprep.subr.bf16.mxu0 %v541
    %641 = vmatpush1.bf16.msra.mxu0 %v540
    %642 = vmatprep.subr.bf16.mxu0 %v545
    %643 = vmatpush1.bf16.msra.mxu0 %v544
    %644 = vmatprep.mubr.bf16.mxu0 %v205
    %645 = vmatmul.mubr.bf16.gmra.mrb[0].mxu0 %v204
    %v646 = vpop.f32.mrb[0].mxu0
    %v647 = vadd.f32 %v275, %v646
    %v648 = vpop.f32.mrb[0].mxu0
    %v649 = vadd.f32 %v279, %v648
    %v650 = vpop.f32.mrb[0].mxu0
    %v651 = vadd.f32 %v275, %v650
    %v652 = vpop.f32.mrb[0].mxu0
    %v653 = vadd.f32 %v279, %v652
    %654 = vdwg.mxu0
    %655 = vmatprep.subr.bf16.mxu0 %v487
    %656 = vmatpush1.bf16.msra.mxu0 %v486
    %657 = vmatprep.subr.bf16.mxu0 %v491
    %658 = vmatpush1.bf16.msra.mxu0 %v490
    %659 = vmatprep.subr.bf16.mxu0 %v495
    %660 = vmatpush1.bf16.msra.mxu0 %v494
    %661 = vmatprep.subr.bf16.mxu0 %v499
    %662 = vmatpush1.bf16.msra.mxu0 %v498
    %663 = vmatprep.subr.bf16.mxu0 %v503
    %664 = vmatpush1.bf16.msra.mxu0 %v502
    %665 = vmatprep.subr.bf16.mxu0 %v507
    %666 = vmatpush1.bf16.msra.mxu0 %v506
    %667 = vmatprep.subr.bf16.mxu0 %v511
    %668 = vmatpush1.bf16.msra.mxu0 %v510
    %669 = vmatprep.subr.bf16.mxu0 %v515
    %670 = vmatpush1.bf16.msra.mxu0 %v514
    %671 = vmatprep.subr.bf16.mxu0 %v519
    %672 = vmatpush1.bf16.msra.mxu0 %v518
    %673 = vmatprep.subr.bf16.mxu0 %v523
    %674 = vmatpush1.bf16.msra.mxu0 %v522
    %675 = vmatprep.subr.bf16.mxu0 %v527
    %676 = vmatpush1.bf16.msra.mxu0 %v526
    %677 = vmatprep.subr.bf16.mxu0 %v531
    %678 = vmatpush1.bf16.msra.mxu0 %v530
    %679 = vmatprep.subr.bf16.mxu0 %v535
    %680 = vmatpush1.bf16.msra.mxu0 %v534
    %681 = vmatprep.subr.bf16.mxu0 %v539
    %682 = vmatpush1.bf16.msra.mxu0 %v538
    %683 = vmatprep.subr.bf16.mxu0 %v543
    %684 = vmatpush1.bf16.msra.mxu0 %v542
    %685 = vmatprep.subr.bf16.mxu0 %v547
    %686 = vmatpush1.bf16.msra.mxu0 %v546
    %687 = vmatprep.mubr.bf16.mxu0 %v205
    %688 = vmatmul.mubr.bf16.gmra.mrb[0].mxu0 %v204
    %v689 = vpop.f32.mrb[0].mxu0
    %v690 = vadd.f32 %v283, %v689
    %v691 = vpop.f32.mrb[0].mxu0
    %v692 = vadd.f32 %v287, %v691
    %v693 = vpop.f32.mrb[0].mxu0
    %v694 = vadd.f32 %v283, %v693
    %v695 = vpop.f32.mrb[0].mxu0
    %v696 = vadd.f32 %v287, %v695
    %697 = vdwg.mxu0
    %v698 = vmul.f32 %v647, 0.2
    %v699 = vmul.f32 %v649, 0.2
    %v700 = vmul.f32 %v690, 0.2
    %v701 = vmul.f32 %v692, 0.2
    %v702 = vmul.f32 %v651, 0.2
    %v703 = vmul.f32 %v653, 0.2
    %v704 = vmul.f32 %v694, 0.2
    %v705 = vmul.f32 %v696, 0.2
    %v706 = vmax.f32 %v647, %v698
    %v707 = vmax.f32 %v649, %v699
    %v708 = vmax.f32 %v690, %v700
    %v709 = vmax.f32 %v692, %v701
    %v710 = vmax.f32 %v651, %v702
    %v711 = vmax.f32 %v653, %v703
    %v712 = vmax.f32 %v694, %v704
    %v713 = vmax.f32 %v696, %v705
    %v714 = vpack.c.bf16 %v710, %v706
    %v715 = vpack.c.bf16 %v711, %v707
    %v716 = vpack.c.bf16 %v712, %v708
    %v717 = vpack.c.bf16 %v713, %v709
    %v718 = vld [vmem:[%s6] sm:$0xff]
    %v719 = vld [vmem:[%s6 + $0x8] sm:$0xff]
    %v720 = vld [vmem:[%s6 + $0x10] sm:$0xff]
    %v721 = vld [vmem:[%s6 + $0x18] sm:$0xff]
    %v722 = vld [vmem:[%s6 + $0x20] sm:$0xff]
    %v723 = vld [vmem:[%s6 + $0x28] sm:$0xff]
    %v724 = vld [vmem:[%s6 + $0x30] sm:$0xff]
    %v725 = vld [vmem:[%s6 + $0x38] sm:$0xff]
    %v726 = vld [vmem:[%s6 + $0x40] sm:$0xff]
    %v727 = vld [vmem:[%s6 + $0x48] sm:$0xff]
    %v728 = vld [vmem:[%s6 + $0x50] sm:$0xff]
    %v729 = vld [vmem:[%s6 + $0x58] sm:$0xff]
    %v730 = vld [vmem:[%s6 + $0x60] sm:$0xff]
    %v731 = vld [vmem:[%s6 + $0x68] sm:$0xff]
    %v732 = vld [vmem:[%s6 + $0x70] sm:$0xff]
    %v733 = vld [vmem:[%s6 + $0x78] sm:$0xff]
    %v734 = vld [vmem:[%s6 + $0x80] sm:$0xff]
    %v735 = vld [vmem:[%s6 + $0x88] sm:$0xff]
    %v736 = vld [vmem:[%s6 + $0x90] sm:$0xff]
    %v737 = vld [vmem:[%s6 + $0x98] sm:$0xff]
    %v738 = vld [vmem:[%s6 + $0xa0] sm:$0xff]
    %v739 = vld [vmem:[%s6 + $0xa8] sm:$0xff]
    %v740 = vld [vmem:[%s6 + $0xb0] sm:$0xff]
    %v741 = vld [vmem:[%s6 + $0xb8] sm:$0xff]
    %v742 = vld [vmem:[%s6 + $0xc0] sm:$0xff]
    %v743 = vld [vmem:[%s6 + $0xc8] sm:$0xff]
    %v744 = vld [vmem:[%s6 + $0xd0] sm:$0xff]
    %v745 = vld [vmem:[%s6 + $0xd8] sm:$0xff]
    %v746 = vld [vmem:[%s6 + $0xe0] sm:$0xff]
    %v747 = vld [vmem:[%s6 + $0xe8] sm:$0xff]
    %v748 = vld [vmem:[%s6 + $0xf0] sm:$0xff]
    %v749 = vld [vmem:[%s6 + $0xf8] sm:$0xff]
    %v750 = vld [vmem:[%s6 + $0x100] sm:$0xff]
    %v751 = vld [vmem:[%s6 + $0x108] sm:$0xff]
    %v752 = vld [vmem:[%s6 + $0x110] sm:$0xff]
    %v753 = vld [vmem:[%s6 + $0x118] sm:$0xff]
    %v754 = vld [vmem:[%s6 + $0x120] sm:$0xff]
    %v755 = vld [vmem:[%s6 + $0x128] sm:$0xff]
    %v756 = vld [vmem:[%s6 + $0x130] sm:$0xff]
    %v757 = vld [vmem:[%s6 + $0x138] sm:$0xff]
    %v758 = vld [vmem:[%s6 + $0x140] sm:$0xff]
    %v759 = vld [vmem:[%s6 + $0x148] sm:$0xff]
    %v760 = vld [vmem:[%s6 + $0x150] sm:$0xff]
    %v761 = vld [vmem:[%s6 + $0x158] sm:$0xff]
    %v762 = vld [vmem:[%s6 + $0x160] sm:$0xff]
    %v763 = vld [vmem:[%s6 + $0x168] sm:$0xff]
    %v764 = vld [vmem:[%s6 + $0x170] sm:$0xff]
    %v765 = vld [vmem:[%s6 + $0x178] sm:$0xff]
    %v766 = vld [vmem:[%s6 + $0x180] sm:$0xff]
    %v767 = vld [vmem:[%s6 + $0x188] sm:$0xff]
    %v768 = vld [vmem:[%s6 + $0x190] sm:$0xff]
    %v769 = vld [vmem:[%s6 + $0x198] sm:$0xff]
    %v770 = vld [vmem:[%s6 + $0x1a0] sm:$0xff]
    %v771 = vld [vmem:[%s6 + $0x1a8] sm:$0xff]
    %v772 = vld [vmem:[%s6 + $0x1b0] sm:$0xff]
    %v773 = vld [vmem:[%s6 + $0x1b8] sm:$0xff]
    %v774 = vld [vmem:[%s6 + $0x1c0] sm:$0xff]
    %v775 = vld [vmem:[%s6 + $0x1c8] sm:$0xff]
    %v776 = vld [vmem:[%s6 + $0x1d0] sm:$0xff]
    %v777 = vld [vmem:[%s6 + $0x1d8] sm:$0xff]
    %v778 = vld [vmem:[%s6 + $0x1e0] sm:$0xff]
    %v779 = vld [vmem:[%s6 + $0x1e8] sm:$0xff]
    %v780 = vld [vmem:[%s6 + $0x1f0] sm:$0xff]
    %v781 = vld [vmem:[%s6 + $0x1f8] sm:$0xff]
    %v782 = vld [vmem:[%s6 + $0x200] sm:$0xff]
    %v783 = vld [vmem:[%s6 + $0x208] sm:$0xff]
    %v784 = vld [vmem:[%s6 + $0x210] sm:$0xff]
    %v785 = vld [vmem:[%s6 + $0x218] sm:$0xff]
    %v786 = vld [vmem:[%s6 + $0x220] sm:$0xff]
    %v787 = vld [vmem:[%s6 + $0x228] sm:$0xff]
    %v788 = vld [vmem:[%s6 + $0x230] sm:$0xff]
    %v789 = vld [vmem:[%s6 + $0x238] sm:$0xff]
    %v790 = vld [vmem:[%s6 + $0x240] sm:$0xff]
    %v791 = vld [vmem:[%s6 + $0x248] sm:$0xff]
    %v792 = vld [vmem:[%s6 + $0x250] sm:$0xff]
    %v793 = vld [vmem:[%s6 + $0x258] sm:$0xff]
    %v794 = vld [vmem:[%s6 + $0x260] sm:$0xff]
    %v795 = vld [vmem:[%s6 + $0x268] sm:$0xff]
    %v796 = vld [vmem:[%s6 + $0x270] sm:$0xff]
    %v797 = vld [vmem:[%s6 + $0x278] sm:$0xff]
    %v798 = vld [vmem:[%s6 + $0x280] sm:$0xff]
    %v799 = vld [vmem:[%s6 + $0x288] sm:$0xff]
    %v800 = vld [vmem:[%s6 + $0x290] sm:$0xff]
    %v801 = vld [vmem:[%s6 + $0x298] sm:$0xff]
    %v802 = vld [vmem:[%s6 + $0x2a0] sm:$0xff]
    %v803 = vld [vmem:[%s6 + $0x2a8] sm:$0xff]
    %v804 = vld [vmem:[%s6 + $0x2b0] sm:$0xff]
    %v805 = vld [vmem:[%s6 + $0x2b8] sm:$0xff]
    %v806 = vld [vmem:[%s6 + $0x2c0] sm:$0xff]
    %v807 = vld [vmem:[%s6 + $0x2c8] sm:$0xff]
    %v808 = vld [vmem:[%s6 + $0x2d0] sm:$0xff]
    %v809 = vld [vmem:[%s6 + $0x2d8] sm:$0xff]
    %v810 = vld [vmem:[%s6 + $0x2e0] sm:$0xff]
    %v811 = vld [vmem:[%s6 + $0x2e8] sm:$0xff]
    %v812 = vld [vmem:[%s6 + $0x2f0] sm:$0xff]
    %v813 = vld [vmem:[%s6 + $0x2f8] sm:$0xff]
    %v814 = vld [vmem:[%s6 + $0x300] sm:$0xff]
    %v815 = vld [vmem:[%s6 + $0x308] sm:$0xff]
    %v816 = vld [vmem:[%s6 + $0x310] sm:$0xff]
    %v817 = vld [vmem:[%s6 + $0x318] sm:$0xff]
    %v818 = vld [vmem:[%s6 + $0x320] sm:$0xff]
    %v819 = vld [vmem:[%s6 + $0x328] sm:$0xff]
    %v820 = vld [vmem:[%s6 + $0x330] sm:$0xff]
    %v821 = vld [vmem:[%s6 + $0x338] sm:$0xff]
    %v822 = vld [vmem:[%s6 + $0x340] sm:$0xff]
    %v823 = vld [vmem:[%s6 + $0x348] sm:$0xff]
    %v824 = vld [vmem:[%s6 + $0x350] sm:$0xff]
    %v825 = vld [vmem:[%s6 + $0x358] sm:$0xff]
    %v826 = vld [vmem:[%s6 + $0x360] sm:$0xff]
    %v827 = vld [vmem:[%s6 + $0x368] sm:$0xff]
    %v828 = vld [vmem:[%s6 + $0x370] sm:$0xff]
    %v829 = vld [vmem:[%s6 + $0x378] sm:$0xff]
    %v830 = vld [vmem:[%s6 + $0x380] sm:$0xff]
    %v831 = vld [vmem:[%s6 + $0x388] sm:$0xff]
    %v832 = vld [vmem:[%s6 + $0x390] sm:$0xff]
    %v833 = vld [vmem:[%s6 + $0x398] sm:$0xff]
    %v834 = vld [vmem:[%s6 + $0x3a0] sm:$0xff]
    %v835 = vld [vmem:[%s6 + $0x3a8] sm:$0xff]
    %v836 = vld [vmem:[%s6 + $0x3b0] sm:$0xff]
    %v837 = vld [vmem:[%s6 + $0x3b8] sm:$0xff]
    %v838 = vld [vmem:[%s6 + $0x3c0] sm:$0xff]
    %v839 = vld [vmem:[%s6 + $0x3c8] sm:$0xff]
    %v840 = vld [vmem:[%s6 + $0x3d0] sm:$0xff]
    %v841 = vld [vmem:[%s6 + $0x3d8] sm:$0xff]
    %v842 = vld [vmem:[%s6 + $0x3e0] sm:$0xff]
    %v843 = vld [vmem:[%s6 + $0x3e8] sm:$0xff]
    %v844 = vld [vmem:[%s6 + $0x3f0] sm:$0xff]
    %v845 = vld [vmem:[%s6 + $0x3f8] sm:$0xff]
    %v846 = vld [vmem:[%s6 + $0x400] sm:$0xff]
    %v847 = vld [vmem:[%s6 + $0x408] sm:$0xff]
    %v848 = vld [vmem:[%s6 + $0x410] sm:$0xff]
    %v849 = vld [vmem:[%s6 + $0x418] sm:$0xff]
    %v850 = vld [vmem:[%s6 + $0x420] sm:$0xff]
    %v851 = vld [vmem:[%s6 + $0x428] sm:$0xff]
    %v852 = vld [vmem:[%s6 + $0x430] sm:$0xff]
    %v853 = vld [vmem:[%s6 + $0x438] sm:$0xff]
    %v854 = vld [vmem:[%s6 + $0x440] sm:$0xff]
    %v855 = vld [vmem:[%s6 + $0x448] sm:$0xff]
    %v856 = vld [vmem:[%s6 + $0x450] sm:$0xff]
    %v857 = vld [vmem:[%s6 + $0x458] sm:$0xff]
    %v858 = vld [vmem:[%s6 + $0x460] sm:$0xff]
    %v859 = vld [vmem:[%s6 + $0x468] sm:$0xff]
    %v860 = vld [vmem:[%s6 + $0x470] sm:$0xff]
    %v861 = vld [vmem:[%s6 + $0x478] sm:$0xff]
    %v862 = vld [vmem:[%s6 + $0x480] sm:$0xff]
    %v863 = vld [vmem:[%s6 + $0x488] sm:$0xff]
    %v864 = vld [vmem:[%s6 + $0x490] sm:$0xff]
    %v865 = vld [vmem:[%s6 + $0x498] sm:$0xff]
    %v866 = vld [vmem:[%s6 + $0x4a0] sm:$0xff]
    %v867 = vld [vmem:[%s6 + $0x4a8] sm:$0xff]
    %v868 = vld [vmem:[%s6 + $0x4b0] sm:$0xff]
    %v869 = vld [vmem:[%s6 + $0x4b8] sm:$0xff]
    %v870 = vld [vmem:[%s6 + $0x4c0] sm:$0xff]
    %v871 = vld [vmem:[%s6 + $0x4c8] sm:$0xff]
    %v872 = vld [vmem:[%s6 + $0x4d0] sm:$0xff]
    %v873 = vld [vmem:[%s6 + $0x4d8] sm:$0xff]
    %v874 = vld [vmem:[%s6 + $0x4e0] sm:$0xff]
    %v875 = vld [vmem:[%s6 + $0x4e8] sm:$0xff]
    %v876 = vld [vmem:[%s6 + $0x4f0] sm:$0xff]
    %v877 = vld [vmem:[%s6 + $0x4f8] sm:$0xff]
    %v878 = vld [vmem:[%s6 + $0x500] sm:$0xff]
    %v879 = vld [vmem:[%s6 + $0x508] sm:$0xff]
    %v880 = vld [vmem:[%s6 + $0x510] sm:$0xff]
    %v881 = vld [vmem:[%s6 + $0x518] sm:$0xff]
    %v882 = vld [vmem:[%s6 + $0x520] sm:$0xff]
    %v883 = vld [vmem:[%s6 + $0x528] sm:$0xff]
    %v884 = vld [vmem:[%s6 + $0x530] sm:$0xff]
    %v885 = vld [vmem:[%s6 + $0x538] sm:$0xff]
    %v886 = vld [vmem:[%s6 + $0x540] sm:$0xff]
    %v887 = vld [vmem:[%s6 + $0x548] sm:$0xff]
    %v888 = vld [vmem:[%s6 + $0x550] sm:$0xff]
    %v889 = vld [vmem:[%s6 + $0x558] sm:$0xff]
    %v890 = vld [vmem:[%s6 + $0x560] sm:$0xff]
    %v891 = vld [vmem:[%s6 + $0x568] sm:$0xff]
    %v892 = vld [vmem:[%s6 + $0x570] sm:$0xff]
    %v893 = vld [vmem:[%s6 + $0x578] sm:$0xff]
    %v894 = vld [vmem:[%s6 + $0x580] sm:$0xff]
    %v895 = vld [vmem:[%s6 + $0x588] sm:$0xff]
    %v896 = vld [vmem:[%s6 + $0x590] sm:$0xff]
    %v897 = vld [vmem:[%s6 + $0x598] sm:$0xff]
    %v898 = vld [vmem:[%s6 + $0x5a0] sm:$0xff]
    %v899 = vld [vmem:[%s6 + $0x5a8] sm:$0xff]
    %v900 = vld [vmem:[%s6 + $0x5b0] sm:$0xff]
    %v901 = vld [vmem:[%s6 + $0x5b8] sm:$0xff]
    %v902 = vld [vmem:[%s6 + $0x5c0] sm:$0xff]
    %v903 = vld [vmem:[%s6 + $0x5c8] sm:$0xff]
    %v904 = vld [vmem:[%s6 + $0x5d0] sm:$0xff]
    %v905 = vld [vmem:[%s6 + $0x5d8] sm:$0xff]
    %v906 = vld [vmem:[%s6 + $0x5e0] sm:$0xff]
    %v907 = vld [vmem:[%s6 + $0x5e8] sm:$0xff]
    %v908 = vld [vmem:[%s6 + $0x5f0] sm:$0xff]
    %v909 = vld [vmem:[%s6 + $0x5f8] sm:$0xff]
    %v910 = vld [vmem:[%s6 + $0x600] sm:$0xff]
    %v911 = vld [vmem:[%s6 + $0x608] sm:$0xff]
    %v912 = vld [vmem:[%s6 + $0x610] sm:$0xff]
    %v913 = vld [vmem:[%s6 + $0x618] sm:$0xff]
    %v914 = vld [vmem:[%s6 + $0x620] sm:$0xff]
    %v915 = vld [vmem:[%s6 + $0x628] sm:$0xff]
    %v916 = vld [vmem:[%s6 + $0x630] sm:$0xff]
    %v917 = vld [vmem:[%s6 + $0x638] sm:$0xff]
    %v918 = vld [vmem:[%s6 + $0x640] sm:$0xff]
    %v919 = vld [vmem:[%s6 + $0x648] sm:$0xff]
    %v920 = vld [vmem:[%s6 + $0x650] sm:$0xff]
    %v921 = vld [vmem:[%s6 + $0x658] sm:$0xff]
    %v922 = vld [vmem:[%s6 + $0x660] sm:$0xff]
    %v923 = vld [vmem:[%s6 + $0x668] sm:$0xff]
    %v924 = vld [vmem:[%s6 + $0x670] sm:$0xff]
    %v925 = vld [vmem:[%s6 + $0x678] sm:$0xff]
    %v926 = vld [vmem:[%s6 + $0x680] sm:$0xff]
    %v927 = vld [vmem:[%s6 + $0x688] sm:$0xff]
    %v928 = vld [vmem:[%s6 + $0x690] sm:$0xff]
    %v929 = vld [vmem:[%s6 + $0x698] sm:$0xff]
    %v930 = vld [vmem:[%s6 + $0x6a0] sm:$0xff]
    %v931 = vld [vmem:[%s6 + $0x6a8] sm:$0xff]
    %v932 = vld [vmem:[%s6 + $0x6b0] sm:$0xff]
    %v933 = vld [vmem:[%s6 + $0x6b8] sm:$0xff]
    %v934 = vld [vmem:[%s6 + $0x6c0] sm:$0xff]
    %v935 = vld [vmem:[%s6 + $0x6c8] sm:$0xff]
    %v936 = vld [vmem:[%s6 + $0x6d0] sm:$0xff]
    %v937 = vld [vmem:[%s6 + $0x6d8] sm:$0xff]
    %v938 = vld [vmem:[%s6 + $0x6e0] sm:$0xff]
    %v939 = vld [vmem:[%s6 + $0x6e8] sm:$0xff]
    %v940 = vld [vmem:[%s6 + $0x6f0] sm:$0xff]
    %v941 = vld [vmem:[%s6 + $0x6f8] sm:$0xff]
    %v942 = vld [vmem:[%s6 + $0x700] sm:$0xff]
    %v943 = vld [vmem:[%s6 + $0x708] sm:$0xff]
    %v944 = vld [vmem:[%s6 + $0x710] sm:$0xff]
    %v945 = vld [vmem:[%s6 + $0x718] sm:$0xff]
    %v946 = vld [vmem:[%s6 + $0x720] sm:$0xff]
    %v947 = vld [vmem:[%s6 + $0x728] sm:$0xff]
    %v948 = vld [vmem:[%s6 + $0x730] sm:$0xff]
    %v949 = vld [vmem:[%s6 + $0x738] sm:$0xff]
    %v950 = vld [vmem:[%s6 + $0x740] sm:$0xff]
    %v951 = vld [vmem:[%s6 + $0x748] sm:$0xff]
    %v952 = vld [vmem:[%s6 + $0x750] sm:$0xff]
    %v953 = vld [vmem:[%s6 + $0x758] sm:$0xff]
    %v954 = vld [vmem:[%s6 + $0x760] sm:$0xff]
    %v955 = vld [vmem:[%s6 + $0x768] sm:$0xff]
    %v956 = vld [vmem:[%s6 + $0x770] sm:$0xff]
    %v957 = vld [vmem:[%s6 + $0x778] sm:$0xff]
    %v958 = vld [vmem:[%s6 + $0x780] sm:$0xff]
    %v959 = vld [vmem:[%s6 + $0x788] sm:$0xff]
    %v960 = vld [vmem:[%s6 + $0x790] sm:$0xff]
    %v961 = vld [vmem:[%s6 + $0x798] sm:$0xff]
    %v962 = vld [vmem:[%s6 + $0x7a0] sm:$0xff]
    %v963 = vld [vmem:[%s6 + $0x7a8] sm:$0xff]
    %v964 = vld [vmem:[%s6 + $0x7b0] sm:$0xff]
    %v965 = vld [vmem:[%s6 + $0x7b8] sm:$0xff]
    %v966 = vld [vmem:[%s6 + $0x7c0] sm:$0xff]
    %v967 = vld [vmem:[%s6 + $0x7c8] sm:$0xff]
    %v968 = vld [vmem:[%s6 + $0x7d0] sm:$0xff]
    %v969 = vld [vmem:[%s6 + $0x7d8] sm:$0xff]
    %v970 = vld [vmem:[%s6 + $0x7e0] sm:$0xff]
    %v971 = vld [vmem:[%s6 + $0x7e8] sm:$0xff]
    %v972 = vld [vmem:[%s6 + $0x7f0] sm:$0xff]
    %v973 = vld [vmem:[%s6 + $0x7f8] sm:$0xff]
    %v974 = vld [vmem:[%s7] sm:$0xff]
    %v976 = vlaneseq
    %v977 = vshrl.u32 %v976, 7
    %v978 = vsub.s32 0, %v977
    %v979 = vrot.slane %v974, %v978
    %v980 = vlaneseq
    %v981 = vshrl.u32 %v980, 7
    %v982 = vsub.s32 1, %v981
    %v983 = vrot.slane %v974, %v982
    %v984 = vlaneseq
    %v985 = vshrl.u32 %v984, 7
    %v986 = vsub.s32 2, %v985
    %v987 = vrot.slane %v974, %v986
    %v988 = vlaneseq
    %v989 = vshrl.u32 %v988, 7
    %v990 = vsub.s32 3, %v989
    %v991 = vrot.slane %v974, %v990
    %v992 = vlaneseq
    %v993 = vshrl.u32 %v992, 7
    %v994 = vsub.s32 4, %v993
    %v995 = vrot.slane %v974, %v994
    %v996 = vlaneseq
    %v997 = vshrl.u32 %v996, 7
    %v998 = vsub.s32 5, %v997
    %v999 = vrot.slane %v974, %v998
    %v1000 = vlaneseq
    %v1001 = vshrl.u32 %v1000, 7
    %v1002 = vsub.s32 6, %v1001
    %v1003 = vrot.slane %v974, %v1002
    %v1004 = vlaneseq
    %v1005 = vshrl.u32 %v1004, 7
    %v1006 = vsub.s32 7, %v1005
    %v1007 = vrot.slane %v974, %v1006
    %v1272 = vunpack.c.l.b16 %v718
    %v1273 = vunpack.c.h.b16 %v718
    %v1274 = vunpack.c.l.b16 %v719
    %v1275 = vunpack.c.h.b16 %v719
    %v1276 = vunpack.c.l.b16 %v720
    %v1277 = vunpack.c.h.b16 %v720
    %v1278 = vunpack.c.l.b16 %v721
    %v1279 = vunpack.c.h.b16 %v721
    %v1280 = vunpack.c.l.b16 %v722
    %v1281 = vunpack.c.h.b16 %v722
    %v1282 = vunpack.c.l.b16 %v723
    %v1283 = vunpack.c.h.b16 %v723
    %v1284 = vunpack.c.l.b16 %v724
    %v1285 = vunpack.c.h.b16 %v724
    %v1286 = vunpack.c.l.b16 %v725
    %v1287 = vunpack.c.h.b16 %v725
    %v1288 = vunpack.c.l.b16 %v726
    %v1289 = vunpack.c.h.b16 %v726
    %v1290 = vunpack.c.l.b16 %v727
    %v1291 = vunpack.c.h.b16 %v727
    %v1292 = vunpack.c.l.b16 %v728
    %v1293 = vunpack.c.h.b16 %v728
    %v1294 = vunpack.c.l.b16 %v729
    %v1295 = vunpack.c.h.b16 %v729
    %v1296 = vunpack.c.l.b16 %v730
    %v1297 = vunpack.c.h.b16 %v730
    %v1298 = vunpack.c.l.b16 %v731
    %v1299 = vunpack.c.h.b16 %v731
    %v1300 = vunpack.c.l.b16 %v732
    %v1301 = vunpack.c.h.b16 %v732
    %v1302 = vunpack.c.l.b16 %v733
    %v1303 = vunpack.c.h.b16 %v733
    %v1304 = vunpack.c.l.b16 %v734
    %v1305 = vunpack.c.h.b16 %v734
    %v1306 = vunpack.c.l.b16 %v735
    %v1307 = vunpack.c.h.b16 %v735
    %v1308 = vunpack.c.l.b16 %v736
    %v1309 = vunpack.c.h.b16 %v736
    %v1310 = vunpack.c.l.b16 %v737
    %v1311 = vunpack.c.h.b16 %v737
    %v1312 = vunpack.c.l.b16 %v738
    %v1313 = vunpack.c.h.b16 %v738
    %v1314 = vunpack.c.l.b16 %v739
    %v1315 = vunpack.c.h.b16 %v739
    %v1316 = vunpack.c.l.b16 %v740
    %v1317 = vunpack.c.h.b16 %v740
    %v1318 = vunpack.c.l.b16 %v741
    %v1319 = vunpack.c.h.b16 %v741
    %v1320 = vunpack.c.l.b16 %v742
    %v1321 = vunpack.c.h.b16 %v742
    %v1322 = vunpack.c.l.b16 %v743
    %v1323 = vunpack.c.h.b16 %v743
    %v1324 = vunpack.c.l.b16 %v744
    %v1325 = vunpack.c.h.b16 %v744
    %v1326 = vunpack.c.l.b16 %v745
    %v1327 = vunpack.c.h.b16 %v745
    %v1328 = vunpack.c.l.b16 %v746
    %v1329 = vunpack.c.h.b16 %v746
    %v1330 = vunpack.c.l.b16 %v747
    %v1331 = vunpack.c.h.b16 %v747
    %v1332 = vunpack.c.l.b16 %v748
    %v1333 = vunpack.c.h.b16 %v748
    %v1334 = vunpack.c.l.b16 %v749
    %v1335 = vunpack.c.h.b16 %v749
    %v1336 = vunpack.c.l.b16 %v750
    %v1337 = vunpack.c.h.b16 %v750
    %v1338 = vunpack.c.l.b16 %v751
    %v1339 = vunpack.c.h.b16 %v751
    %v1340 = vunpack.c.l.b16 %v752
    %v1341 = vunpack.c.h.b16 %v752
    %v1342 = vunpack.c.l.b16 %v753
    %v1343 = vunpack.c.h.b16 %v753
    %v1344 = vunpack.c.l.b16 %v754
    %v1345 = vunpack.c.h.b16 %v754
    %v1346 = vunpack.c.l.b16 %v755
    %v1347 = vunpack.c.h.b16 %v755
    %v1348 = vunpack.c.l.b16 %v756
    %v1349 = vunpack.c.h.b16 %v756
    %v1350 = vunpack.c.l.b16 %v757
    %v1351 = vunpack.c.h.b16 %v757
    %v1352 = vunpack.c.l.b16 %v758
    %v1353 = vunpack.c.h.b16 %v758
    %v1354 = vunpack.c.l.b16 %v759
    %v1355 = vunpack.c.h.b16 %v759
    %v1356 = vunpack.c.l.b16 %v760
    %v1357 = vunpack.c.h.b16 %v760
    %v1358 = vunpack.c.l.b16 %v761
    %v1359 = vunpack.c.h.b16 %v761
    %v1360 = vunpack.c.l.b16 %v762
    %v1361 = vunpack.c.h.b16 %v762
    %v1362 = vunpack.c.l.b16 %v763
    %v1363 = vunpack.c.h.b16 %v763
    %v1364 = vunpack.c.l.b16 %v764
    %v1365 = vunpack.c.h.b16 %v764
    %v1366 = vunpack.c.l.b16 %v765
    %v1367 = vunpack.c.h.b16 %v765
    %v1368 = vunpack.c.l.b16 %v766
    %v1369 = vunpack.c.h.b16 %v766
    %v1370 = vunpack.c.l.b16 %v767
    %v1371 = vunpack.c.h.b16 %v767
    %v1372 = vunpack.c.l.b16 %v768
    %v1373 = vunpack.c.h.b16 %v768
    %v1374 = vunpack.c.l.b16 %v769
    %v1375 = vunpack.c.h.b16 %v769
    %v1376 = vunpack.c.l.b16 %v770
    %v1377 = vunpack.c.h.b16 %v770
    %v1378 = vunpack.c.l.b16 %v771
    %v1379 = vunpack.c.h.b16 %v771
    %v1380 = vunpack.c.l.b16 %v772
    %v1381 = vunpack.c.h.b16 %v772
    %v1382 = vunpack.c.l.b16 %v773
    %v1383 = vunpack.c.h.b16 %v773
    %v1384 = vunpack.c.l.b16 %v774
    %v1385 = vunpack.c.h.b16 %v774
    %v1386 = vunpack.c.l.b16 %v775
    %v1387 = vunpack.c.h.b16 %v775
    %v1388 = vunpack.c.l.b16 %v776
    %v1389 = vunpack.c.h.b16 %v776
    %v1390 = vunpack.c.l.b16 %v777
    %v1391 = vunpack.c.h.b16 %v777
    %v1392 = vunpack.c.l.b16 %v778
    %v1393 = vunpack.c.h.b16 %v778
    %v1394 = vunpack.c.l.b16 %v779
    %v1395 = vunpack.c.h.b16 %v779
    %v1396 = vunpack.c.l.b16 %v780
    %v1397 = vunpack.c.h.b16 %v780
    %v1398 = vunpack.c.l.b16 %v781
    %v1399 = vunpack.c.h.b16 %v781
    %v1400 = vunpack.c.l.b16 %v782
    %v1401 = vunpack.c.h.b16 %v782
    %v1402 = vunpack.c.l.b16 %v783
    %v1403 = vunpack.c.h.b16 %v783
    %v1404 = vunpack.c.l.b16 %v784
    %v1405 = vunpack.c.h.b16 %v784
    %v1406 = vunpack.c.l.b16 %v785
    %v1407 = vunpack.c.h.b16 %v785
    %v1408 = vunpack.c.l.b16 %v786
    %v1409 = vunpack.c.h.b16 %v786
    %v1410 = vunpack.c.l.b16 %v787
    %v1411 = vunpack.c.h.b16 %v787
    %v1412 = vunpack.c.l.b16 %v788
    %v1413 = vunpack.c.h.b16 %v788
    %v1414 = vunpack.c.l.b16 %v789
    %v1415 = vunpack.c.h.b16 %v789
    %v1416 = vunpack.c.l.b16 %v790
    %v1417 = vunpack.c.h.b16 %v790
    %v1418 = vunpack.c.l.b16 %v791
    %v1419 = vunpack.c.h.b16 %v791
    %v1420 = vunpack.c.l.b16 %v792
    %v1421 = vunpack.c.h.b16 %v792
    %v1422 = vunpack.c.l.b16 %v793
    %v1423 = vunpack.c.h.b16 %v793
    %v1424 = vunpack.c.l.b16 %v794
    %v1425 = vunpack.c.h.b16 %v794
    %v1426 = vunpack.c.l.b16 %v795
    %v1427 = vunpack.c.h.b16 %v795
    %v1428 = vunpack.c.l.b16 %v796
    %v1429 = vunpack.c.h.b16 %v796
    %v1430 = vunpack.c.l.b16 %v797
    %v1431 = vunpack.c.h.b16 %v797
    %v1432 = vunpack.c.l.b16 %v798
    %v1433 = vunpack.c.h.b16 %v798
    %v1434 = vunpack.c.l.b16 %v799
    %v1435 = vunpack.c.h.b16 %v799
    %v1436 = vunpack.c.l.b16 %v800
    %v1437 = vunpack.c.h.b16 %v800
    %v1438 = vunpack.c.l.b16 %v801
    %v1439 = vunpack.c.h.b16 %v801
    %v1440 = vunpack.c.l.b16 %v802
    %v1441 = vunpack.c.h.b16 %v802
    %v1442 = vunpack.c.l.b16 %v803
    %v1443 = vunpack.c.h.b16 %v803
    %v1444 = vunpack.c.l.b16 %v804
    %v1445 = vunpack.c.h.b16 %v804
    %v1446 = vunpack.c.l.b16 %v805
    %v1447 = vunpack.c.h.b16 %v805
    %v1448 = vunpack.c.l.b16 %v806
    %v1449 = vunpack.c.h.b16 %v806
    %v1450 = vunpack.c.l.b16 %v807
    %v1451 = vunpack.c.h.b16 %v807
    %v1452 = vunpack.c.l.b16 %v808
    %v1453 = vunpack.c.h.b16 %v808
    %v1454 = vunpack.c.l.b16 %v809
    %v1455 = vunpack.c.h.b16 %v809
    %v1456 = vunpack.c.l.b16 %v810
    %v1457 = vunpack.c.h.b16 %v810
    %v1458 = vunpack.c.l.b16 %v811
    %v1459 = vunpack.c.h.b16 %v811
    %v1460 = vunpack.c.l.b16 %v812
    %v1461 = vunpack.c.h.b16 %v812
    %v1462 = vunpack.c.l.b16 %v813
    %v1463 = vunpack.c.h.b16 %v813
    %v1464 = vunpack.c.l.b16 %v814
    %v1465 = vunpack.c.h.b16 %v814
    %v1466 = vunpack.c.l.b16 %v815
    %v1467 = vunpack.c.h.b16 %v815
    %v1468 = vunpack.c.l.b16 %v816
    %v1469 = vunpack.c.h.b16 %v816
    %v1470 = vunpack.c.l.b16 %v817
    %v1471 = vunpack.c.h.b16 %v817
    %v1472 = vunpack.c.l.b16 %v818
    %v1473 = vunpack.c.h.b16 %v818
    %v1474 = vunpack.c.l.b16 %v819
    %v1475 = vunpack.c.h.b16 %v819
    %v1476 = vunpack.c.l.b16 %v820
    %v1477 = vunpack.c.h.b16 %v820
    %v1478 = vunpack.c.l.b16 %v821
    %v1479 = vunpack.c.h.b16 %v821
    %v1480 = vunpack.c.l.b16 %v822
    %v1481 = vunpack.c.h.b16 %v822
    %v1482 = vunpack.c.l.b16 %v823
    %v1483 = vunpack.c.h.b16 %v823
    %v1484 = vunpack.c.l.b16 %v824
    %v1485 = vunpack.c.h.b16 %v824
    %v1486 = vunpack.c.l.b16 %v825
    %v1487 = vunpack.c.h.b16 %v825
    %v1488 = vunpack.c.l.b16 %v826
    %v1489 = vunpack.c.h.b16 %v826
    %v1490 = vunpack.c.l.b16 %v827
    %v1491 = vunpack.c.h.b16 %v827
    %v1492 = vunpack.c.l.b16 %v828
    %v1493 = vunpack.c.h.b16 %v828
    %v1494 = vunpack.c.l.b16 %v829
    %v1495 = vunpack.c.h.b16 %v829
    %v1496 = vunpack.c.l.b16 %v830
    %v1497 = vunpack.c.h.b16 %v830
    %v1498 = vunpack.c.l.b16 %v831
    %v1499 = vunpack.c.h.b16 %v831
    %v1500 = vunpack.c.l.b16 %v832
    %v1501 = vunpack.c.h.b16 %v832
    %v1502 = vunpack.c.l.b16 %v833
    %v1503 = vunpack.c.h.b16 %v833
    %v1504 = vunpack.c.l.b16 %v834
    %v1505 = vunpack.c.h.b16 %v834
    %v1506 = vunpack.c.l.b16 %v835
    %v1507 = vunpack.c.h.b16 %v835
    %v1508 = vunpack.c.l.b16 %v836
    %v1509 = vunpack.c.h.b16 %v836
    %v1510 = vunpack.c.l.b16 %v837
    %v1511 = vunpack.c.h.b16 %v837
    %v1512 = vunpack.c.l.b16 %v838
    %v1513 = vunpack.c.h.b16 %v838
    %v1514 = vunpack.c.l.b16 %v839
    %v1515 = vunpack.c.h.b16 %v839
    %v1516 = vunpack.c.l.b16 %v840
    %v1517 = vunpack.c.h.b16 %v840
    %v1518 = vunpack.c.l.b16 %v841
    %v1519 = vunpack.c.h.b16 %v841
    %v1520 = vunpack.c.l.b16 %v842
    %v1521 = vunpack.c.h.b16 %v842
    %v1522 = vunpack.c.l.b16 %v843
    %v1523 = vunpack.c.h.b16 %v843
    %v1524 = vunpack.c.l.b16 %v844
    %v1525 = vunpack.c.h.b16 %v844
    %v1526 = vunpack.c.l.b16 %v845
    %v1527 = vunpack.c.h.b16 %v845
    %v1528 = vunpack.c.l.b16 %v846
    %v1529 = vunpack.c.h.b16 %v846
    %v1530 = vunpack.c.l.b16 %v847
    %v1531 = vunpack.c.h.b16 %v847
    %v1532 = vunpack.c.l.b16 %v848
    %v1533 = vunpack.c.h.b16 %v848
    %v1534 = vunpack.c.l.b16 %v849
    %v1535 = vunpack.c.h.b16 %v849
    %v1536 = vunpack.c.l.b16 %v850
    %v1537 = vunpack.c.h.b16 %v850
    %v1538 = vunpack.c.l.b16 %v851
    %v1539 = vunpack.c.h.b16 %v851
    %v1540 = vunpack.c.l.b16 %v852
    %v1541 = vunpack.c.h.b16 %v852
    %v1542 = vunpack.c.l.b16 %v853
    %v1543 = vunpack.c.h.b16 %v853
    %v1544 = vunpack.c.l.b16 %v854
    %v1545 = vunpack.c.h.b16 %v854
    %v1546 = vunpack.c.l.b16 %v855
    %v1547 = vunpack.c.h.b16 %v855
    %v1548 = vunpack.c.l.b16 %v856
    %v1549 = vunpack.c.h.b16 %v856
    %v1550 = vunpack.c.l.b16 %v857
    %v1551 = vunpack.c.h.b16 %v857
    %v1552 = vunpack.c.l.b16 %v858
    %v1553 = vunpack.c.h.b16 %v858
    %v1554 = vunpack.c.l.b16 %v859
    %v1555 = vunpack.c.h.b16 %v859
    %v1556 = vunpack.c.l.b16 %v860
    %v1557 = vunpack.c.h.b16 %v860
    %v1558 = vunpack.c.l.b16 %v861
    %v1559 = vunpack.c.h.b16 %v861
    %v1560 = vunpack.c.l.b16 %v862
    %v1561 = vunpack.c.h.b16 %v862
    %v1562 = vunpack.c.l.b16 %v863
    %v1563 = vunpack.c.h.b16 %v863
    %v1564 = vunpack.c.l.b16 %v864
    %v1565 = vunpack.c.h.b16 %v864
    %v1566 = vunpack.c.l.b16 %v865
    %v1567 = vunpack.c.h.b16 %v865
    %v1568 = vunpack.c.l.b16 %v866
    %v1569 = vunpack.c.h.b16 %v866
    %v1570 = vunpack.c.l.b16 %v867
    %v1571 = vunpack.c.h.b16 %v867
    %v1572 = vunpack.c.l.b16 %v868
    %v1573 = vunpack.c.h.b16 %v868
    %v1574 = vunpack.c.l.b16 %v869
    %v1575 = vunpack.c.h.b16 %v869
    %v1576 = vunpack.c.l.b16 %v870
    %v1577 = vunpack.c.h.b16 %v870
    %v1578 = vunpack.c.l.b16 %v871
    %v1579 = vunpack.c.h.b16 %v871
    %v1580 = vunpack.c.l.b16 %v872
    %v1581 = vunpack.c.h.b16 %v872
    %v1582 = vunpack.c.l.b16 %v873
    %v1583 = vunpack.c.h.b16 %v873
    %v1584 = vunpack.c.l.b16 %v874
    %v1585 = vunpack.c.h.b16 %v874
    %v1586 = vunpack.c.l.b16 %v875
    %v1587 = vunpack.c.h.b16 %v875
    %v1588 = vunpack.c.l.b16 %v876
    %v1589 = vunpack.c.h.b16 %v876
    %v1590 = vunpack.c.l.b16 %v877
    %v1591 = vunpack.c.h.b16 %v877
    %v1592 = vunpack.c.l.b16 %v878
    %v1593 = vunpack.c.h.b16 %v878
    %v1594 = vunpack.c.l.b16 %v879
    %v1595 = vunpack.c.h.b16 %v879
    %v1596 = vunpack.c.l.b16 %v880
    %v1597 = vunpack.c.h.b16 %v880
    %v1598 = vunpack.c.l.b16 %v881
    %v1599 = vunpack.c.h.b16 %v881
    %v1600 = vunpack.c.l.b16 %v882
    %v1601 = vunpack.c.h.b16 %v882
    %v1602 = vunpack.c.l.b16 %v883
    %v1603 = vunpack.c.h.b16 %v883
    %v1604 = vunpack.c.l.b16 %v884
    %v1605 = vunpack.c.h.b16 %v884
    %v1606 = vunpack.c.l.b16 %v885
    %v1607 = vunpack.c.h.b16 %v885
    %v1608 = vunpack.c.l.b16 %v886
    %v1609 = vunpack.c.h.b16 %v886
    %v1610 = vunpack.c.l.b16 %v887
    %v1611 = vunpack.c.h.b16 %v887
    %v1612 = vunpack.c.l.b16 %v888
    %v1613 = vunpack.c.h.b16 %v888
    %v1614 = vunpack.c.l.b16 %v889
    %v1615 = vunpack.c.h.b16 %v889
    %v1616 = vunpack.c.l.b16 %v890
    %v1617 = vunpack.c.h.b16 %v890
    %v1618 = vunpack.c.l.b16 %v891
    %v1619 = vunpack.c.h.b16 %v891
    %v1620 = vunpack.c.l.b16 %v892
    %v1621 = vunpack.c.h.b16 %v892
    %v1622 = vunpack.c.l.b16 %v893
    %v1623 = vunpack.c.h.b16 %v893
    %v1624 = vunpack.c.l.b16 %v894
    %v1625 = vunpack.c.h.b16 %v894
    %v1626 = vunpack.c.l.b16 %v895
    %v1627 = vunpack.c.h.b16 %v895
    %v1628 = vunpack.c.l.b16 %v896
    %v1629 = vunpack.c.h.b16 %v896
    %v1630 = vunpack.c.l.b16 %v897
    %v1631 = vunpack.c.h.b16 %v897
    %v1632 = vunpack.c.l.b16 %v898
    %v1633 = vunpack.c.h.b16 %v898
    %v1634 = vunpack.c.l.b16 %v899
    %v1635 = vunpack.c.h.b16 %v899
    %v1636 = vunpack.c.l.b16 %v900
    %v1637 = vunpack.c.h.b16 %v900
    %v1638 = vunpack.c.l.b16 %v901
    %v1639 = vunpack.c.h.b16 %v901
    %v1640 = vunpack.c.l.b16 %v902
    %v1641 = vunpack.c.h.b16 %v902
    %v1642 = vunpack.c.l.b16 %v903
    %v1643 = vunpack.c.h.b16 %v903
    %v1644 = vunpack.c.l.b16 %v904
    %v1645 = vunpack.c.h.b16 %v904
    %v1646 = vunpack.c.l.b16 %v905
    %v1647 = vunpack.c.h.b16 %v905
    %v1648 = vunpack.c.l.b16 %v906
    %v1649 = vunpack.c.h.b16 %v906
    %v1650 = vunpack.c.l.b16 %v907
    %v1651 = vunpack.c.h.b16 %v907
    %v1652 = vunpack.c.l.b16 %v908
    %v1653 = vunpack.c.h.b16 %v908
    %v1654 = vunpack.c.l.b16 %v909
    %v1655 = vunpack.c.h.b16 %v909
    %v1656 = vunpack.c.l.b16 %v910
    %v1657 = vunpack.c.h.b16 %v910
    %v1658 = vunpack.c.l.b16 %v911
    %v1659 = vunpack.c.h.b16 %v911
    %v1660 = vunpack.c.l.b16 %v912
    %v1661 = vunpack.c.h.b16 %v912
    %v1662 = vunpack.c.l.b16 %v913
    %v1663 = vunpack.c.h.b16 %v913
    %v1664 = vunpack.c.l.b16 %v914
    %v1665 = vunpack.c.h.b16 %v914
    %v1666 = vunpack.c.l.b16 %v915
    %v1667 = vunpack.c.h.b16 %v915
    %v1668 = vunpack.c.l.b16 %v916
    %v1669 = vunpack.c.h.b16 %v916
    %v1670 = vunpack.c.l.b16 %v917
    %v1671 = vunpack.c.h.b16 %v917
    %v1672 = vunpack.c.l.b16 %v918
    %v1673 = vunpack.c.h.b16 %v918
    %v1674 = vunpack.c.l.b16 %v919
    %v1675 = vunpack.c.h.b16 %v919
    %v1676 = vunpack.c.l.b16 %v920
    %v1677 = vunpack.c.h.b16 %v920
    %v1678 = vunpack.c.l.b16 %v921
    %v1679 = vunpack.c.h.b16 %v921
    %v1680 = vunpack.c.l.b16 %v922
    %v1681 = vunpack.c.h.b16 %v922
    %v1682 = vunpack.c.l.b16 %v923
    %v1683 = vunpack.c.h.b16 %v923
    %v1684 = vunpack.c.l.b16 %v924
    %v1685 = vunpack.c.h.b16 %v924
    %v1686 = vunpack.c.l.b16 %v925
    %v1687 = vunpack.c.h.b16 %v925
    %v1688 = vunpack.c.l.b16 %v926
    %v1689 = vunpack.c.h.b16 %v926
    %v1690 = vunpack.c.l.b16 %v927
    %v1691 = vunpack.c.h.b16 %v927
    %v1692 = vunpack.c.l.b16 %v928
    %v1693 = vunpack.c.h.b16 %v928
    %v1694 = vunpack.c.l.b16 %v929
    %v1695 = vunpack.c.h.b16 %v929
    %v1696 = vunpack.c.l.b16 %v930
    %v1697 = vunpack.c.h.b16 %v930
    %v1698 = vunpack.c.l.b16 %v931
    %v1699 = vunpack.c.h.b16 %v931
    %v1700 = vunpack.c.l.b16 %v932
    %v1701 = vunpack.c.h.b16 %v932
    %v1702 = vunpack.c.l.b16 %v933
    %v1703 = vunpack.c.h.b16 %v933
    %v1704 = vunpack.c.l.b16 %v934
    %v1705 = vunpack.c.h.b16 %v934
    %v1706 = vunpack.c.l.b16 %v935
    %v1707 = vunpack.c.h.b16 %v935
    %v1708 = vunpack.c.l.b16 %v936
    %v1709 = vunpack.c.h.b16 %v936
    %v1710 = vunpack.c.l.b16 %v937
    %v1711 = vunpack.c.h.b16 %v937
    %v1712 = vunpack.c.l.b16 %v938
    %v1713 = vunpack.c.h.b16 %v938
    %v1714 = vunpack.c.l.b16 %v939
    %v1715 = vunpack.c.h.b16 %v939
    %v1716 = vunpack.c.l.b16 %v940
    %v1717 = vunpack.c.h.b16 %v940
    %v1718 = vunpack.c.l.b16 %v941
    %v1719 = vunpack.c.h.b16 %v941
    %v1720 = vunpack.c.l.b16 %v942
    %v1721 = vunpack.c.h.b16 %v942
    %v1722 = vunpack.c.l.b16 %v943
    %v1723 = vunpack.c.h.b16 %v943
    %v1724 = vunpack.c.l.b16 %v944
    %v1725 = vunpack.c.h.b16 %v944
    %v1726 = vunpack.c.l.b16 %v945
    %v1727 = vunpack.c.h.b16 %v945
    %v1728 = vunpack.c.l.b16 %v946
    %v1729 = vunpack.c.h.b16 %v946
    %v1730 = vunpack.c.l.b16 %v947
    %v1731 = vunpack.c.h.b16 %v947
    %v1732 = vunpack.c.l.b16 %v948
    %v1733 = vunpack.c.h.b16 %v948
    %v1734 = vunpack.c.l.b16 %v949
    %v1735 = vunpack.c.h.b16 %v949
    %v1736 = vunpack.c.l.b16 %v950
    %v1737 = vunpack.c.h.b16 %v950
    %v1738 = vunpack.c.l.b16 %v951
    %v1739 = vunpack.c.h.b16 %v951
    %v1740 = vunpack.c.l.b16 %v952
    %v1741 = vunpack.c.h.b16 %v952
    %v1742 = vunpack.c.l.b16 %v953
    %v1743 = vunpack.c.h.b16 %v953
    %v1744 = vunpack.c.l.b16 %v954
    %v1745 = vunpack.c.h.b16 %v954
    %v1746 = vunpack.c.l.b16 %v955
    %v1747 = vunpack.c.h.b16 %v955
    %v1748 = vunpack.c.l.b16 %v956
    %v1749 = vunpack.c.h.b16 %v956
    %v1750 = vunpack.c.l.b16 %v957
    %v1751 = vunpack.c.h.b16 %v957
    %v1752 = vunpack.c.l.b16 %v958
    %v1753 = vunpack.c.h.b16 %v958
    %v1754 = vunpack.c.l.b16 %v959
    %v1755 = vunpack.c.h.b16 %v959
    %v1756 = vunpack.c.l.b16 %v960
    %v1757 = vunpack.c.h.b16 %v960
    %v1758 = vunpack.c.l.b16 %v961
    %v1759 = vunpack.c.h.b16 %v961
    %v1760 = vunpack.c.l.b16 %v962
    %v1761 = vunpack.c.h.b16 %v962
    %v1762 = vunpack.c.l.b16 %v963
    %v1763 = vunpack.c.h.b16 %v963
    %v1764 = vunpack.c.l.b16 %v964
    %v1765 = vunpack.c.h.b16 %v964
    %v1766 = vunpack.c.l.b16 %v965
    %v1767 = vunpack.c.h.b16 %v965
    %v1768 = vunpack.c.l.b16 %v966
    %v1769 = vunpack.c.h.b16 %v966
    %v1770 = vunpack.c.l.b16 %v967
    %v1771 = vunpack.c.h.b16 %v967
    %v1772 = vunpack.c.l.b16 %v968
    %v1773 = vunpack.c.h.b16 %v968
    %v1774 = vunpack.c.l.b16 %v969
    %v1775 = vunpack.c.h.b16 %v969
    %v1776 = vunpack.c.l.b16 %v970
    %v1777 = vunpack.c.h.b16 %v970
    %v1778 = vunpack.c.l.b16 %v971
    %v1779 = vunpack.c.h.b16 %v971
    %v1780 = vunpack.c.l.b16 %v972
    %v1781 = vunpack.c.h.b16 %v972
    %v1782 = vunpack.c.l.b16 %v973
    %v1783 = vunpack.c.h.b16 %v973
    %v1784 = vpack.c.b16 %v1280, %v1272
    %v1785 = vpack.c.b16 %v1281, %v1273
    %v1786 = vpack.c.b16 %v1282, %v1274
    %v1787 = vpack.c.b16 %v1283, %v1275
    %v1788 = vpack.c.b16 %v1284, %v1276
    %v1789 = vpack.c.b16 %v1285, %v1277
    %v1790 = vpack.c.b16 %v1286, %v1278
    %v1791 = vpack.c.b16 %v1287, %v1279
    %v1792 = vpack.c.b16 %v1296, %v1288
    %v1793 = vpack.c.b16 %v1297, %v1289
    %v1794 = vpack.c.b16 %v1298, %v1290
    %v1795 = vpack.c.b16 %v1299, %v1291
    %v1796 = vpack.c.b16 %v1300, %v1292
    %v1797 = vpack.c.b16 %v1301, %v1293
    %v1798 = vpack.c.b16 %v1302, %v1294
    %v1799 = vpack.c.b16 %v1303, %v1295
    %v1800 = vpack.c.b16 %v1312, %v1304
    %v1801 = vpack.c.b16 %v1313, %v1305
    %v1802 = vpack.c.b16 %v1314, %v1306
    %v1803 = vpack.c.b16 %v1315, %v1307
    %v1804 = vpack.c.b16 %v1316, %v1308
    %v1805 = vpack.c.b16 %v1317, %v1309
    %v1806 = vpack.c.b16 %v1318, %v1310
    %v1807 = vpack.c.b16 %v1319, %v1311
    %v1808 = vpack.c.b16 %v1328, %v1320
    %v1809 = vpack.c.b16 %v1329, %v1321
    %v1810 = vpack.c.b16 %v1330, %v1322
    %v1811 = vpack.c.b16 %v1331, %v1323
    %v1812 = vpack.c.b16 %v1332, %v1324
    %v1813 = vpack.c.b16 %v1333, %v1325
    %v1814 = vpack.c.b16 %v1334, %v1326
    %v1815 = vpack.c.b16 %v1335, %v1327
    %v1816 = vpack.c.b16 %v1344, %v1336
    %v1817 = vpack.c.b16 %v1345, %v1337
    %v1818 = vpack.c.b16 %v1346, %v1338
    %v1819 = vpack.c.b16 %v1347, %v1339
    %v1820 = vpack.c.b16 %v1348, %v1340
    %v1821 = vpack.c.b16 %v1349, %v1341
    %v1822 = vpack.c.b16 %v1350, %v1342
    %v1823 = vpack.c.b16 %v1351, %v1343
    %v1824 = vpack.c.b16 %v1360, %v1352
    %v1825 = vpack.c.b16 %v1361, %v1353
    %v1826 = vpack.c.b16 %v1362, %v1354
    %v1827 = vpack.c.b16 %v1363, %v1355
    %v1828 = vpack.c.b16 %v1364, %v1356
    %v1829 = vpack.c.b16 %v1365, %v1357
    %v1830 = vpack.c.b16 %v1366, %v1358
    %v1831 = vpack.c.b16 %v1367, %v1359
    %v1832 = vpack.c.b16 %v1376, %v1368
    %v1833 = vpack.c.b16 %v1377, %v1369
    %v1834 = vpack.c.b16 %v1378, %v1370
    %v1835 = vpack.c.b16 %v1379, %v1371
    %v1836 = vpack.c.b16 %v1380, %v1372
    %v1837 = vpack.c.b16 %v1381, %v1373
    %v1838 = vpack.c.b16 %v1382, %v1374
    %v1839 = vpack.c.b16 %v1383, %v1375
    %v1840 = vpack.c.b16 %v1392, %v1384
    %v1841 = vpack.c.b16 %v1393, %v1385
    %v1842 = vpack.c.b16 %v1394, %v1386
    %v1843 = vpack.c.b16 %v1395, %v1387
    %v1844 = vpack.c.b16 %v1396, %v1388
    %v1845 = vpack.c.b16 %v1397, %v1389
    %v1846 = vpack.c.b16 %v1398, %v1390
    %v1847 = vpack.c.b16 %v1399, %v1391
    %v1848 = vpack.c.b16 %v1408, %v1400
    %v1849 = vpack.c.b16 %v1409, %v1401
    %v1850 = vpack.c.b16 %v1410, %v1402
    %v1851 = vpack.c.b16 %v1411, %v1403
    %v1852 = vpack.c.b16 %v1412, %v1404
    %v1853 = vpack.c.b16 %v1413, %v1405
    %v1854 = vpack.c.b16 %v1414, %v1406
    %v1855 = vpack.c.b16 %v1415, %v1407
    %v1856 = vpack.c.b16 %v1424, %v1416
    %v1857 = vpack.c.b16 %v1425, %v1417
    %v1858 = vpack.c.b16 %v1426, %v1418
    %v1859 = vpack.c.b16 %v1427, %v1419
    %v1860 = vpack.c.b16 %v1428, %v1420
    %v1861 = vpack.c.b16 %v1429, %v1421
    %v1862 = vpack.c.b16 %v1430, %v1422
    %v1863 = vpack.c.b16 %v1431, %v1423
    %v1864 = vpack.c.b16 %v1440, %v1432
    %v1865 = vpack.c.b16 %v1441, %v1433
    %v1866 = vpack.c.b16 %v1442, %v1434
    %v1867 = vpack.c.b16 %v1443, %v1435
    %v1868 = vpack.c.b16 %v1444, %v1436
    %v1869 = vpack.c.b16 %v1445, %v1437
    %v1870 = vpack.c.b16 %v1446, %v1438
    %v1871 = vpack.c.b16 %v1447, %v1439
    %v1872 = vpack.c.b16 %v1456, %v1448
    %v1873 = vpack.c.b16 %v1457, %v1449
    %v1874 = vpack.c.b16 %v1458, %v1450
    %v1875 = vpack.c.b16 %v1459, %v1451
    %v1876 = vpack.c.b16 %v1460, %v1452
    %v1877 = vpack.c.b16 %v1461, %v1453
    %v1878 = vpack.c.b16 %v1462, %v1454
    %v1879 = vpack.c.b16 %v1463, %v1455
    %v1880 = vpack.c.b16 %v1472, %v1464
    %v1881 = vpack.c.b16 %v1473, %v1465
    %v1882 = vpack.c.b16 %v1474, %v1466
    %v1883 = vpack.c.b16 %v1475, %v1467
    %v1884 = vpack.c.b16 %v1476, %v1468
    %v1885 = vpack.c.b16 %v1477, %v1469
    %v1886 = vpack.c.b16 %v1478, %v1470
    %v1887 = vpack.c.b16 %v1479, %v1471
    %v1888 = vpack.c.b16 %v1488, %v1480
    %v1889 = vpack.c.b16 %v1489, %v1481
    %v1890 = vpack.c.b16 %v1490, %v1482
    %v1891 = vpack.c.b16 %v1491, %v1483
    %v1892 = vpack.c.b16 %v1492, %v1484
    %v1893 = vpack.c.b16 %v1493, %v1485
    %v1894 = vpack.c.b16 %v1494, %v1486
    %v1895 = vpack.c.b16 %v1495, %v1487
    %v1896 = vpack.c.b16 %v1504, %v1496
    %v1897 = vpack.c.b16 %v1505, %v1497
    %v1898 = vpack.c.b16 %v1506, %v1498
    %v1899 = vpack.c.b16 %v1507, %v1499
    %v1900 = vpack.c.b16 %v1508, %v1500
    %v1901 = vpack.c.b16 %v1509, %v1501
    %v1902 = vpack.c.b16 %v1510, %v1502
    %v1903 = vpack.c.b16 %v1511, %v1503
    %v1904 = vpack.c.b16 %v1520, %v1512
    %v1905 = vpack.c.b16 %v1521, %v1513
    %v1906 = vpack.c.b16 %v1522, %v1514
    %v1907 = vpack.c.b16 %v1523, %v1515
    %v1908 = vpack.c.b16 %v1524, %v1516
    %v1909 = vpack.c.b16 %v1525, %v1517
    %v1910 = vpack.c.b16 %v1526, %v1518
    %v1911 = vpack.c.b16 %v1527, %v1519
    %v1912 = vpack.c.b16 %v1536, %v1528
    %v1913 = vpack.c.b16 %v1537, %v1529
    %v1914 = vpack.c.b16 %v1538, %v1530
    %v1915 = vpack.c.b16 %v1539, %v1531
    %v1916 = vpack.c.b16 %v1540, %v1532
    %v1917 = vpack.c.b16 %v1541, %v1533
    %v1918 = vpack.c.b16 %v1542, %v1534
    %v1919 = vpack.c.b16 %v1543, %v1535
    %v1920 = vpack.c.b16 %v1552, %v1544
    %v1921 = vpack.c.b16 %v1553, %v1545
    %v1922 = vpack.c.b16 %v1554, %v1546
    %v1923 = vpack.c.b16 %v1555, %v1547
    %v1924 = vpack.c.b16 %v1556, %v1548
    %v1925 = vpack.c.b16 %v1557, %v1549
    %v1926 = vpack.c.b16 %v1558, %v1550
    %v1927 = vpack.c.b16 %v1559, %v1551
    %v1928 = vpack.c.b16 %v1568, %v1560
    %v1929 = vpack.c.b16 %v1569, %v1561
    %v1930 = vpack.c.b16 %v1570, %v1562
    %v1931 = vpack.c.b16 %v1571, %v1563
    %v1932 = vpack.c.b16 %v1572, %v1564
    %v1933 = vpack.c.b16 %v1573, %v1565
    %v1934 = vpack.c.b16 %v1574, %v1566
    %v1935 = vpack.c.b16 %v1575, %v1567
    %v1936 = vpack.c.b16 %v1584, %v1576
    %v1937 = vpack.c.b16 %v1585, %v1577
    %v1938 = vpack.c.b16 %v1586, %v1578
    %v1939 = vpack.c.b16 %v1587, %v1579
    %v1940 = vpack.c.b16 %v1588, %v1580
    %v1941 = vpack.c.b16 %v1589, %v1581
    %v1942 = vpack.c.b16 %v1590, %v1582
    %v1943 = vpack.c.b16 %v1591, %v1583
    %v1944 = vpack.c.b16 %v1600, %v1592
    %v1945 = vpack.c.b16 %v1601, %v1593
    %v1946 = vpack.c.b16 %v1602, %v1594
    %v1947 = vpack.c.b16 %v1603, %v1595
    %v1948 = vpack.c.b16 %v1604, %v1596
    %v1949 = vpack.c.b16 %v1605, %v1597
    %v1950 = vpack.c.b16 %v1606, %v1598
    %v1951 = vpack.c.b16 %v1607, %v1599
    %v1952 = vpack.c.b16 %v1616, %v1608
    %v1953 = vpack.c.b16 %v1617, %v1609
    %v1954 = vpack.c.b16 %v1618, %v1610
    %v1955 = vpack.c.b16 %v1619, %v1611
    %v1956 = vpack.c.b16 %v1620, %v1612
    %v1957 = vpack.c.b16 %v1621, %v1613
    %v1958 = vpack.c.b16 %v1622, %v1614
    %v1959 = vpack.c.b16 %v1623, %v1615
    %v1960 = vpack.c.b16 %v1632, %v1624
    %v1961 = vpack.c.b16 %v1633, %v1625
    %v1962 = vpack.c.b16 %v1634, %v1626
    %v1963 = vpack.c.b16 %v1635, %v1627
    %v1964 = vpack.c.b16 %v1636, %v1628
    %v1965 = vpack.c.b16 %v1637, %v1629
    %v1966 = vpack.c.b16 %v1638, %v1630
    %v1967 = vpack.c.b16 %v1639, %v1631
    %v1968 = vpack.c.b16 %v1648, %v1640
    %v1969 = vpack.c.b16 %v1649, %v1641
    %v1970 = vpack.c.b16 %v1650, %v1642
    %v1971 = vpack.c.b16 %v1651, %v1643
    %v1972 = vpack.c.b16 %v1652, %v1644
    %v1973 = vpack.c.b16 %v1653, %v1645
    %v1974 = vpack.c.b16 %v1654, %v1646
    %v1975 = vpack.c.b16 %v1655, %v1647
    %v1976 = vpack.c.b16 %v1664, %v1656
    %v1977 = vpack.c.b16 %v1665, %v1657
    %v1978 = vpack.c.b16 %v1666, %v1658
    %v1979 = vpack.c.b16 %v1667, %v1659
    %v1980 = vpack.c.b16 %v1668, %v1660
    %v1981 = vpack.c.b16 %v1669, %v1661
    %v1982 = vpack.c.b16 %v1670, %v1662
    %v1983 = vpack.c.b16 %v1671, %v1663
    %v1984 = vpack.c.b16 %v1680, %v1672
    %v1985 = vpack.c.b16 %v1681, %v1673
    %v1986 = vpack.c.b16 %v1682, %v1674
    %v1987 = vpack.c.b16 %v1683, %v1675
    %v1988 = vpack.c.b16 %v1684, %v1676
    %v1989 = vpack.c.b16 %v1685, %v1677
    %v1990 = vpack.c.b16 %v1686, %v1678
    %v1991 = vpack.c.b16 %v1687, %v1679
    %v1992 = vpack.c.b16 %v1696, %v1688
    %v1993 = vpack.c.b16 %v1697, %v1689
    %v1994 = vpack.c.b16 %v1698, %v1690
    %v1995 = vpack.c.b16 %v1699, %v1691
    %v1996 = vpack.c.b16 %v1700, %v1692
    %v1997 = vpack.c.b16 %v1701, %v1693
    %v1998 = vpack.c.b16 %v1702, %v1694
    %v1999 = vpack.c.b16 %v1703, %v1695
    %v2000 = vpack.c.b16 %v1712, %v1704
    %v2001 = vpack.c.b16 %v1713, %v1705
    %v2002 = vpack.c.b16 %v1714, %v1706
    %v2003 = vpack.c.b16 %v1715, %v1707
    %v2004 = vpack.c.b16 %v1716, %v1708
    %v2005 = vpack.c.b16 %v1717, %v1709
    %v2006 = vpack.c.b16 %v1718, %v1710
    %v2007 = vpack.c.b16 %v1719, %v1711
    %v2008 = vpack.c.b16 %v1728, %v1720
    %v2009 = vpack.c.b16 %v1729, %v1721
    %v2010 = vpack.c.b16 %v1730, %v1722
    %v2011 = vpack.c.b16 %v1731, %v1723
    %v2012 = vpack.c.b16 %v1732, %v1724
    %v2013 = vpack.c.b16 %v1733, %v1725
    %v2014 = vpack.c.b16 %v1734, %v1726
    %v2015 = vpack.c.b16 %v1735, %v1727
    %v2016 = vpack.c.b16 %v1744, %v1736
    %v2017 = vpack.c.b16 %v1745, %v1737
    %v2018 = vpack.c.b16 %v1746, %v1738
    %v2019 = vpack.c.b16 %v1747, %v1739
    %v2020 = vpack.c.b16 %v1748, %v1740
    %v2021 = vpack.c.b16 %v1749, %v1741
    %v2022 = vpack.c.b16 %v1750, %v1742
    %v2023 = vpack.c.b16 %v1751, %v1743
    %v2024 = vpack.c.b16 %v1760, %v1752
    %v2025 = vpack.c.b16 %v1761, %v1753
    %v2026 = vpack.c.b16 %v1762, %v1754
    %v2027 = vpack.c.b16 %v1763, %v1755
    %v2028 = vpack.c.b16 %v1764, %v1756
    %v2029 = vpack.c.b16 %v1765, %v1757
    %v2030 = vpack.c.b16 %v1766, %v1758
    %v2031 = vpack.c.b16 %v1767, %v1759
    %v2032 = vpack.c.b16 %v1776, %v1768
    %v2033 = vpack.c.b16 %v1777, %v1769
    %v2034 = vpack.c.b16 %v1778, %v1770
    %v2035 = vpack.c.b16 %v1779, %v1771
    %v2036 = vpack.c.b16 %v1780, %v1772
    %v2037 = vpack.c.b16 %v1781, %v1773
    %v2038 = vpack.c.b16 %v1782, %v1774
    %v2039 = vpack.c.b16 %v1783, %v1775
    %2296 = vmatprep.subr.bf16.mxu0 %v1785
    %2297 = vmatpush1.bf16.msra.mxu0 %v1784
    %2298 = vmatprep.subr.bf16.mxu0 %v1793
    %2299 = vmatpush1.bf16.msra.mxu0 %v1792
    %2300 = vmatprep.subr.bf16.mxu0 %v1801
    %2301 = vmatpush1.bf16.msra.mxu0 %v1800
    %2302 = vmatprep.subr.bf16.mxu0 %v1809
    %2303 = vmatpush1.bf16.msra.mxu0 %v1808
    %2304 = vmatprep.subr.bf16.mxu0 %v1817
    %2305 = vmatpush1.bf16.msra.mxu0 %v1816
    %2306 = vmatprep.subr.bf16.mxu0 %v1825
    %2307 = vmatpush1.bf16.msra.mxu0 %v1824
    %2308 = vmatprep.subr.bf16.mxu0 %v1833
    %2309 = vmatpush1.bf16.msra.mxu0 %v1832
    %2310 = vmatprep.subr.bf16.mxu0 %v1841
    %2311 = vmatpush1.bf16.msra.mxu0 %v1840
    %2312 = vmatprep.subr.bf16.mxu0 %v1849
    %2313 = vmatpush1.bf16.msra.mxu0 %v1848
    %2314 = vmatprep.subr.bf16.mxu0 %v1857
    %2315 = vmatpush1.bf16.msra.mxu0 %v1856
    %2316 = vmatprep.subr.bf16.mxu0 %v1865
    %2317 = vmatpush1.bf16.msra.mxu0 %v1864
    %2318 = vmatprep.subr.bf16.mxu0 %v1873
    %2319 = vmatpush1.bf16.msra.mxu0 %v1872
    %2320 = vmatprep.subr.bf16.mxu0 %v1881
    %2321 = vmatpush1.bf16.msra.mxu0 %v1880
    %2322 = vmatprep.subr.bf16.mxu0 %v1889
    %2323 = vmatpush1.bf16.msra.mxu0 %v1888
    %2324 = vmatprep.subr.bf16.mxu0 %v1897
    %2325 = vmatpush1.bf16.msra.mxu0 %v1896
    %2326 = vmatprep.subr.bf16.mxu0 %v1905
    %2327 = vmatpush1.bf16.msra.mxu0 %v1904
    %2328 = vmatprep.mubr.bf16.mxu0 %v715
    %2329 = vmatmul.mubr.bf16.gmra.mrb[0].mxu0 %v714
    %v2330 = vpop.f32.mrb[0].mxu0
    %v2331 = vadd.f32 %v979, %v2330
    %v2332 = vpop.f32.mrb[0].mxu0
    %v2333 = vadd.f32 %v983, %v2332
    %v2334 = vpop.f32.mrb[0].mxu0
    %v2335 = vadd.f32 %v979, %v2334
    %v2336 = vpop.f32.mrb[0].mxu0
    %v2337 = vadd.f32 %v983, %v2336
    %2338 = vdwg.mxu0
    %2339 = vmatprep.subr.bf16.mxu0 %v1913
    %2340 = vmatpush1.bf16.msra.mxu0 %v1912
    %2341 = vmatprep.subr.bf16.mxu0 %v1921
    %2342 = vmatpush1.bf16.msra.mxu0 %v1920
    %2343 = vmatprep.subr.bf16.mxu0 %v1929
    %2344 = vmatpush1.bf16.msra.mxu0 %v1928
    %2345 = vmatprep.subr.bf16.mxu0 %v1937
    %2346 = vmatpush1.bf16.msra.mxu0 %v1936
    %2347 = vmatprep.subr.bf16.mxu0 %v1945
    %2348 = vmatpush1.bf16.msra.mxu0 %v1944
    %2349 = vmatprep.subr.bf16.mxu0 %v1953
    %2350 = vmatpush1.bf16.msra.mxu0 %v1952
    %2351 = vmatprep.subr.bf16.mxu0 %v1961
    %2352 = vmatpush1.bf16.msra.mxu0 %v1960
    %2353 = vmatprep.subr.bf16.mxu0 %v1969
    %2354 = vmatpush1.bf16.msra.mxu0 %v1968
    %2355 = vmatprep.subr.bf16.mxu0 %v1977
    %2356 = vmatpush1.bf16.msra.mxu0 %v1976
    %2357 = vmatprep.subr.bf16.mxu0 %v1985
    %2358 = vmatpush1.bf16.msra.mxu0 %v1984
    %2359 = vmatprep.subr.bf16.mxu0 %v1993
    %2360 = vmatpush1.bf16.msra.mxu0 %v1992
    %2361 = vmatprep.subr.bf16.mxu0 %v2001
    %2362 = vmatpush1.bf16.msra.mxu0 %v2000
    %2363 = vmatprep.subr.bf16.mxu0 %v2009
    %2364 = vmatpush1.bf16.msra.mxu0 %v2008
    %2365 = vmatprep.subr.bf16.mxu0 %v2017
    %2366 = vmatpush1.bf16.msra.mxu0 %v2016
    %2367 = vmatprep.subr.bf16.mxu0 %v2025
    %2368 = vmatpush1.bf16.msra.mxu0 %v2024
    %2369 = vmatprep.subr.bf16.mxu0 %v2033
    %2370 = vmatpush1.bf16.msra.mxu0 %v2032
    %2371 = vmatprep.mubr.bf16.mxu0 %v717
    %2372 = vmatmul.mubr.bf16.gmra.mrb[0].mxu0 %v716
    %v2373 = vpop.f32.mrb[0].mxu0
    %v2374 = vadd.f32 %v2331, %v2373
    %v2375 = vpop.f32.mrb[0].mxu0
    %v2376 = vadd.f32 %v2333, %v2375
    %v2377 = vpop.f32.mrb[0].mxu0
    %v2378 = vadd.f32 %v2335, %v2377
    %v2379 = vpop.f32.mrb[0].mxu0
    %v2380 = vadd.f32 %v2337, %v2379
    %2381 = vdwg.mxu0
    %2382 = vmatprep.subr.bf16.mxu0 %v1787
    %2383 = vmatpush1.bf16.msra.mxu0 %v1786
    %2384 = vmatprep.subr.bf16.mxu0 %v1795
    %2385 = vmatpush1.bf16.msra.mxu0 %v1794
    %2386 = vmatprep.subr.bf16.mxu0 %v1803
    %2387 = vmatpush1.bf16.msra.mxu0 %v1802
    %2388 = vmatprep.subr.bf16.mxu0 %v1811
    %2389 = vmatpush1.bf16.msra.mxu0 %v1810
    %2390 = vmatprep.subr.bf16.mxu0 %v1819
    %2391 = vmatpush1.bf16.msra.mxu0 %v1818
    %2392 = vmatprep.subr.bf16.mxu0 %v1827
    %2393 = vmatpush1.bf16.msra.mxu0 %v1826
    %2394 = vmatprep.subr.bf16.mxu0 %v1835
    %2395 = vmatpush1.bf16.msra.mxu0 %v1834
    %2396 = vmatprep.subr.bf16.mxu0 %v1843
    %2397 = vmatpush1.bf16.msra.mxu0 %v1842
    %2398 = vmatprep.subr.bf16.mxu0 %v1851
    %2399 = vmatpush1.bf16.msra.mxu0 %v1850
    %2400 = vmatprep.subr.bf16.mxu0 %v1859
    %2401 = vmatpush1.bf16.msra.mxu0 %v1858
    %2402 = vmatprep.subr.bf16.mxu0 %v1867
    %2403 = vmatpush1.bf16.msra.mxu0 %v1866
    %2404 = vmatprep.subr.bf16.mxu0 %v1875
    %2405 = vmatpush1.bf16.msra.mxu0 %v1874
    %2406 = vmatprep.subr.bf16.mxu0 %v1883
    %2407 = vmatpush1.bf16.msra.mxu0 %v1882
    %2408 = vmatprep.subr.bf16.mxu0 %v1891
    %2409 = vmatpush1.bf16.msra.mxu0 %v1890
    %2410 = vmatprep.subr.bf16.mxu0 %v1899
    %2411 = vmatpush1.bf16.msra.mxu0 %v1898
    %2412 = vmatprep.subr.bf16.mxu0 %v1907
    %2413 = vmatpush1.bf16.msra.mxu0 %v1906
    %2414 = vmatprep.mubr.bf16.mxu0 %v715
    %2415 = vmatmul.mubr.bf16.gmra.mrb[0].mxu0 %v714
    %v2416 = vpop.f32.mrb[0].mxu0
    %v2417 = vadd.f32 %v987, %v2416
    %v2418 = vpop.f32.mrb[0].mxu0
    %v2419 = vadd.f32 %v991, %v2418
    %v2420 = vpop.f32.mrb[0].mxu0
    %v2421 = vadd.f32 %v987, %v2420
    %v2422 = vpop.f32.mrb[0].mxu0
    %v2423 = vadd.f32 %v991, %v2422
    %2424 = vdwg.mxu0
    %2425 = vmatprep.subr.bf16.mxu0 %v1915
    %2426 = vmatpush1.bf16.msra.mxu0 %v1914
    %2427 = vmatprep.subr.bf16.mxu0 %v1923
    %2428 = vmatpush1.bf16.msra.mxu0 %v1922
    %2429 = vmatprep.subr.bf16.mxu0 %v1931
    %2430 = vmatpush1.bf16.msra.mxu0 %v1930
    %2431 = vmatprep.subr.bf16.mxu0 %v1939
    %2432 = vmatpush1.bf16.msra.mxu0 %v1938
    %2433 = vmatprep.subr.bf16.mxu0 %v1947
    %2434 = vmatpush1.bf16.msra.mxu0 %v1946
    %2435 = vmatprep.subr.bf16.mxu0 %v1955
    %2436 = vmatpush1.bf16.msra.mxu0 %v1954
    %2437 = vmatprep.subr.bf16.mxu0 %v1963
    %2438 = vmatpush1.bf16.msra.mxu0 %v1962
    %2439 = vmatprep.subr.bf16.mxu0 %v1971
    %2440 = vmatpush1.bf16.msra.mxu0 %v1970
    %2441 = vmatprep.subr.bf16.mxu0 %v1979
    %2442 = vmatpush1.bf16.msra.mxu0 %v1978
    %2443 = vmatprep.subr.bf16.mxu0 %v1987
    %2444 = vmatpush1.bf16.msra.mxu0 %v1986
    %2445 = vmatprep.subr.bf16.mxu0 %v1995
    %2446 = vmatpush1.bf16.msra.mxu0 %v1994
    %2447 = vmatprep.subr.bf16.mxu0 %v2003
    %2448 = vmatpush1.bf16.msra.mxu0 %v2002
    %2449 = vmatprep.subr.bf16.mxu0 %v2011
    %2450 = vmatpush1.bf16.msra.mxu0 %v2010
    %2451 = vmatprep.subr.bf16.mxu0 %v2019
    %2452 = vmatpush1.bf16.msra.mxu0 %v2018
    %2453 = vmatprep.subr.bf16.mxu0 %v2027
    %2454 = vmatpush1.bf16.msra.mxu0 %v2026
    %2455 = vmatprep.subr.bf16.mxu0 %v2035
    %2456 = vmatpush1.bf16.msra.mxu0 %v2034
    %2457 = vmatprep.mubr.bf16.mxu0 %v717
    %2458 = vmatmul.mubr.bf16.gmra.mrb[0].mxu0 %v716
    %v2459 = vpop.f32.mrb[0].mxu0
    %v2460 = vadd.f32 %v2417, %v2459
    %v2461 = vpop.f32.mrb[0].mxu0
    %v2462 = vadd.f32 %v2419, %v2461
    %v2463 = vpop.f32.mrb[0].mxu0
    %v2464 = vadd.f32 %v2421, %v2463
    %v2465 = vpop.f32.mrb[0].mxu0
    %v2466 = vadd.f32 %v2423, %v2465
    %2467 = vdwg.mxu0
    %2468 = vmatprep.subr.bf16.mxu0 %v1789
    %2469 = vmatpush1.bf16.msra.mxu0 %v1788
    %2470 = vmatprep.subr.bf16.mxu0 %v1797
    %2471 = vmatpush1.bf16.msra.mxu0 %v1796
    %2472 = vmatprep.subr.bf16.mxu0 %v1805
    %2473 = vmatpush1.bf16.msra.mxu0 %v1804
    %2474 = vmatprep.subr.bf16.mxu0 %v1813
    %2475 = vmatpush1.bf16.msra.mxu0 %v1812
    %2476 = vmatprep.subr.bf16.mxu0 %v1821
    %2477 = vmatpush1.bf16.msra.mxu0 %v1820
    %2478 = vmatprep.subr.bf16.mxu0 %v1829
    %2479 = vmatpush1.bf16.msra.mxu0 %v1828
    %2480 = vmatprep.subr.bf16.mxu0 %v1837
    %2481 = vmatpush1.bf16.msra.mxu0 %v1836
    %2482 = vmatprep.subr.bf16.mxu0 %v1845
    %2483 = vmatpush1.bf16.msra.mxu0 %v1844
    %2484 = vmatprep.subr.bf16.mxu0 %v1853
    %2485 = vmatpush1.bf16.msra.mxu0 %v1852
    %2486 = vmatprep.subr.bf16.mxu0 %v1861
    %2487 = vmatpush1.bf16.msra.mxu0 %v1860
    %2488 = vmatprep.subr.bf16.mxu0 %v1869
    %2489 = vmatpush1.bf16.msra.mxu0 %v1868
    %2490 = vmatprep.subr.bf16.mxu0 %v1877
    %2491 = vmatpush1.bf16.msra.mxu0 %v1876
    %2492 = vmatprep.subr.bf16.mxu0 %v1885
    %2493 = vmatpush1.bf16.msra.mxu0 %v1884
    %2494 = vmatprep.subr.bf16.mxu0 %v1893
    %2495 = vmatpush1.bf16.msra.mxu0 %v1892
    %2496 = vmatprep.subr.bf16.mxu0 %v1901
    %2497 = vmatpush1.bf16.msra.mxu0 %v1900
    %2498 = vmatprep.subr.bf16.mxu0 %v1909
    %2499 = vmatpush1.bf16.msra.mxu0 %v1908
    %2500 = vmatprep.mubr.bf16.mxu0 %v715
    %2501 = vmatmul.mubr.bf16.gmra.mrb[0].mxu0 %v714
    %v2502 = vpop.f32.mrb[0].mxu0
    %v2503 = vadd.f32 %v995, %v2502
    %v2504 = vpop.f32.mrb[0].mxu0
    %v2505 = vadd.f32 %v999, %v2504
    %v2506 = vpop.f32.mrb[0].mxu0
    %v2507 = vadd.f32 %v995, %v2506
    %v2508 = vpop.f32.mrb[0].mxu0
    %v2509 = vadd.f32 %v999, %v2508
    %2510 = vdwg.mxu0
    %2511 = vmatprep.subr.bf16.mxu0 %v1917
    %2512 = vmatpush1.bf16.msra.mxu0 %v1916
    %2513 = vmatprep.subr.bf16.mxu0 %v1925
    %2514 = vmatpush1.bf16.msra.mxu0 %v1924
    %2515 = vmatprep.subr.bf16.mxu0 %v1933
    %2516 = vmatpush1.bf16.msra.mxu0 %v1932
    %2517 = vmatprep.subr.bf16.mxu0 %v1941
    %2518 = vmatpush1.bf16.msra.mxu0 %v1940
    %2519 = vmatprep.subr.bf16.mxu0 %v1949
    %2520 = vmatpush1.bf16.msra.mxu0 %v1948
    %2521 = vmatprep.subr.bf16.mxu0 %v1957
    %2522 = vmatpush1.bf16.msra.mxu0 %v1956
    %2523 = vmatprep.subr.bf16.mxu0 %v1965
    %2524 = vmatpush1.bf16.msra.mxu0 %v1964
    %2525 = vmatprep.subr.bf16.mxu0 %v1973
    %2526 = vmatpush1.bf16.msra.mxu0 %v1972
    %2527 = vmatprep.subr.bf16.mxu0 %v1981
    %2528 = vmatpush1.bf16.msra.mxu0 %v1980
    %2529 = vmatprep.subr.bf16.mxu0 %v1989
    %2530 = vmatpush1.bf16.msra.mxu0 %v1988
    %2531 = vmatprep.subr.bf16.mxu0 %v1997
    %2532 = vmatpush1.bf16.msra.mxu0 %v1996
    %2533 = vmatprep.subr.bf16.mxu0 %v2005
    %2534 = vmatpush1.bf16.msra.mxu0 %v2004
    %2535 = vmatprep.subr.bf16.mxu0 %v2013
    %2536 = vmatpush1.bf16.msra.mxu0 %v2012
    %2537 = vmatprep.subr.bf16.mxu0 %v2021
    %2538 = vmatpush1.bf16.msra.mxu0 %v2020
    %2539 = vmatprep.subr.bf16.mxu0 %v2029
    %2540 = vmatpush1.bf16.msra.mxu0 %v2028
    %2541 = vmatprep.subr.bf16.mxu0 %v2037
    %2542 = vmatpush1.bf16.msra.mxu0 %v2036
    %2543 = vmatprep.mubr.bf16.mxu0 %v717
    %2544 = vmatmul.mubr.bf16.gmra.mrb[0].mxu0 %v716
    %v2545 = vpop.f32.mrb[0].mxu0
    %v2546 = vadd.f32 %v2503, %v2545
    %v2547 = vpop.f32.mrb[0].mxu0
    %v2548 = vadd.f32 %v2505, %v2547
    %v2549 = vpop.f32.mrb[0].mxu0
    %v2550 = vadd.f32 %v2507, %v2549
    %v2551 = vpop.f32.mrb[0].mxu0
    %v2552 = vadd.f32 %v2509, %v2551
    %2553 = vdwg.mxu0
    %2554 = vmatprep.subr.bf16.mxu0 %v1791
    %2555 = vmatpush1.bf16.msra.mxu0 %v1790
    %2556 = vmatprep.subr.bf16.mxu0 %v1799
    %2557 = vmatpush1.bf16.msra.mxu0 %v1798
    %2558 = vmatprep.subr.bf16.mxu0 %v1807
    %2559 = vmatpush1.bf16.msra.mxu0 %v1806
    %2560 = vmatprep.subr.bf16.mxu0 %v1815
    %2561 = vmatpush1.bf16.msra.mxu0 %v1814
    %2562 = vmatprep.subr.bf16.mxu0 %v1823
    %2563 = vmatpush1.bf16.msra.mxu0 %v1822
    %2564 = vmatprep.subr.bf16.mxu0 %v1831
    %2565 = vmatpush1.bf16.msra.mxu0 %v1830
    %2566 = vmatprep.subr.bf16.mxu0 %v1839
    %2567 = vmatpush1.bf16.msra.mxu0 %v1838
    %2568 = vmatprep.subr.bf16.mxu0 %v1847
    %2569 = vmatpush1.bf16.msra.mxu0 %v1846
    %2570 = vmatprep.subr.bf16.mxu0 %v1855
    %2571 = vmatpush1.bf16.msra.mxu0 %v1854
    %2572 = vmatprep.subr.bf16.mxu0 %v1863
    %2573 = vmatpush1.bf16.msra.mxu0 %v1862
    %2574 = vmatprep.subr.bf16.mxu0 %v1871
    %2575 = vmatpush1.bf16.msra.mxu0 %v1870
    %2576 = vmatprep.subr.bf16.mxu0 %v1879
    %2577 = vmatpush1.bf16.msra.mxu0 %v1878
    %2578 = vmatprep.subr.bf16.mxu0 %v1887
    %2579 = vmatpush1.bf16.msra.mxu0 %v1886
    %2580 = vmatprep.subr.bf16.mxu0 %v1895
    %2581 = vmatpush1.bf16.msra.mxu0 %v1894
    %2582 = vmatprep.subr.bf16.mxu0 %v1903
    %2583 = vmatpush1.bf16.msra.mxu0 %v1902
    %2584 = vmatprep.subr.bf16.mxu0 %v1911
    %2585 = vmatpush1.bf16.msra.mxu0 %v1910
    %2586 = vmatprep.mubr.bf16.mxu0 %v715
    %2587 = vmatmul.mubr.bf16.gmra.mrb[0].mxu0 %v714
    %v2588 = vpop.f32.mrb[0].mxu0
    %v2589 = vadd.f32 %v1003, %v2588
    %v2590 = vpop.f32.mrb[0].mxu0
    %v2591 = vadd.f32 %v1007, %v2590
    %v2592 = vpop.f32.mrb[0].mxu0
    %v2593 = vadd.f32 %v1003, %v2592
    %v2594 = vpop.f32.mrb[0].mxu0
    %v2595 = vadd.f32 %v1007, %v2594
    %2596 = vdwg.mxu0
    %2597 = vmatprep.subr.bf16.mxu0 %v1919
    %2598 = vmatpush1.bf16.msra.mxu0 %v1918
    %2599 = vmatprep.subr.bf16.mxu0 %v1927
    %2600 = vmatpush1.bf16.msra.mxu0 %v1926
    %2601 = vmatprep.subr.bf16.mxu0 %v1935
    %2602 = vmatpush1.bf16.msra.mxu0 %v1934
    %2603 = vmatprep.subr.bf16.mxu0 %v1943
    %2604 = vmatpush1.bf16.msra.mxu0 %v1942
    %2605 = vmatprep.subr.bf16.mxu0 %v1951
    %2606 = vmatpush1.bf16.msra.mxu0 %v1950
    %2607 = vmatprep.subr.bf16.mxu0 %v1959
    %2608 = vmatpush1.bf16.msra.mxu0 %v1958
    %2609 = vmatprep.subr.bf16.mxu0 %v1967
    %2610 = vmatpush1.bf16.msra.mxu0 %v1966
    %2611 = vmatprep.subr.bf16.mxu0 %v1975
    %2612 = vmatpush1.bf16.msra.mxu0 %v1974
    %2613 = vmatprep.subr.bf16.mxu0 %v1983
    %2614 = vmatpush1.bf16.msra.mxu0 %v1982
    %2615 = vmatprep.subr.bf16.mxu0 %v1991
    %2616 = vmatpush1.bf16.msra.mxu0 %v1990
    %2617 = vmatprep.subr.bf16.mxu0 %v1999
    %2618 = vmatpush1.bf16.msra.mxu0 %v1998
    %2619 = vmatprep.subr.bf16.mxu0 %v2007
    %2620 = vmatpush1.bf16.msra.mxu0 %v2006
    %2621 = vmatprep.subr.bf16.mxu0 %v2015
    %2622 = vmatpush1.bf16.msra.mxu0 %v2014
    %2623 = vmatprep.subr.bf16.mxu0 %v2023
    %2624 = vmatpush1.bf16.msra.mxu0 %v2022
    %2625 = vmatprep.subr.bf16.mxu0 %v2031
    %2626 = vmatpush1.bf16.msra.mxu0 %v2030
    %2627 = vmatprep.subr.bf16.mxu0 %v2039
    %2628 = vmatpush1.bf16.msra.mxu0 %v2038
    %2629 = vmatprep.mubr.bf16.mxu0 %v717
    %2630 = vmatmul.mubr.bf16.gmra.mrb[0].mxu0 %v716
    %v2631 = vpop.f32.mrb[0].mxu0
    %v2632 = vadd.f32 %v2589, %v2631
    %v2633 = vpop.f32.mrb[0].mxu0
    %v2634 = vadd.f32 %v2591, %v2633
    %v2635 = vpop.f32.mrb[0].mxu0
    %v2636 = vadd.f32 %v2593, %v2635
    %v2637 = vpop.f32.mrb[0].mxu0
    %v2638 = vadd.f32 %v2595, %v2637
    %2639 = vdwg.mxu0
    %v2640 = vmul.f32 %v2374, 0.2
    %v2641 = vmul.f32 %v2376, 0.2
    %v2642 = vmul.f32 %v2460, 0.2
    %v2643 = vmul.f32 %v2462, 0.2
    %v2644 = vmul.f32 %v2546, 0.2
    %v2645 = vmul.f32 %v2548, 0.2
    %v2646 = vmul.f32 %v2632, 0.2
    %v2647 = vmul.f32 %v2634, 0.2
    %v2648 = vmul.f32 %v2378, 0.2
    %v2649 = vmul.f32 %v2380, 0.2
    %v2650 = vmul.f32 %v2464, 0.2
    %v2651 = vmul.f32 %v2466, 0.2
    %v2652 = vmul.f32 %v2550, 0.2
    %v2653 = vmul.f32 %v2552, 0.2
    %v2654 = vmul.f32 %v2636, 0.2
    %v2655 = vmul.f32 %v2638, 0.2
    %v2656 = vmax.f32 %v2374, %v2640
    %v2657 = vmax.f32 %v2376, %v2641
    %v2658 = vmax.f32 %v2460, %v2642
    %v2659 = vmax.f32 %v2462, %v2643
    %v2660 = vmax.f32 %v2546, %v2644
    %v2661 = vmax.f32 %v2548, %v2645
    %v2662 = vmax.f32 %v2632, %v2646
    %v2663 = vmax.f32 %v2634, %v2647
    %v2664 = vmax.f32 %v2378, %v2648
    %v2665 = vmax.f32 %v2380, %v2649
    %v2666 = vmax.f32 %v2464, %v2650
    %v2667 = vmax.f32 %v2466, %v2651
    %v2668 = vmax.f32 %v2550, %v2652
    %v2669 = vmax.f32 %v2552, %v2653
    %v2670 = vmax.f32 %v2636, %v2654
    %v2671 = vmax.f32 %v2638, %v2655
    %v2672 = vpack.c.bf16 %v2664, %v2656
    %v2673 = vpack.c.bf16 %v2665, %v2657
    %v2674 = vpack.c.bf16 %v2666, %v2658
    %v2675 = vpack.c.bf16 %v2667, %v2659
    %v2676 = vpack.c.bf16 %v2668, %v2660
    %v2677 = vpack.c.bf16 %v2669, %v2661
    %v2678 = vpack.c.bf16 %v2670, %v2662
    %v2679 = vpack.c.bf16 %v2671, %v2663
    %v2680 = vld [vmem:[%s8] sm:$0xff]
    %v2681 = vld [vmem:[%s8 + $0x8] sm:$0xff]
    %v2682 = vld [vmem:[%s8 + $0x10] sm:$0xff]
    %v2683 = vld [vmem:[%s8 + $0x18] sm:$0xf]
    %v2684 = vld [vmem:[%s8 + $0x1c] sm:$0xff]
    %v2685 = vld [vmem:[%s8 + $0x24] sm:$0xff]
    %v2686 = vld [vmem:[%s8 + $0x2c] sm:$0xff]
    %v2687 = vld [vmem:[%s8 + $0x34] sm:$0xf]
    %v2688 = vld [vmem:[%s8 + $0x38] sm:$0xff]
    %v2689 = vld [vmem:[%s8 + $0x40] sm:$0xff]
    %v2690 = vld [vmem:[%s8 + $0x48] sm:$0xff]
    %v2691 = vld [vmem:[%s8 + $0x50] sm:$0xf]
    %v2692 = vld [vmem:[%s8 + $0x54] sm:$0xff]
    %v2693 = vld [vmem:[%s8 + $0x5c] sm:$0xff]
    %v2694 = vld [vmem:[%s8 + $0x64] sm:$0xff]
    %v2695 = vld [vmem:[%s8 + $0x6c] sm:$0xf]
    %v2696 = vld [vmem:[%s8 + $0x70] sm:$0xff]
    %v2697 = vld [vmem:[%s8 + $0x78] sm:$0xff]
    %v2698 = vld [vmem:[%s8 + $0x80] sm:$0xff]
    %v2699 = vld [vmem:[%s8 + $0x88] sm:$0xf]
    %v2700 = vld [vmem:[%s8 + $0x8c] sm:$0xff]
    %v2701 = vld [vmem:[%s8 + $0x94] sm:$0xff]
    %v2702 = vld [vmem:[%s8 + $0x9c] sm:$0xff]
    %v2703 = vld [vmem:[%s8 + $0xa4] sm:$0xf]
    %v2704 = vld [vmem:[%s8 + $0xa8] sm:$0xff]
    %v2705 = vld [vmem:[%s8 + $0xb0] sm:$0xff]
    %v2706 = vld [vmem:[%s8 + $0xb8] sm:$0xff]
    %v2707 = vld [vmem:[%s8 + $0xc0] sm:$0xf]
    %v2708 = vld [vmem:[%s8 + $0xc4] sm:$0xff]
    %v2709 = vld [vmem:[%s8 + $0xcc] sm:$0xff]
    %v2710 = vld [vmem:[%s8 + $0xd4] sm:$0xff]
    %v2711 = vld [vmem:[%s8 + $0xdc] sm:$0xf]
    %v2712 = vld [vmem:[%s8 + $0xe0] sm:$0xff]
    %v2713 = vld [vmem:[%s8 + $0xe8] sm:$0xff]
    %v2714 = vld [vmem:[%s8 + $0xf0] sm:$0xff]
    %v2715 = vld [vmem:[%s8 + $0xf8] sm:$0xf]
    %v2716 = vld [vmem:[%s8 + $0xfc] sm:$0xff]
    %v2717 = vld [vmem:[%s8 + $0x104] sm:$0xff]
    %v2718 = vld [vmem:[%s8 + $0x10c] sm:$0xff]
    %v2719 = vld [vmem:[%s8 + $0x114] sm:$0xf]
    %v2720 = vld [vmem:[%s8 + $0x118] sm:$0xff]
    %v2721 = vld [vmem:[%s8 + $0x120] sm:$0xff]
    %v2722 = vld [vmem:[%s8 + $0x128] sm:$0xff]
    %v2723 = vld [vmem:[%s8 + $0x130] sm:$0xf]
    %v2724 = vld [vmem:[%s8 + $0x134] sm:$0xff]
    %v2725 = vld [vmem:[%s8 + $0x13c] sm:$0xff]
    %v2726 = vld [vmem:[%s8 + $0x144] sm:$0xff]
    %v2727 = vld [vmem:[%s8 + $0x14c] sm:$0xf]
    %v2728 = vld [vmem:[%s8 + $0x150] sm:$0xff]
    %v2729 = vld [vmem:[%s8 + $0x158] sm:$0xff]
    %v2730 = vld [vmem:[%s8 + $0x160] sm:$0xff]
    %v2731 = vld [vmem:[%s8 + $0x168] sm:$0xf]
    %v2732 = vld [vmem:[%s8 + $0x16c] sm:$0xff]
    %v2733 = vld [vmem:[%s8 + $0x174] sm:$0xff]
    %v2734 = vld [vmem:[%s8 + $0x17c] sm:$0xff]
    %v2735 = vld [vmem:[%s8 + $0x184] sm:$0xf]
    %v2736 = vld [vmem:[%s8 + $0x188] sm:$0xff]
    %v2737 = vld [vmem:[%s8 + $0x190] sm:$0xff]
    %v2738 = vld [vmem:[%s8 + $0x198] sm:$0xff]
    %v2739 = vld [vmem:[%s8 + $0x1a0] sm:$0xf]
    %v2740 = vld [vmem:[%s8 + $0x1a4] sm:$0xff]
    %v2741 = vld [vmem:[%s8 + $0x1ac] sm:$0xff]
    %v2742 = vld [vmem:[%s8 + $0x1b4] sm:$0xff]
    %v2743 = vld [vmem:[%s8 + $0x1bc] sm:$0xf]
    %v2744 = vld [vmem:[%s8 + $0x1c0] sm:$0xff]
    %v2745 = vld [vmem:[%s8 + $0x1c8] sm:$0xff]
    %v2746 = vld [vmem:[%s8 + $0x1d0] sm:$0xff]
    %v2747 = vld [vmem:[%s8 + $0x1d8] sm:$0xf]
    %v2748 = vld [vmem:[%s8 + $0x1dc] sm:$0xff]
    %v2749 = vld [vmem:[%s8 + $0x1e4] sm:$0xff]
    %v2750 = vld [vmem:[%s8 + $0x1ec] sm:$0xff]
    %v2751 = vld [vmem:[%s8 + $0x1f4] sm:$0xf]
    %v2752 = vld [vmem:[%s8 + $0x1f8] sm:$0xff]
    %v2753 = vld [vmem:[%s8 + $0x200] sm:$0xff]
    %v2754 = vld [vmem:[%s8 + $0x208] sm:$0xff]
    %v2755 = vld [vmem:[%s8 + $0x210] sm:$0xf]
    %v2756 = vld [vmem:[%s8 + $0x214] sm:$0xff]
    %v2757 = vld [vmem:[%s8 + $0x21c] sm:$0xff]
    %v2758 = vld [vmem:[%s8 + $0x224] sm:$0xff]
    %v2759 = vld [vmem:[%s8 + $0x22c] sm:$0xf]
    %v2760 = vld [vmem:[%s8 + $0x230] sm:$0xff]
    %v2761 = vld [vmem:[%s8 + $0x238] sm:$0xff]
    %v2762 = vld [vmem:[%s8 + $0x240] sm:$0xff]
    %v2763 = vld [vmem:[%s8 + $0x248] sm:$0xf]
    %v2764 = vld [vmem:[%s8 + $0x24c] sm:$0xff]
    %v2765 = vld [vmem:[%s8 + $0x254] sm:$0xff]
    %v2766 = vld [vmem:[%s8 + $0x25c] sm:$0xff]
    %v2767 = vld [vmem:[%s8 + $0x264] sm:$0xf]
    %v2768 = vld [vmem:[%s8 + $0x268] sm:$0xff]
    %v2769 = vld [vmem:[%s8 + $0x270] sm:$0xff]
    %v2770 = vld [vmem:[%s8 + $0x278] sm:$0xff]
    %v2771 = vld [vmem:[%s8 + $0x280] sm:$0xf]
    %v2772 = vld [vmem:[%s8 + $0x284] sm:$0xff]
    %v2773 = vld [vmem:[%s8 + $0x28c] sm:$0xff]
    %v2774 = vld [vmem:[%s8 + $0x294] sm:$0xff]
    %v2775 = vld [vmem:[%s8 + $0x29c] sm:$0xf]
    %v2776 = vld [vmem:[%s8 + $0x2a0] sm:$0xff]
    %v2777 = vld [vmem:[%s8 + $0x2a8] sm:$0xff]
    %v2778 = vld [vmem:[%s8 + $0x2b0] sm:$0xff]
    %v2779 = vld [vmem:[%s8 + $0x2b8] sm:$0xf]
    %v2780 = vld [vmem:[%s8 + $0x2bc] sm:$0xff]
    %v2781 = vld [vmem:[%s8 + $0x2c4] sm:$0xff]
    %v2782 = vld [vmem:[%s8 + $0x2cc] sm:$0xff]
    %v2783 = vld [vmem:[%s8 + $0x2d4] sm:$0xf]
    %v2784 = vld [vmem:[%s8 + $0x2d8] sm:$0xff]
    %v2785 = vld [vmem:[%s8 + $0x2e0] sm:$0xff]
    %v2786 = vld [vmem:[%s8 + $0x2e8] sm:$0xff]
    %v2787 = vld [vmem:[%s8 + $0x2f0] sm:$0xf]
    %v2788 = vld [vmem:[%s8 + $0x2f4] sm:$0xff]
    %v2789 = vld [vmem:[%s8 + $0x2fc] sm:$0xff]
    %v2790 = vld [vmem:[%s8 + $0x304] sm:$0xff]
    %v2791 = vld [vmem:[%s8 + $0x30c] sm:$0xf]
    %v2792 = vld [vmem:[%s8 + $0x310] sm:$0xff]
    %v2793 = vld [vmem:[%s8 + $0x318] sm:$0xff]
    %v2794 = vld [vmem:[%s8 + $0x320] sm:$0xff]
    %v2795 = vld [vmem:[%s8 + $0x328] sm:$0xf]
    %v2796 = vld [vmem:[%s8 + $0x32c] sm:$0xff]
    %v2797 = vld [vmem:[%s8 + $0x334] sm:$0xff]
    %v2798 = vld [vmem:[%s8 + $0x33c] sm:$0xff]
    %v2799 = vld [vmem:[%s8 + $0x344] sm:$0xf]
    %v2800 = vld [vmem:[%s8 + $0x348] sm:$0xff]
    %v2801 = vld [vmem:[%s8 + $0x350] sm:$0xff]
    %v2802 = vld [vmem:[%s8 + $0x358] sm:$0xff]
    %v2803 = vld [vmem:[%s8 + $0x360] sm:$0xf]
    %v2804 = vld [vmem:[%s8 + $0x364] sm:$0xff]
    %v2805 = vld [vmem:[%s8 + $0x36c] sm:$0xff]
    %v2806 = vld [vmem:[%s8 + $0x374] sm:$0xff]
    %v2807 = vld [vmem:[%s8 + $0x37c] sm:$0xf]
    %v2808 = vld [vmem:[%s8 + $0x380] sm:$0xff]
    %v2809 = vld [vmem:[%s8 + $0x388] sm:$0xff]
    %v2810 = vld [vmem:[%s8 + $0x390] sm:$0xff]
    %v2811 = vld [vmem:[%s8 + $0x398] sm:$0xf]
    %v2812 = vld [vmem:[%s8 + $0x39c] sm:$0xff]
    %v2813 = vld [vmem:[%s8 + $0x3a4] sm:$0xff]
    %v2814 = vld [vmem:[%s8 + $0x3ac] sm:$0xff]
    %v2815 = vld [vmem:[%s8 + $0x3b4] sm:$0xf]
    %v2816 = vld [vmem:[%s8 + $0x3b8] sm:$0xff]
    %v2817 = vld [vmem:[%s8 + $0x3c0] sm:$0xff]
    %v2818 = vld [vmem:[%s8 + $0x3c8] sm:$0xff]
    %v2819 = vld [vmem:[%s8 + $0x3d0] sm:$0xf]
    %v2820 = vld [vmem:[%s8 + $0x3d4] sm:$0xff]
    %v2821 = vld [vmem:[%s8 + $0x3dc] sm:$0xff]
    %v2822 = vld [vmem:[%s8 + $0x3e4] sm:$0xff]
    %v2823 = vld [vmem:[%s8 + $0x3ec] sm:$0xf]
    %v2824 = vld [vmem:[%s8 + $0x3f0] sm:$0xff]
    %v2825 = vld [vmem:[%s8 + $0x3f8] sm:$0xff]
    %v2826 = vld [vmem:[%s8 + $0x400] sm:$0xff]
    %v2827 = vld [vmem:[%s8 + $0x408] sm:$0xf]
    %v2828 = vld [vmem:[%s8 + $0x40c] sm:$0xff]
    %v2829 = vld [vmem:[%s8 + $0x414] sm:$0xff]
    %v2830 = vld [vmem:[%s8 + $0x41c] sm:$0xff]
    %v2831 = vld [vmem:[%s8 + $0x424] sm:$0xf]
    %v2832 = vld [vmem:[%s8 + $0x428] sm:$0xff]
    %v2833 = vld [vmem:[%s8 + $0x430] sm:$0xff]
    %v2834 = vld [vmem:[%s8 + $0x438] sm:$0xff]
    %v2835 = vld [vmem:[%s8 + $0x440] sm:$0xf]
    %v2836 = vld [vmem:[%s8 + $0x444] sm:$0xff]
    %v2837 = vld [vmem:[%s8 + $0x44c] sm:$0xff]
    %v2838 = vld [vmem:[%s8 + $0x454] sm:$0xff]
    %v2839 = vld [vmem:[%s8 + $0x45c] sm:$0xf]
    %v2840 = vld [vmem:[%s8 + $0x460] sm:$0xff]
    %v2841 = vld [vmem:[%s8 + $0x468] sm:$0xff]
    %v2842 = vld [vmem:[%s8 + $0x470] sm:$0xff]
    %v2843 = vld [vmem:[%s8 + $0x478] sm:$0xf]
    %v2844 = vld [vmem:[%s8 + $0x47c] sm:$0xff]
    %v2845 = vld [vmem:[%s8 + $0x484] sm:$0xff]
    %v2846 = vld [vmem:[%s8 + $0x48c] sm:$0xff]
    %v2847 = vld [vmem:[%s8 + $0x494] sm:$0xf]
    %v2848 = vld [vmem:[%s8 + $0x498] sm:$0xff]
    %v2849 = vld [vmem:[%s8 + $0x4a0] sm:$0xff]
    %v2850 = vld [vmem:[%s8 + $0x4a8] sm:$0xff]
    %v2851 = vld [vmem:[%s8 + $0x4b0] sm:$0xf]
    %v2852 = vld [vmem:[%s8 + $0x4b4] sm:$0xff]
    %v2853 = vld [vmem:[%s8 + $0x4bc] sm:$0xff]
    %v2854 = vld [vmem:[%s8 + $0x4c4] sm:$0xff]
    %v2855 = vld [vmem:[%s8 + $0x4cc] sm:$0xf]
    %v2856 = vld [vmem:[%s8 + $0x4d0] sm:$0xff]
    %v2857 = vld [vmem:[%s8 + $0x4d8] sm:$0xff]
    %v2858 = vld [vmem:[%s8 + $0x4e0] sm:$0xff]
    %v2859 = vld [vmem:[%s8 + $0x4e8] sm:$0xf]
    %v2860 = vld [vmem:[%s8 + $0x4ec] sm:$0xff]
    %v2861 = vld [vmem:[%s8 + $0x4f4] sm:$0xff]
    %v2862 = vld [vmem:[%s8 + $0x4fc] sm:$0xff]
    %v2863 = vld [vmem:[%s8 + $0x504] sm:$0xf]
    %v2864 = vld [vmem:[%s8 + $0x508] sm:$0xff]
    %v2865 = vld [vmem:[%s8 + $0x510] sm:$0xff]
    %v2866 = vld [vmem:[%s8 + $0x518] sm:$0xff]
    %v2867 = vld [vmem:[%s8 + $0x520] sm:$0xf]
    %v2868 = vld [vmem:[%s8 + $0x524] sm:$0xff]
    %v2869 = vld [vmem:[%s8 + $0x52c] sm:$0xff]
    %v2870 = vld [vmem:[%s8 + $0x534] sm:$0xff]
    %v2871 = vld [vmem:[%s8 + $0x53c] sm:$0xf]
    %v2872 = vld [vmem:[%s8 + $0x540] sm:$0xff]
    %v2873 = vld [vmem:[%s8 + $0x548] sm:$0xff]
    %v2874 = vld [vmem:[%s8 + $0x550] sm:$0xff]
    %v2875 = vld [vmem:[%s8 + $0x558] sm:$0xf]
    %v2876 = vld [vmem:[%s8 + $0x55c] sm:$0xff]
    %v2877 = vld [vmem:[%s8 + $0x564] sm:$0xff]
    %v2878 = vld [vmem:[%s8 + $0x56c] sm:$0xff]
    %v2879 = vld [vmem:[%s8 + $0x574] sm:$0xf]
    %v2880 = vld [vmem:[%s8 + $0x578] sm:$0xff]
    %v2881 = vld [vmem:[%s8 + $0x580] sm:$0xff]
    %v2882 = vld [vmem:[%s8 + $0x588] sm:$0xff]
    %v2883 = vld [vmem:[%s8 + $0x590] sm:$0xf]
    %v2884 = vld [vmem:[%s8 + $0x594] sm:$0xff]
    %v2885 = vld [vmem:[%s8 + $0x59c] sm:$0xff]
    %v2886 = vld [vmem:[%s8 + $0x5a4] sm:$0xff]
    %v2887 = vld [vmem:[%s8 + $0x5ac] sm:$0xf]
    %v2888 = vld [vmem:[%s8 + $0x5b0] sm:$0xff]
    %v2889 = vld [vmem:[%s8 + $0x5b8] sm:$0xff]
    %v2890 = vld [vmem:[%s8 + $0x5c0] sm:$0xff]
    %v2891 = vld [vmem:[%s8 + $0x5c8] sm:$0xf]
    %v2892 = vld [vmem:[%s8 + $0x5cc] sm:$0xff]
    %v2893 = vld [vmem:[%s8 + $0x5d4] sm:$0xff]
    %v2894 = vld [vmem:[%s8 + $0x5dc] sm:$0xff]
    %v2895 = vld [vmem:[%s8 + $0x5e4] sm:$0xf]
    %v2896 = vld [vmem:[%s8 + $0x5e8] sm:$0xff]
    %v2897 = vld [vmem:[%s8 + $0x5f0] sm:$0xff]
    %v2898 = vld [vmem:[%s8 + $0x5f8] sm:$0xff]
    %v2899 = vld [vmem:[%s8 + $0x600] sm:$0xf]
    %v2900 = vld [vmem:[%s8 + $0x604] sm:$0xff]
    %v2901 = vld [vmem:[%s8 + $0x60c] sm:$0xff]
    %v2902 = vld [vmem:[%s8 + $0x614] sm:$0xff]
    %v2903 = vld [vmem:[%s8 + $0x61c] sm:$0xf]
    %v2904 = vld [vmem:[%s8 + $0x620] sm:$0xff]
    %v2905 = vld [vmem:[%s8 + $0x628] sm:$0xff]
    %v2906 = vld [vmem:[%s8 + $0x630] sm:$0xff]
    %v2907 = vld [vmem:[%s8 + $0x638] sm:$0xf]
    %v2908 = vld [vmem:[%s8 + $0x63c] sm:$0xff]
    %v2909 = vld [vmem:[%s8 + $0x644] sm:$0xff]
    %v2910 = vld [vmem:[%s8 + $0x64c] sm:$0xff]
    %v2911 = vld [vmem:[%s8 + $0x654] sm:$0xf]
    %v2912 = vld [vmem:[%s8 + $0x658] sm:$0xff]
    %v2913 = vld [vmem:[%s8 + $0x660] sm:$0xff]
    %v2914 = vld [vmem:[%s8 + $0x668] sm:$0xff]
    %v2915 = vld [vmem:[%s8 + $0x670] sm:$0xf]
    %v2916 = vld [vmem:[%s8 + $0x674] sm:$0xff]
    %v2917 = vld [vmem:[%s8 + $0x67c] sm:$0xff]
    %v2918 = vld [vmem:[%s8 + $0x684] sm:$0xff]
    %v2919 = vld [vmem:[%s8 + $0x68c] sm:$0xf]
    %v2920 = vld [vmem:[%s8 + $0x690] sm:$0xff]
    %v2921 = vld [vmem:[%s8 + $0x698] sm:$0xff]
    %v2922 = vld [vmem:[%s8 + $0x6a0] sm:$0xff]
    %v2923 = vld [vmem:[%s8 + $0x6a8] sm:$0xf]
    %v2924 = vld [vmem:[%s8 + $0x6ac] sm:$0xff]
    %v2925 = vld [vmem:[%s8 + $0x6b4] sm:$0xff]
    %v2926 = vld [vmem:[%s8 + $0x6bc] sm:$0xff]
    %v2927 = vld [vmem:[%s8 + $0x6c4] sm:$0xf]
    %v2928 = vld [vmem:[%s8 + $0x6c8] sm:$0xff]
    %v2929 = vld [vmem:[%s8 + $0x6d0] sm:$0xff]
    %v2930 = vld [vmem:[%s8 + $0x6d8] sm:$0xff]
    %v2931 = vld [vmem:[%s8 + $0x6e0] sm:$0xf]
    %v2932 = vld [vmem:[%s8 + $0x6e4] sm:$0xff]
    %v2933 = vld [vmem:[%s8 + $0x6ec] sm:$0xff]
    %v2934 = vld [vmem:[%s8 + $0x6f4] sm:$0xff]
    %v2935 = vld [vmem:[%s8 + $0x6fc] sm:$0xf]
    %v2936 = vld [vmem:[%s8 + $0x700] sm:$0xff]
    %v2937 = vld [vmem:[%s8 + $0x708] sm:$0xff]
    %v2938 = vld [vmem:[%s8 + $0x710] sm:$0xff]
    %v2939 = vld [vmem:[%s8 + $0x718] sm:$0xf]
    %v2940 = vld [vmem:[%s8 + $0x71c] sm:$0xff]
    %v2941 = vld [vmem:[%s8 + $0x724] sm:$0xff]
    %v2942 = vld [vmem:[%s8 + $0x72c] sm:$0xff]
    %v2943 = vld [vmem:[%s8 + $0x734] sm:$0xf]
    %v2944 = vld [vmem:[%s8 + $0x738] sm:$0xff]
    %v2945 = vld [vmem:[%s8 + $0x740] sm:$0xff]
    %v2946 = vld [vmem:[%s8 + $0x748] sm:$0xff]
    %v2947 = vld [vmem:[%s8 + $0x750] sm:$0xf]
    %v2948 = vld [vmem:[%s8 + $0x754] sm:$0xff]
    %v2949 = vld [vmem:[%s8 + $0x75c] sm:$0xff]
    %v2950 = vld [vmem:[%s8 + $0x764] sm:$0xff]
    %v2951 = vld [vmem:[%s8 + $0x76c] sm:$0xf]
    %v2952 = vld [vmem:[%s8 + $0x770] sm:$0xff]
    %v2953 = vld [vmem:[%s8 + $0x778] sm:$0xff]
    %v2954 = vld [vmem:[%s8 + $0x780] sm:$0xff]
    %v2955 = vld [vmem:[%s8 + $0x788] sm:$0xf]
    %v2956 = vld [vmem:[%s8 + $0x78c] sm:$0xff]
    %v2957 = vld [vmem:[%s8 + $0x794] sm:$0xff]
    %v2958 = vld [vmem:[%s8 + $0x79c] sm:$0xff]
    %v2959 = vld [vmem:[%s8 + $0x7a4] sm:$0xf]
    %v2960 = vld [vmem:[%s8 + $0x7a8] sm:$0xff]
    %v2961 = vld [vmem:[%s8 + $0x7b0] sm:$0xff]
    %v2962 = vld [vmem:[%s8 + $0x7b8] sm:$0xff]
    %v2963 = vld [vmem:[%s8 + $0x7c0] sm:$0xf]
    %v2964 = vld [vmem:[%s8 + $0x7c4] sm:$0xff]
    %v2965 = vld [vmem:[%s8 + $0x7cc] sm:$0xff]
    %v2966 = vld [vmem:[%s8 + $0x7d4] sm:$0xff]
    %v2967 = vld [vmem:[%s8 + $0x7dc] sm:$0xf]
    %v2968 = vld [vmem:[%s8 + $0x7e0] sm:$0xff]
    %v2969 = vld [vmem:[%s8 + $0x7e8] sm:$0xff]
    %v2970 = vld [vmem:[%s8 + $0x7f0] sm:$0xff]
    %v2971 = vld [vmem:[%s8 + $0x7f8] sm:$0xf]
    %v2972 = vld [vmem:[%s8 + $0x7fc] sm:$0xff]
    %v2973 = vld [vmem:[%s8 + $0x804] sm:$0xff]
    %v2974 = vld [vmem:[%s8 + $0x80c] sm:$0xff]
    %v2975 = vld [vmem:[%s8 + $0x814] sm:$0xf]
    %v2976 = vld [vmem:[%s8 + $0x818] sm:$0xff]
    %v2977 = vld [vmem:[%s8 + $0x820] sm:$0xff]
    %v2978 = vld [vmem:[%s8 + $0x828] sm:$0xff]
    %v2979 = vld [vmem:[%s8 + $0x830] sm:$0xf]
    %v2980 = vld [vmem:[%s8 + $0x834] sm:$0xff]
    %v2981 = vld [vmem:[%s8 + $0x83c] sm:$0xff]
    %v2982 = vld [vmem:[%s8 + $0x844] sm:$0xff]
    %v2983 = vld [vmem:[%s8 + $0x84c] sm:$0xf]
    %v2984 = vld [vmem:[%s8 + $0x850] sm:$0xff]
    %v2985 = vld [vmem:[%s8 + $0x858] sm:$0xff]
    %v2986 = vld [vmem:[%s8 + $0x860] sm:$0xff]
    %v2987 = vld [vmem:[%s8 + $0x868] sm:$0xf]
    %v2988 = vld [vmem:[%s8 + $0x86c] sm:$0xff]
    %v2989 = vld [vmem:[%s8 + $0x874] sm:$0xff]
    %v2990 = vld [vmem:[%s8 + $0x87c] sm:$0xff]
    %v2991 = vld [vmem:[%s8 + $0x884] sm:$0xf]
    %v2992 = vld [vmem:[%s8 + $0x888] sm:$0xff]
    %v2993 = vld [vmem:[%s8 + $0x890] sm:$0xff]
    %v2994 = vld [vmem:[%s8 + $0x898] sm:$0xff]
    %v2995 = vld [vmem:[%s8 + $0x8a0] sm:$0xf]
    %v2996 = vld [vmem:[%s8 + $0x8a4] sm:$0xff]
    %v2997 = vld [vmem:[%s8 + $0x8ac] sm:$0xff]
    %v2998 = vld [vmem:[%s8 + $0x8b4] sm:$0xff]
    %v2999 = vld [vmem:[%s8 + $0x8bc] sm:$0xf]
    %v3000 = vld [vmem:[%s8 + $0x8c0] sm:$0xff]
    %v3001 = vld [vmem:[%s8 + $0x8c8] sm:$0xff]
    %v3002 = vld [vmem:[%s8 + $0x8d0] sm:$0xff]
    %v3003 = vld [vmem:[%s8 + $0x8d8] sm:$0xf]
    %v3004 = vld [vmem:[%s8 + $0x8dc] sm:$0xff]
    %v3005 = vld [vmem:[%s8 + $0x8e4] sm:$0xff]
    %v3006 = vld [vmem:[%s8 + $0x8ec] sm:$0xff]
    %v3007 = vld [vmem:[%s8 + $0x8f4] sm:$0xf]
    %v3008 = vld [vmem:[%s8 + $0x8f8] sm:$0xff]
    %v3009 = vld [vmem:[%s8 + $0x900] sm:$0xff]
    %v3010 = vld [vmem:[%s8 + $0x908] sm:$0xff]
    %v3011 = vld [vmem:[%s8 + $0x910] sm:$0xf]
    %v3012 = vld [vmem:[%s8 + $0x914] sm:$0xff]
    %v3013 = vld [vmem:[%s8 + $0x91c] sm:$0xff]
    %v3014 = vld [vmem:[%s8 + $0x924] sm:$0xff]
    %v3015 = vld [vmem:[%s8 + $0x92c] sm:$0xf]
    %v3016 = vld [vmem:[%s8 + $0x930] sm:$0xff]
    %v3017 = vld [vmem:[%s8 + $0x938] sm:$0xff]
    %v3018 = vld [vmem:[%s8 + $0x940] sm:$0xff]
    %v3019 = vld [vmem:[%s8 + $0x948] sm:$0xf]
    %v3020 = vld [vmem:[%s8 + $0x94c] sm:$0xff]
    %v3021 = vld [vmem:[%s8 + $0x954] sm:$0xff]
    %v3022 = vld [vmem:[%s8 + $0x95c] sm:$0xff]
    %v3023 = vld [vmem:[%s8 + $0x964] sm:$0xf]
    %v3024 = vld [vmem:[%s8 + $0x968] sm:$0xff]
    %v3025 = vld [vmem:[%s8 + $0x970] sm:$0xff]
    %v3026 = vld [vmem:[%s8 + $0x978] sm:$0xff]
    %v3027 = vld [vmem:[%s8 + $0x980] sm:$0xf]
    %v3028 = vld [vmem:[%s8 + $0x984] sm:$0xff]
    %v3029 = vld [vmem:[%s8 + $0x98c] sm:$0xff]
    %v3030 = vld [vmem:[%s8 + $0x994] sm:$0xff]
    %v3031 = vld [vmem:[%s8 + $0x99c] sm:$0xf]
    %v3032 = vld [vmem:[%s8 + $0x9a0] sm:$0xff]
    %v3033 = vld [vmem:[%s8 + $0x9a8] sm:$0xff]
    %v3034 = vld [vmem:[%s8 + $0x9b0] sm:$0xff]
    %v3035 = vld [vmem:[%s8 + $0x9b8] sm:$0xf]
    %v3036 = vld [vmem:[%s8 + $0x9bc] sm:$0xff]
    %v3037 = vld [vmem:[%s8 + $0x9c4] sm:$0xff]
    %v3038 = vld [vmem:[%s8 + $0x9cc] sm:$0xff]
    %v3039 = vld [vmem:[%s8 + $0x9d4] sm:$0xf]
    %v3040 = vld [vmem:[%s8 + $0x9d8] sm:$0xff]
    %v3041 = vld [vmem:[%s8 + $0x9e0] sm:$0xff]
    %v3042 = vld [vmem:[%s8 + $0x9e8] sm:$0xff]
    %v3043 = vld [vmem:[%s8 + $0x9f0] sm:$0xf]
    %v3044 = vld [vmem:[%s8 + $0x9f4] sm:$0xff]
    %v3045 = vld [vmem:[%s8 + $0x9fc] sm:$0xff]
    %v3046 = vld [vmem:[%s8 + $0xa04] sm:$0xff]
    %v3047 = vld [vmem:[%s8 + $0xa0c] sm:$0xf]
    %v3048 = vld [vmem:[%s8 + $0xa10] sm:$0xff]
    %v3049 = vld [vmem:[%s8 + $0xa18] sm:$0xff]
    %v3050 = vld [vmem:[%s8 + $0xa20] sm:$0xff]
    %v3051 = vld [vmem:[%s8 + $0xa28] sm:$0xf]
    %v3052 = vld [vmem:[%s8 + $0xa2c] sm:$0xff]
    %v3053 = vld [vmem:[%s8 + $0xa34] sm:$0xff]
    %v3054 = vld [vmem:[%s8 + $0xa3c] sm:$0xff]
    %v3055 = vld [vmem:[%s8 + $0xa44] sm:$0xf]
    %v3056 = vld [vmem:[%s8 + $0xa48] sm:$0xff]
    %v3057 = vld [vmem:[%s8 + $0xa50] sm:$0xff]
    %v3058 = vld [vmem:[%s8 + $0xa58] sm:$0xff]
    %v3059 = vld [vmem:[%s8 + $0xa60] sm:$0xf]
    %v3060 = vld [vmem:[%s8 + $0xa64] sm:$0xff]
    %v3061 = vld [vmem:[%s8 + $0xa6c] sm:$0xff]
    %v3062 = vld [vmem:[%s8 + $0xa74] sm:$0xff]
    %v3063 = vld [vmem:[%s8 + $0xa7c] sm:$0xf]
    %v3064 = vld [vmem:[%s8 + $0xa80] sm:$0xff]
    %v3065 = vld [vmem:[%s8 + $0xa88] sm:$0xff]
    %v3066 = vld [vmem:[%s8 + $0xa90] sm:$0xff]
    %v3067 = vld [vmem:[%s8 + $0xa98] sm:$0xf]
    %v3068 = vld [vmem:[%s8 + $0xa9c] sm:$0xff]
    %v3069 = vld [vmem:[%s8 + $0xaa4] sm:$0xff]
    %v3070 = vld [vmem:[%s8 + $0xaac] sm:$0xff]
    %v3071 = vld [vmem:[%s8 + $0xab4] sm:$0xf]
    %v3072 = vld [vmem:[%s8 + $0xab8] sm:$0xff]
    %v3073 = vld [vmem:[%s8 + $0xac0] sm:$0xff]
    %v3074 = vld [vmem:[%s8 + $0xac8] sm:$0xff]
    %v3075 = vld [vmem:[%s8 + $0xad0] sm:$0xf]
    %v3076 = vld [vmem:[%s8 + $0xad4] sm:$0xff]
    %v3077 = vld [vmem:[%s8 + $0xadc] sm:$0xff]
    %v3078 = vld [vmem:[%s8 + $0xae4] sm:$0xff]
    %v3079 = vld [vmem:[%s8 + $0xaec] sm:$0xf]
    %v3080 = vld [vmem:[%s8 + $0xaf0] sm:$0xff]
    %v3081 = vld [vmem:[%s8 + $0xaf8] sm:$0xff]
    %v3082 = vld [vmem:[%s8 + $0xb00] sm:$0xff]
    %v3083 = vld [vmem:[%s8 + $0xb08] sm:$0xf]
    %v3084 = vld [vmem:[%s8 + $0xb0c] sm:$0xff]
    %v3085 = vld [vmem:[%s8 + $0xb14] sm:$0xff]
    %v3086 = vld [vmem:[%s8 + $0xb1c] sm:$0xff]
    %v3087 = vld [vmem:[%s8 + $0xb24] sm:$0xf]
    %v3088 = vld [vmem:[%s8 + $0xb28] sm:$0xff]
    %v3089 = vld [vmem:[%s8 + $0xb30] sm:$0xff]
    %v3090 = vld [vmem:[%s8 + $0xb38] sm:$0xff]
    %v3091 = vld [vmem:[%s8 + $0xb40] sm:$0xf]
    %v3092 = vld [vmem:[%s8 + $0xb44] sm:$0xff]
    %v3093 = vld [vmem:[%s8 + $0xb4c] sm:$0xff]
    %v3094 = vld [vmem:[%s8 + $0xb54] sm:$0xff]
    %v3095 = vld [vmem:[%s8 + $0xb5c] sm:$0xf]
    %v3096 = vld [vmem:[%s8 + $0xb60] sm:$0xff]
    %v3097 = vld [vmem:[%s8 + $0xb68] sm:$0xff]
    %v3098 = vld [vmem:[%s8 + $0xb70] sm:$0xff]
    %v3099 = vld [vmem:[%s8 + $0xb78] sm:$0xf]
    %v3100 = vld [vmem:[%s8 + $0xb7c] sm:$0xff]
    %v3101 = vld [vmem:[%s8 + $0xb84] sm:$0xff]
    %v3102 = vld [vmem:[%s8 + $0xb8c] sm:$0xff]
    %v3103 = vld [vmem:[%s8 + $0xb94] sm:$0xf]
    %v3104 = vld [vmem:[%s8 + $0xb98] sm:$0xff]
    %v3105 = vld [vmem:[%s8 + $0xba0] sm:$0xff]
    %v3106 = vld [vmem:[%s8 + $0xba8] sm:$0xff]
    %v3107 = vld [vmem:[%s8 + $0xbb0] sm:$0xf]
    %v3108 = vld [vmem:[%s8 + $0xbb4] sm:$0xff]
    %v3109 = vld [vmem:[%s8 + $0xbbc] sm:$0xff]
    %v3110 = vld [vmem:[%s8 + $0xbc4] sm:$0xff]
    %v3111 = vld [vmem:[%s8 + $0xbcc] sm:$0xf]
    %v3112 = vld [vmem:[%s8 + $0xbd0] sm:$0xff]
    %v3113 = vld [vmem:[%s8 + $0xbd8] sm:$0xff]
    %v3114 = vld [vmem:[%s8 + $0xbe0] sm:$0xff]
    %v3115 = vld [vmem:[%s8 + $0xbe8] sm:$0xf]
    %v3116 = vld [vmem:[%s8 + $0xbec] sm:$0xff]
    %v3117 = vld [vmem:[%s8 + $0xbf4] sm:$0xff]
    %v3118 = vld [vmem:[%s8 + $0xbfc] sm:$0xff]
    %v3119 = vld [vmem:[%s8 + $0xc04] sm:$0xf]
    %v3120 = vld [vmem:[%s8 + $0xc08] sm:$0xff]
    %v3121 = vld [vmem:[%s8 + $0xc10] sm:$0xff]
    %v3122 = vld [vmem:[%s8 + $0xc18] sm:$0xff]
    %v3123 = vld [vmem:[%s8 + $0xc20] sm:$0xf]
    %v3124 = vld [vmem:[%s8 + $0xc24] sm:$0xff]
    %v3125 = vld [vmem:[%s8 + $0xc2c] sm:$0xff]
    %v3126 = vld [vmem:[%s8 + $0xc34] sm:$0xff]
    %v3127 = vld [vmem:[%s8 + $0xc3c] sm:$0xf]
    %v3128 = vld [vmem:[%s8 + $0xc40] sm:$0xff]
    %v3129 = vld [vmem:[%s8 + $0xc48] sm:$0xff]
    %v3130 = vld [vmem:[%s8 + $0xc50] sm:$0xff]
    %v3131 = vld [vmem:[%s8 + $0xc58] sm:$0xf]
    %v3132 = vld [vmem:[%s8 + $0xc5c] sm:$0xff]
    %v3133 = vld [vmem:[%s8 + $0xc64] sm:$0xff]
    %v3134 = vld [vmem:[%s8 + $0xc6c] sm:$0xff]
    %v3135 = vld [vmem:[%s8 + $0xc74] sm:$0xf]
    %v3136 = vld [vmem:[%s8 + $0xc78] sm:$0xff]
    %v3137 = vld [vmem:[%s8 + $0xc80] sm:$0xff]
    %v3138 = vld [vmem:[%s8 + $0xc88] sm:$0xff]
    %v3139 = vld [vmem:[%s8 + $0xc90] sm:$0xf]
    %v3140 = vld [vmem:[%s8 + $0xc94] sm:$0xff]
    %v3141 = vld [vmem:[%s8 + $0xc9c] sm:$0xff]
    %v3142 = vld [vmem:[%s8 + $0xca4] sm:$0xff]
    %v3143 = vld [vmem:[%s8 + $0xcac] sm:$0xf]
    %v3144 = vld [vmem:[%s8 + $0xcb0] sm:$0xff]
    %v3145 = vld [vmem:[%s8 + $0xcb8] sm:$0xff]
    %v3146 = vld [vmem:[%s8 + $0xcc0] sm:$0xff]
    %v3147 = vld [vmem:[%s8 + $0xcc8] sm:$0xf]
    %v3148 = vld [vmem:[%s8 + $0xccc] sm:$0xff]
    %v3149 = vld [vmem:[%s8 + $0xcd4] sm:$0xff]
    %v3150 = vld [vmem:[%s8 + $0xcdc] sm:$0xff]
    %v3151 = vld [vmem:[%s8 + $0xce4] sm:$0xf]
    %v3152 = vld [vmem:[%s8 + $0xce8] sm:$0xff]
    %v3153 = vld [vmem:[%s8 + $0xcf0] sm:$0xff]
    %v3154 = vld [vmem:[%s8 + $0xcf8] sm:$0xff]
    %v3155 = vld [vmem:[%s8 + $0xd00] sm:$0xf]
    %v3156 = vld [vmem:[%s8 + $0xd04] sm:$0xff]
    %v3157 = vld [vmem:[%s8 + $0xd0c] sm:$0xff]
    %v3158 = vld [vmem:[%s8 + $0xd14] sm:$0xff]
    %v3159 = vld [vmem:[%s8 + $0xd1c] sm:$0xf]
    %v3160 = vld [vmem:[%s8 + $0xd20] sm:$0xff]
    %v3161 = vld [vmem:[%s8 + $0xd28] sm:$0xff]
    %v3162 = vld [vmem:[%s8 + $0xd30] sm:$0xff]
    %v3163 = vld [vmem:[%s8 + $0xd38] sm:$0xf]
    %v3164 = vld [vmem:[%s8 + $0xd3c] sm:$0xff]
    %v3165 = vld [vmem:[%s8 + $0xd44] sm:$0xff]
    %v3166 = vld [vmem:[%s8 + $0xd4c] sm:$0xff]
    %v3167 = vld [vmem:[%s8 + $0xd54] sm:$0xf]
    %v3168 = vld [vmem:[%s8 + $0xd58] sm:$0xff]
    %v3169 = vld [vmem:[%s8 + $0xd60] sm:$0xff]
    %v3170 = vld [vmem:[%s8 + $0xd68] sm:$0xff]
    %v3171 = vld [vmem:[%s8 + $0xd70] sm:$0xf]
    %v3172 = vld [vmem:[%s8 + $0xd74] sm:$0xff]
    %v3173 = vld [vmem:[%s8 + $0xd7c] sm:$0xff]
    %v3174 = vld [vmem:[%s8 + $0xd84] sm:$0xff]
    %v3175 = vld [vmem:[%s8 + $0xd8c] sm:$0xf]
    %v3176 = vld [vmem:[%s8 + $0xd90] sm:$0xff]
    %v3177 = vld [vmem:[%s8 + $0xd98] sm:$0xff]
    %v3178 = vld [vmem:[%s8 + $0xda0] sm:$0xff]
    %v3179 = vld [vmem:[%s8 + $0xda8] sm:$0xf]
    %v3180 = vld [vmem:[%s8 + $0xdac] sm:$0xff]
    %v3181 = vld [vmem:[%s8 + $0xdb4] sm:$0xff]
    %v3182 = vld [vmem:[%s8 + $0xdbc] sm:$0xff]
    %v3183 = vld [vmem:[%s8 + $0xdc4] sm:$0xf]
    %v3184 = vld [vmem:[%s8 + $0xdc8] sm:$0xff]
    %v3185 = vld [vmem:[%s8 + $0xdd0] sm:$0xff]
    %v3186 = vld [vmem:[%s8 + $0xdd8] sm:$0xff]
    %v3187 = vld [vmem:[%s8 + $0xde0] sm:$0xf]
    %v3188 = vld [vmem:[%s8 + $0xde4] sm:$0xff]
    %v3189 = vld [vmem:[%s8 + $0xdec] sm:$0xff]
    %v3190 = vld [vmem:[%s8 + $0xdf4] sm:$0xff]
    %v3191 = vld [vmem:[%s8 + $0xdfc] sm:$0xf]
    %v3192 = vld [vmem:[%s9] sm:$0x7f]
    %v3194 = vlaneseq
    %v3195 = vshrl.u32 %v3194, 7
    %v3196 = vsub.s32 0, %v3195
    %v3197 = vrot.slane %v3192, %v3196
    %v3198 = vlaneseq
    %v3199 = vshrl.u32 %v3198, 7
    %v3200 = vsub.s32 1, %v3199
    %v3201 = vrot.slane %v3192, %v3200
    %v3202 = vlaneseq
    %v3203 = vshrl.u32 %v3202, 7
    %v3204 = vsub.s32 2, %v3203
    %v3205 = vrot.slane %v3192, %v3204
    %v3206 = vlaneseq
    %v3207 = vshrl.u32 %v3206, 7
    %v3208 = vsub.s32 3, %v3207
    %v3209 = vrot.slane %v3192, %v3208
    %v3210 = vlaneseq
    %v3211 = vshrl.u32 %v3210, 7
    %v3212 = vsub.s32 4, %v3211
    %v3213 = vrot.slane %v3192, %v3212
    %v3214 = vlaneseq
    %v3215 = vshrl.u32 %v3214, 7
    %v3216 = vsub.s32 5, %v3215
    %v3217 = vrot.slane %v3192, %v3216
    %v3218 = vlaneseq
    %v3219 = vshrl.u32 %v3218, 7
    %v3220 = vsub.s32 6, %v3219
    %v3221 = vrot.slane %v3192, %v3220
    %v3741 = vunpack.c.l.b16 %v2680
    %v3742 = vunpack.c.h.b16 %v2680
    %v3743 = vunpack.c.l.b16 %v2681
    %v3744 = vunpack.c.h.b16 %v2681
    %v3745 = vunpack.c.l.b16 %v2682
    %v3746 = vunpack.c.h.b16 %v2682
    %v3747 = vunpack.c.l.b16 %v2683
    %v3748 = vunpack.c.l.b16 %v2684
    %v3749 = vunpack.c.h.b16 %v2684
    %v3750 = vunpack.c.l.b16 %v2685
    %v3751 = vunpack.c.h.b16 %v2685
    %v3752 = vunpack.c.l.b16 %v2686
    %v3753 = vunpack.c.h.b16 %v2686
    %v3754 = vunpack.c.l.b16 %v2687
    %v3755 = vunpack.c.l.b16 %v2688
    %v3756 = vunpack.c.h.b16 %v2688
    %v3757 = vunpack.c.l.b16 %v2689
    %v3758 = vunpack.c.h.b16 %v2689
    %v3759 = vunpack.c.l.b16 %v2690
    %v3760 = vunpack.c.h.b16 %v2690
    %v3761 = vunpack.c.l.b16 %v2691
    %v3762 = vunpack.c.l.b16 %v2692
    %v3763 = vunpack.c.h.b16 %v2692
    %v3764 = vunpack.c.l.b16 %v2693
    %v3765 = vunpack.c.h.b16 %v2693
    %v3766 = vunpack.c.l.b16 %v2694
    %v3767 = vunpack.c.h.b16 %v2694
    %v3768 = vunpack.c.l.b16 %v2695
    %v3769 = vunpack.c.l.b16 %v2696
    %v3770 = vunpack.c.h.b16 %v2696
    %v3771 = vunpack.c.l.b16 %v2697
    %v3772 = vunpack.c.h.b16 %v2697
    %v3773 = vunpack.c.l.b16 %v2698
    %v3774 = vunpack.c.h.b16 %v2698
    %v3775 = vunpack.c.l.b16 %v2699
    %v3776 = vunpack.c.l.b16 %v2700
    %v3777 = vunpack.c.h.b16 %v2700
    %v3778 = vunpack.c.l.b16 %v2701
    %v3779 = vunpack.c.h.b16 %v2701
    %v3780 = vunpack.c.l.b16 %v2702
    %v3781 = vunpack.c.h.b16 %v2702
    %v3782 = vunpack.c.l.b16 %v2703
    %v3783 = vunpack.c.l.b16 %v2704
    %v3784 = vunpack.c.h.b16 %v2704
    %v3785 = vunpack.c.l.b16 %v2705
    %v3786 = vunpack.c.h.b16 %v2705
    %v3787 = vunpack.c.l.b16 %v2706
    %v3788 = vunpack.c.h.b16 %v2706
    %v3789 = vunpack.c.l.b16 %v2707
    %v3790 = vunpack.c.l.b16 %v2708
    %v3791 = vunpack.c.h.b16 %v2708
    %v3792 = vunpack.c.l.b16 %v2709
    %v3793 = vunpack.c.h.b16 %v2709
    %v3794 = vunpack.c.l.b16 %v2710
    %v3795 = vunpack.c.h.b16 %v2710
    %v3796 = vunpack.c.l.b16 %v2711
    %v3797 = vunpack.c.l.b16 %v2712
    %v3798 = vunpack.c.h.b16 %v2712
    %v3799 = vunpack.c.l.b16 %v2713
    %v3800 = vunpack.c.h.b16 %v2713
    %v3801 = vunpack.c.l.b16 %v2714
    %v3802 = vunpack.c.h.b16 %v2714
    %v3803 = vunpack.c.l.b16 %v2715
    %v3804 = vunpack.c.l.b16 %v2716
    %v3805 = vunpack.c.h.b16 %v2716
    %v3806 = vunpack.c.l.b16 %v2717
    %v3807 = vunpack.c.h.b16 %v2717
    %v3808 = vunpack.c.l.b16 %v2718
    %v3809 = vunpack.c.h.b16 %v2718
    %v3810 = vunpack.c.l.b16 %v2719
    %v3811 = vunpack.c.l.b16 %v2720
    %v3812 = vunpack.c.h.b16 %v2720
    %v3813 = vunpack.c.l.b16 %v2721
    %v3814 = vunpack.c.h.b16 %v2721
    %v3815 = vunpack.c.l.b16 %v2722
    %v3816 = vunpack.c.h.b16 %v2722
    %v3817 = vunpack.c.l.b16 %v2723
    %v3818 = vunpack.c.l.b16 %v2724
    %v3819 = vunpack.c.h.b16 %v2724
    %v3820 = vunpack.c.l.b16 %v2725
    %v3821 = vunpack.c.h.b16 %v2725
    %v3822 = vunpack.c.l.b16 %v2726
    %v3823 = vunpack.c.h.b16 %v2726
    %v3824 = vunpack.c.l.b16 %v2727
    %v3825 = vunpack.c.l.b16 %v2728
    %v3826 = vunpack.c.h.b16 %v2728
    %v3827 = vunpack.c.l.b16 %v2729
    %v3828 = vunpack.c.h.b16 %v2729
    %v3829 = vunpack.c.l.b16 %v2730
    %v3830 = vunpack.c.h.b16 %v2730
    %v3831 = vunpack.c.l.b16 %v2731
    %v3832 = vunpack.c.l.b16 %v2732
    %v3833 = vunpack.c.h.b16 %v2732
    %v3834 = vunpack.c.l.b16 %v2733
    %v3835 = vunpack.c.h.b16 %v2733
    %v3836 = vunpack.c.l.b16 %v2734
    %v3837 = vunpack.c.h.b16 %v2734
    %v3838 = vunpack.c.l.b16 %v2735
    %v3839 = vunpack.c.l.b16 %v2736
    %v3840 = vunpack.c.h.b16 %v2736
    %v3841 = vunpack.c.l.b16 %v2737
    %v3842 = vunpack.c.h.b16 %v2737
    %v3843 = vunpack.c.l.b16 %v2738
    %v3844 = vunpack.c.h.b16 %v2738
    %v3845 = vunpack.c.l.b16 %v2739
    %v3846 = vunpack.c.l.b16 %v2740
    %v3847 = vunpack.c.h.b16 %v2740
    %v3848 = vunpack.c.l.b16 %v2741
    %v3849 = vunpack.c.h.b16 %v2741
    %v3850 = vunpack.c.l.b16 %v2742
    %v3851 = vunpack.c.h.b16 %v2742
    %v3852 = vunpack.c.l.b16 %v2743
    %v3853 = vunpack.c.l.b16 %v2744
    %v3854 = vunpack.c.h.b16 %v2744
    %v3855 = vunpack.c.l.b16 %v2745
    %v3856 = vunpack.c.h.b16 %v2745
    %v3857 = vunpack.c.l.b16 %v2746
    %v3858 = vunpack.c.h.b16 %v2746
    %v3859 = vunpack.c.l.b16 %v2747
    %v3860 = vunpack.c.l.b16 %v2748
    %v3861 = vunpack.c.h.b16 %v2748
    %v3862 = vunpack.c.l.b16 %v2749
    %v3863 = vunpack.c.h.b16 %v2749
    %v3864 = vunpack.c.l.b16 %v2750
    %v3865 = vunpack.c.h.b16 %v2750
    %v3866 = vunpack.c.l.b16 %v2751
    %v3867 = vunpack.c.l.b16 %v2752
    %v3868 = vunpack.c.h.b16 %v2752
    %v3869 = vunpack.c.l.b16 %v2753
    %v3870 = vunpack.c.h.b16 %v2753
    %v3871 = vunpack.c.l.b16 %v2754
    %v3872 = vunpack.c.h.b16 %v2754
    %v3873 = vunpack.c.l.b16 %v2755
    %v3874 = vunpack.c.l.b16 %v2756
    %v3875 = vunpack.c.h.b16 %v2756
    %v3876 = vunpack.c.l.b16 %v2757
    %v3877 = vunpack.c.h.b16 %v2757
    %v3878 = vunpack.c.l.b16 %v2758
    %v3879 = vunpack.c.h.b16 %v2758
    %v3880 = vunpack.c.l.b16 %v2759
    %v3881 = vunpack.c.l.b16 %v2760
    %v3882 = vunpack.c.h.b16 %v2760
    %v3883 = vunpack.c.l.b16 %v2761
    %v3884 = vunpack.c.h.b16 %v2761
    %v3885 = vunpack.c.l.b16 %v2762
    %v3886 = vunpack.c.h.b16 %v2762
    %v3887 = vunpack.c.l.b16 %v2763
    %v3888 = vunpack.c.l.b16 %v2764
    %v3889 = vunpack.c.h.b16 %v2764
    %v3890 = vunpack.c.l.b16 %v2765
    %v3891 = vunpack.c.h.b16 %v2765
    %v3892 = vunpack.c.l.b16 %v2766
    %v3893 = vunpack.c.h.b16 %v2766
    %v3894 = vunpack.c.l.b16 %v2767
    %v3895 = vunpack.c.l.b16 %v2768
    %v3896 = vunpack.c.h.b16 %v2768
    %v3897 = vunpack.c.l.b16 %v2769
    %v3898 = vunpack.c.h.b16 %v2769
    %v3899 = vunpack.c.l.b16 %v2770
    %v3900 = vunpack.c.h.b16 %v2770
    %v3901 = vunpack.c.l.b16 %v2771
    %v3902 = vunpack.c.l.b16 %v2772
    %v3903 = vunpack.c.h.b16 %v2772
    %v3904 = vunpack.c.l.b16 %v2773
    %v3905 = vunpack.c.h.b16 %v2773
    %v3906 = vunpack.c.l.b16 %v2774
    %v3907 = vunpack.c.h.b16 %v2774
    %v3908 = vunpack.c.l.b16 %v2775
    %v3909 = vunpack.c.l.b16 %v2776
    %v3910 = vunpack.c.h.b16 %v2776
    %v3911 = vunpack.c.l.b16 %v2777
    %v3912 = vunpack.c.h.b16 %v2777
    %v3913 = vunpack.c.l.b16 %v2778
    %v3914 = vunpack.c.h.b16 %v2778
    %v3915 = vunpack.c.l.b16 %v2779
    %v3916 = vunpack.c.l.b16 %v2780
    %v3917 = vunpack.c.h.b16 %v2780
    %v3918 = vunpack.c.l.b16 %v2781
    %v3919 = vunpack.c.h.b16 %v2781
    %v3920 = vunpack.c.l.b16 %v2782
    %v3921 = vunpack.c.h.b16 %v2782
    %v3922 = vunpack.c.l.b16 %v2783
    %v3923 = vunpack.c.l.b16 %v2784
    %v3924 = vunpack.c.h.b16 %v2784
    %v3925 = vunpack.c.l.b16 %v2785
    %v3926 = vunpack.c.h.b16 %v2785
    %v3927 = vunpack.c.l.b16 %v2786
    %v3928 = vunpack.c.h.b16 %v2786
    %v3929 = vunpack.c.l.b16 %v2787
    %v3930 = vunpack.c.l.b16 %v2788
    %v3931 = vunpack.c.h.b16 %v2788
    %v3932 = vunpack.c.l.b16 %v2789
    %v3933 = vunpack.c.h.b16 %v2789
    %v3934 = vunpack.c.l.b16 %v2790
    %v3935 = vunpack.c.h.b16 %v2790
    %v3936 = vunpack.c.l.b16 %v2791
    %v3937 = vunpack.c.l.b16 %v2792
    %v3938 = vunpack.c.h.b16 %v2792
    %v3939 = vunpack.c.l.b16 %v2793
    %v3940 = vunpack.c.h.b16 %v2793
    %v3941 = vunpack.c.l.b16 %v2794
    %v3942 = vunpack.c.h.b16 %v2794
    %v3943 = vunpack.c.l.b16 %v2795
    %v3944 = vunpack.c.l.b16 %v2796
    %v3945 = vunpack.c.h.b16 %v2796
    %v3946 = vunpack.c.l.b16 %v2797
    %v3947 = vunpack.c.h.b16 %v2797
    %v3948 = vunpack.c.l.b16 %v2798
    %v3949 = vunpack.c.h.b16 %v2798
    %v3950 = vunpack.c.l.b16 %v2799
    %v3951 = vunpack.c.l.b16 %v2800
    %v3952 = vunpack.c.h.b16 %v2800
    %v3953 = vunpack.c.l.b16 %v2801
    %v3954 = vunpack.c.h.b16 %v2801
    %v3955 = vunpack.c.l.b16 %v2802
    %v3956 = vunpack.c.h.b16 %v2802
    %v3957 = vunpack.c.l.b16 %v2803
    %v3958 = vunpack.c.l.b16 %v2804
    %v3959 = vunpack.c.h.b16 %v2804
    %v3960 = vunpack.c.l.b16 %v2805
    %v3961 = vunpack.c.h.b16 %v2805
    %v3962 = vunpack.c.l.b16 %v2806
    %v3963 = vunpack.c.h.b16 %v2806
    %v3964 = vunpack.c.l.b16 %v2807
    %v3965 = vunpack.c.l.b16 %v2808
    %v3966 = vunpack.c.h.b16 %v2808
    %v3967 = vunpack.c.l.b16 %v2809
    %v3968 = vunpack.c.h.b16 %v2809
    %v3969 = vunpack.c.l.b16 %v2810
    %v3970 = vunpack.c.h.b16 %v2810
    %v3971 = vunpack.c.l.b16 %v2811
    %v3972 = vunpack.c.l.b16 %v2812
    %v3973 = vunpack.c.h.b16 %v2812
    %v3974 = vunpack.c.l.b16 %v2813
    %v3975 = vunpack.c.h.b16 %v2813
    %v3976 = vunpack.c.l.b16 %v2814
    %v3977 = vunpack.c.h.b16 %v2814
    %v3978 = vunpack.c.l.b16 %v2815
    %v3979 = vunpack.c.l.b16 %v2816
    %v3980 = vunpack.c.h.b16 %v2816
    %v3981 = vunpack.c.l.b16 %v2817
    %v3982 = vunpack.c.h.b16 %v2817
    %v3983 = vunpack.c.l.b16 %v2818
    %v3984 = vunpack.c.h.b16 %v2818
    %v3985 = vunpack.c.l.b16 %v2819
    %v3986 = vunpack.c.l.b16 %v2820
    %v3987 = vunpack.c.h.b16 %v2820
    %v3988 = vunpack.c.l.b16 %v2821
    %v3989 = vunpack.c.h.b16 %v2821
    %v3990 = vunpack.c.l.b16 %v2822
    %v3991 = vunpack.c.h.b16 %v2822
    %v3992 = vunpack.c.l.b16 %v2823
    %v3993 = vunpack.c.l.b16 %v2824
    %v3994 = vunpack.c.h.b16 %v2824
    %v3995 = vunpack.c.l.b16 %v2825
    %v3996 = vunpack.c.h.b16 %v2825
    %v3997 = vunpack.c.l.b16 %v2826
    %v3998 = vunpack.c.h.b16 %v2826
    %v3999 = vunpack.c.l.b16 %v2827
    %v4000 = vunpack.c.l.b16 %v2828
    %v4001 = vunpack.c.h.b16 %v2828
    %v4002 = vunpack.c.l.b16 %v2829
    %v4003 = vunpack.c.h.b16 %v2829
    %v4004 = vunpack.c.l.b16 %v2830
    %v4005 = vunpack.c.h.b16 %v2830
    %v4006 = vunpack.c.l.b16 %v2831
    %v4007 = vunpack.c.l.b16 %v2832
    %v4008 = vunpack.c.h.b16 %v2832
    %v4009 = vunpack.c.l.b16 %v2833
    %v4010 = vunpack.c.h.b16 %v2833
    %v4011 = vunpack.c.l.b16 %v2834
    %v4012 = vunpack.c.h.b16 %v2834
    %v4013 = vunpack.c.l.b16 %v2835
    %v4014 = vunpack.c.l.b16 %v2836
    %v4015 = vunpack.c.h.b16 %v2836
    %v4016 = vunpack.c.l.b16 %v2837
    %v4017 = vunpack.c.h.b16 %v2837
    %v4018 = vunpack.c.l.b16 %v2838
    %v4019 = vunpack.c.h.b16 %v2838
    %v4020 = vunpack.c.l.b16 %v2839
    %v4021 = vunpack.c.l.b16 %v2840
    %v4022 = vunpack.c.h.b16 %v2840
    %v4023 = vunpack.c.l.b16 %v2841
    %v4024 = vunpack.c.h.b16 %v2841
    %v4025 = vunpack.c.l.b16 %v2842
    %v4026 = vunpack.c.h.b16 %v2842
    %v4027 = vunpack.c.l.b16 %v2843
    %v4028 = vunpack.c.l.b16 %v2844
    %v4029 = vunpack.c.h.b16 %v2844
    %v4030 = vunpack.c.l.b16 %v2845
    %v4031 = vunpack.c.h.b16 %v2845
    %v4032 = vunpack.c.l.b16 %v2846
    %v4033 = vunpack.c.h.b16 %v2846
    %v4034 = vunpack.c.l.b16 %v2847
    %v4035 = vunpack.c.l.b16 %v2848
    %v4036 = vunpack.c.h.b16 %v2848
    %v4037 = vunpack.c.l.b16 %v2849
    %v4038 = vunpack.c.h.b16 %v2849
    %v4039 = vunpack.c.l.b16 %v2850
    %v4040 = vunpack.c.h.b16 %v2850
    %v4041 = vunpack.c.l.b16 %v2851
    %v4042 = vunpack.c.l.b16 %v2852
    %v4043 = vunpack.c.h.b16 %v2852
    %v4044 = vunpack.c.l.b16 %v2853
    %v4045 = vunpack.c.h.b16 %v2853
    %v4046 = vunpack.c.l.b16 %v2854
    %v4047 = vunpack.c.h.b16 %v2854
    %v4048 = vunpack.c.l.b16 %v2855
    %v4049 = vunpack.c.l.b16 %v2856
    %v4050 = vunpack.c.h.b16 %v2856
    %v4051 = vunpack.c.l.b16 %v2857
    %v4052 = vunpack.c.h.b16 %v2857
    %v4053 = vunpack.c.l.b16 %v2858
    %v4054 = vunpack.c.h.b16 %v2858
    %v4055 = vunpack.c.l.b16 %v2859
    %v4056 = vunpack.c.l.b16 %v2860
    %v4057 = vunpack.c.h.b16 %v2860
    %v4058 = vunpack.c.l.b16 %v2861
    %v4059 = vunpack.c.h.b16 %v2861
    %v4060 = vunpack.c.l.b16 %v2862
    %v4061 = vunpack.c.h.b16 %v2862
    %v4062 = vunpack.c.l.b16 %v2863
    %v4063 = vunpack.c.l.b16 %v2864
    %v4064 = vunpack.c.h.b16 %v2864
    %v4065 = vunpack.c.l.b16 %v2865
    %v4066 = vunpack.c.h.b16 %v2865
    %v4067 = vunpack.c.l.b16 %v2866
    %v4068 = vunpack.c.h.b16 %v2866
    %v4069 = vunpack.c.l.b16 %v2867
    %v4070 = vunpack.c.l.b16 %v2868
    %v4071 = vunpack.c.h.b16 %v2868
    %v4072 = vunpack.c.l.b16 %v2869
    %v4073 = vunpack.c.h.b16 %v2869
    %v4074 = vunpack.c.l.b16 %v2870
    %v4075 = vunpack.c.h.b16 %v2870
    %v4076 = vunpack.c.l.b16 %v2871
    %v4077 = vunpack.c.l.b16 %v2872
    %v4078 = vunpack.c.h.b16 %v2872
    %v4079 = vunpack.c.l.b16 %v2873
    %v4080 = vunpack.c.h.b16 %v2873
    %v4081 = vunpack.c.l.b16 %v2874
    %v4082 = vunpack.c.h.b16 %v2874
    %v4083 = vunpack.c.l.b16 %v2875
    %v4084 = vunpack.c.l.b16 %v2876
    %v4085 = vunpack.c.h.b16 %v2876
    %v4086 = vunpack.c.l.b16 %v2877
    %v4087 = vunpack.c.h.b16 %v2877
    %v4088 = vunpack.c.l.b16 %v2878
    %v4089 = vunpack.c.h.b16 %v2878
    %v4090 = vunpack.c.l.b16 %v2879
    %v4091 = vunpack.c.l.b16 %v2880
    %v4092 = vunpack.c.h.b16 %v2880
    %v4093 = vunpack.c.l.b16 %v2881
    %v4094 = vunpack.c.h.b16 %v2881
    %v4095 = vunpack.c.l.b16 %v2882
    %v4096 = vunpack.c.h.b16 %v2882
    %v4097 = vunpack.c.l.b16 %v2883
    %v4098 = vunpack.c.l.b16 %v2884
    %v4099 = vunpack.c.h.b16 %v2884
    %v4100 = vunpack.c.l.b16 %v2885
    %v4101 = vunpack.c.h.b16 %v2885
    %v4102 = vunpack.c.l.b16 %v2886
    %v4103 = vunpack.c.h.b16 %v2886
    %v4104 = vunpack.c.l.b16 %v2887
    %v4105 = vunpack.c.l.b16 %v2888
    %v4106 = vunpack.c.h.b16 %v2888
    %v4107 = vunpack.c.l.b16 %v2889
    %v4108 = vunpack.c.h.b16 %v2889
    %v4109 = vunpack.c.l.b16 %v2890
    %v4110 = vunpack.c.h.b16 %v2890
    %v4111 = vunpack.c.l.b16 %v2891
    %v4112 = vunpack.c.l.b16 %v2892
    %v4113 = vunpack.c.h.b16 %v2892
    %v4114 = vunpack.c.l.b16 %v2893
    %v4115 = vunpack.c.h.b16 %v2893
    %v4116 = vunpack.c.l.b16 %v2894
    %v4117 = vunpack.c.h.b16 %v2894
    %v4118 = vunpack.c.l.b16 %v2895
    %v4119 = vunpack.c.l.b16 %v2896
    %v4120 = vunpack.c.h.b16 %v2896
    %v4121 = vunpack.c.l.b16 %v2897
    %v4122 = vunpack.c.h.b16 %v2897
    %v4123 = vunpack.c.l.b16 %v2898
    %v4124 = vunpack.c.h.b16 %v2898
    %v4125 = vunpack.c.l.b16 %v2899
    %v4126 = vunpack.c.l.b16 %v2900
    %v4127 = vunpack.c.h.b16 %v2900
    %v4128 = vunpack.c.l.b16 %v2901
    %v4129 = vunpack.c.h.b16 %v2901
    %v4130 = vunpack.c.l.b16 %v2902
    %v4131 = vunpack.c.h.b16 %v2902
    %v4132 = vunpack.c.l.b16 %v2903
    %v4133 = vunpack.c.l.b16 %v2904
    %v4134 = vunpack.c.h.b16 %v2904
    %v4135 = vunpack.c.l.b16 %v2905
    %v4136 = vunpack.c.h.b16 %v2905
    %v4137 = vunpack.c.l.b16 %v2906
    %v4138 = vunpack.c.h.b16 %v2906
    %v4139 = vunpack.c.l.b16 %v2907
    %v4140 = vunpack.c.l.b16 %v2908
    %v4141 = vunpack.c.h.b16 %v2908
    %v4142 = vunpack.c.l.b16 %v2909
    %v4143 = vunpack.c.h.b16 %v2909
    %v4144 = vunpack.c.l.b16 %v2910
    %v4145 = vunpack.c.h.b16 %v2910
    %v4146 = vunpack.c.l.b16 %v2911
    %v4147 = vunpack.c.l.b16 %v2912
    %v4148 = vunpack.c.h.b16 %v2912
    %v4149 = vunpack.c.l.b16 %v2913
    %v4150 = vunpack.c.h.b16 %v2913
    %v4151 = vunpack.c.l.b16 %v2914
    %v4152 = vunpack.c.h.b16 %v2914
    %v4153 = vunpack.c.l.b16 %v2915
    %v4154 = vunpack.c.l.b16 %v2916
    %v4155 = vunpack.c.h.b16 %v2916
    %v4156 = vunpack.c.l.b16 %v2917
    %v4157 = vunpack.c.h.b16 %v2917
    %v4158 = vunpack.c.l.b16 %v2918
    %v4159 = vunpack.c.h.b16 %v2918
    %v4160 = vunpack.c.l.b16 %v2919
    %v4161 = vunpack.c.l.b16 %v2920
    %v4162 = vunpack.c.h.b16 %v2920
    %v4163 = vunpack.c.l.b16 %v2921
    %v4164 = vunpack.c.h.b16 %v2921
    %v4165 = vunpack.c.l.b16 %v2922
    %v4166 = vunpack.c.h.b16 %v2922
    %v4167 = vunpack.c.l.b16 %v2923
    %v4168 = vunpack.c.l.b16 %v2924
    %v4169 = vunpack.c.h.b16 %v2924
    %v4170 = vunpack.c.l.b16 %v2925
    %v4171 = vunpack.c.h.b16 %v2925
    %v4172 = vunpack.c.l.b16 %v2926
    %v4173 = vunpack.c.h.b16 %v2926
    %v4174 = vunpack.c.l.b16 %v2927
    %v4175 = vunpack.c.l.b16 %v2928
    %v4176 = vunpack.c.h.b16 %v2928
    %v4177 = vunpack.c.l.b16 %v2929
    %v4178 = vunpack.c.h.b16 %v2929
    %v4179 = vunpack.c.l.b16 %v2930
    %v4180 = vunpack.c.h.b16 %v2930
    %v4181 = vunpack.c.l.b16 %v2931
    %v4182 = vunpack.c.l.b16 %v2932
    %v4183 = vunpack.c.h.b16 %v2932
    %v4184 = vunpack.c.l.b16 %v2933
    %v4185 = vunpack.c.h.b16 %v2933
    %v4186 = vunpack.c.l.b16 %v2934
    %v4187 = vunpack.c.h.b16 %v2934
    %v4188 = vunpack.c.l.b16 %v2935
    %v4189 = vunpack.c.l.b16 %v2936
    %v4190 = vunpack.c.h.b16 %v2936
    %v4191 = vunpack.c.l.b16 %v2937
    %v4192 = vunpack.c.h.b16 %v2937
    %v4193 = vunpack.c.l.b16 %v2938
    %v4194 = vunpack.c.h.b16 %v2938
    %v4195 = vunpack.c.l.b16 %v2939
    %v4196 = vunpack.c.l.b16 %v2940
    %v4197 = vunpack.c.h.b16 %v2940
    %v4198 = vunpack.c.l.b16 %v2941
    %v4199 = vunpack.c.h.b16 %v2941
    %v4200 = vunpack.c.l.b16 %v2942
    %v4201 = vunpack.c.h.b16 %v2942
    %v4202 = vunpack.c.l.b16 %v2943
    %v4203 = vunpack.c.l.b16 %v2944
    %v4204 = vunpack.c.h.b16 %v2944
    %v4205 = vunpack.c.l.b16 %v2945
    %v4206 = vunpack.c.h.b16 %v2945
    %v4207 = vunpack.c.l.b16 %v2946
    %v4208 = vunpack.c.h.b16 %v2946
    %v4209 = vunpack.c.l.b16 %v2947
    %v4210 = vunpack.c.l.b16 %v2948
    %v4211 = vunpack.c.h.b16 %v2948
    %v4212 = vunpack.c.l.b16 %v2949
    %v4213 = vunpack.c.h.b16 %v2949
    %v4214 = vunpack.c.l.b16 %v2950
    %v4215 = vunpack.c.h.b16 %v2950
    %v4216 = vunpack.c.l.b16 %v2951
    %v4217 = vunpack.c.l.b16 %v2952
    %v4218 = vunpack.c.h.b16 %v2952
    %v4219 = vunpack.c.l.b16 %v2953
    %v4220 = vunpack.c.h.b16 %v2953
    %v4221 = vunpack.c.l.b16 %v2954
    %v4222 = vunpack.c.h.b16 %v2954
    %v4223 = vunpack.c.l.b16 %v2955
    %v4224 = vunpack.c.l.b16 %v2956
    %v4225 = vunpack.c.h.b16 %v2956
    %v4226 = vunpack.c.l.b16 %v2957
    %v4227 = vunpack.c.h.b16 %v2957
    %v4228 = vunpack.c.l.b16 %v2958
    %v4229 = vunpack.c.h.b16 %v2958
    %v4230 = vunpack.c.l.b16 %v2959
    %v4231 = vunpack.c.l.b16 %v2960
    %v4232 = vunpack.c.h.b16 %v2960
    %v4233 = vunpack.c.l.b16 %v2961
    %v4234 = vunpack.c.h.b16 %v2961
    %v4235 = vunpack.c.l.b16 %v2962
    %v4236 = vunpack.c.h.b16 %v2962
    %v4237 = vunpack.c.l.b16 %v2963
    %v4238 = vunpack.c.l.b16 %v2964
    %v4239 = vunpack.c.h.b16 %v2964
    %v4240 = vunpack.c.l.b16 %v2965
    %v4241 = vunpack.c.h.b16 %v2965
    %v4242 = vunpack.c.l.b16 %v2966
    %v4243 = vunpack.c.h.b16 %v2966
    %v4244 = vunpack.c.l.b16 %v2967
    %v4245 = vunpack.c.l.b16 %v2968
    %v4246 = vunpack.c.h.b16 %v2968
    %v4247 = vunpack.c.l.b16 %v2969
    %v4248 = vunpack.c.h.b16 %v2969
    %v4249 = vunpack.c.l.b16 %v2970
    %v4250 = vunpack.c.h.b16 %v2970
    %v4251 = vunpack.c.l.b16 %v2971
    %v4252 = vunpack.c.l.b16 %v2972
    %v4253 = vunpack.c.h.b16 %v2972
    %v4254 = vunpack.c.l.b16 %v2973
    %v4255 = vunpack.c.h.b16 %v2973
    %v4256 = vunpack.c.l.b16 %v2974
    %v4257 = vunpack.c.h.b16 %v2974
    %v4258 = vunpack.c.l.b16 %v2975
    %v4259 = vunpack.c.l.b16 %v2976
    %v4260 = vunpack.c.h.b16 %v2976
    %v4261 = vunpack.c.l.b16 %v2977
    %v4262 = vunpack.c.h.b16 %v2977
    %v4263 = vunpack.c.l.b16 %v2978
    %v4264 = vunpack.c.h.b16 %v2978
    %v4265 = vunpack.c.l.b16 %v2979
    %v4266 = vunpack.c.l.b16 %v2980
    %v4267 = vunpack.c.h.b16 %v2980
    %v4268 = vunpack.c.l.b16 %v2981
    %v4269 = vunpack.c.h.b16 %v2981
    %v4270 = vunpack.c.l.b16 %v2982
    %v4271 = vunpack.c.h.b16 %v2982
    %v4272 = vunpack.c.l.b16 %v2983
    %v4273 = vunpack.c.l.b16 %v2984
    %v4274 = vunpack.c.h.b16 %v2984
    %v4275 = vunpack.c.l.b16 %v2985
    %v4276 = vunpack.c.h.b16 %v2985
    %v4277 = vunpack.c.l.b16 %v2986
    %v4278 = vunpack.c.h.b16 %v2986
    %v4279 = vunpack.c.l.b16 %v2987
    %v4280 = vunpack.c.l.b16 %v2988
    %v4281 = vunpack.c.h.b16 %v2988
    %v4282 = vunpack.c.l.b16 %v2989
    %v4283 = vunpack.c.h.b16 %v2989
    %v4284 = vunpack.c.l.b16 %v2990
    %v4285 = vunpack.c.h.b16 %v2990
    %v4286 = vunpack.c.l.b16 %v2991
    %v4287 = vunpack.c.l.b16 %v2992
    %v4288 = vunpack.c.h.b16 %v2992
    %v4289 = vunpack.c.l.b16 %v2993
    %v4290 = vunpack.c.h.b16 %v2993
    %v4291 = vunpack.c.l.b16 %v2994
    %v4292 = vunpack.c.h.b16 %v2994
    %v4293 = vunpack.c.l.b16 %v2995
    %v4294 = vunpack.c.l.b16 %v2996
    %v4295 = vunpack.c.h.b16 %v2996
    %v4296 = vunpack.c.l.b16 %v2997
    %v4297 = vunpack.c.h.b16 %v2997
    %v4298 = vunpack.c.l.b16 %v2998
    %v4299 = vunpack.c.h.b16 %v2998
    %v4300 = vunpack.c.l.b16 %v2999
    %v4301 = vunpack.c.l.b16 %v3000
    %v4302 = vunpack.c.h.b16 %v3000
    %v4303 = vunpack.c.l.b16 %v3001
    %v4304 = vunpack.c.h.b16 %v3001
    %v4305 = vunpack.c.l.b16 %v3002
    %v4306 = vunpack.c.h.b16 %v3002
    %v4307 = vunpack.c.l.b16 %v3003
    %v4308 = vunpack.c.l.b16 %v3004
    %v4309 = vunpack.c.h.b16 %v3004
    %v4310 = vunpack.c.l.b16 %v3005
    %v4311 = vunpack.c.h.b16 %v3005
    %v4312 = vunpack.c.l.b16 %v3006
    %v4313 = vunpack.c.h.b16 %v3006
    %v4314 = vunpack.c.l.b16 %v3007
    %v4315 = vunpack.c.l.b16 %v3008
    %v4316 = vunpack.c.h.b16 %v3008
    %v4317 = vunpack.c.l.b16 %v3009
    %v4318 = vunpack.c.h.b16 %v3009
    %v4319 = vunpack.c.l.b16 %v3010
    %v4320 = vunpack.c.h.b16 %v3010
    %v4321 = vunpack.c.l.b16 %v3011
    %v4322 = vunpack.c.l.b16 %v3012
    %v4323 = vunpack.c.h.b16 %v3012
    %v4324 = vunpack.c.l.b16 %v3013
    %v4325 = vunpack.c.h.b16 %v3013
    %v4326 = vunpack.c.l.b16 %v3014
    %v4327 = vunpack.c.h.b16 %v3014
    %v4328 = vunpack.c.l.b16 %v3015
    %v4329 = vunpack.c.l.b16 %v3016
    %v4330 = vunpack.c.h.b16 %v3016
    %v4331 = vunpack.c.l.b16 %v3017
    %v4332 = vunpack.c.h.b16 %v3017
    %v4333 = vunpack.c.l.b16 %v3018
    %v4334 = vunpack.c.h.b16 %v3018
    %v4335 = vunpack.c.l.b16 %v3019
    %v4336 = vunpack.c.l.b16 %v3020
    %v4337 = vunpack.c.h.b16 %v3020
    %v4338 = vunpack.c.l.b16 %v3021
    %v4339 = vunpack.c.h.b16 %v3021
    %v4340 = vunpack.c.l.b16 %v3022
    %v4341 = vunpack.c.h.b16 %v3022
    %v4342 = vunpack.c.l.b16 %v3023
    %v4343 = vunpack.c.l.b16 %v3024
    %v4344 = vunpack.c.h.b16 %v3024
    %v4345 = vunpack.c.l.b16 %v3025
    %v4346 = vunpack.c.h.b16 %v3025
    %v4347 = vunpack.c.l.b16 %v3026
    %v4348 = vunpack.c.h.b16 %v3026
    %v4349 = vunpack.c.l.b16 %v3027
    %v4350 = vunpack.c.l.b16 %v3028
    %v4351 = vunpack.c.h.b16 %v3028
    %v4352 = vunpack.c.l.b16 %v3029
    %v4353 = vunpack.c.h.b16 %v3029
    %v4354 = vunpack.c.l.b16 %v3030
    %v4355 = vunpack.c.h.b16 %v3030
    %v4356 = vunpack.c.l.b16 %v3031
    %v4357 = vunpack.c.l.b16 %v3032
    %v4358 = vunpack.c.h.b16 %v3032
    %v4359 = vunpack.c.l.b16 %v3033
    %v4360 = vunpack.c.h.b16 %v3033
    %v4361 = vunpack.c.l.b16 %v3034
    %v4362 = vunpack.c.h.b16 %v3034
    %v4363 = vunpack.c.l.b16 %v3035
    %v4364 = vunpack.c.l.b16 %v3036
    %v4365 = vunpack.c.h.b16 %v3036
    %v4366 = vunpack.c.l.b16 %v3037
    %v4367 = vunpack.c.h.b16 %v3037
    %v4368 = vunpack.c.l.b16 %v3038
    %v4369 = vunpack.c.h.b16 %v3038
    %v4370 = vunpack.c.l.b16 %v3039
    %v4371 = vunpack.c.l.b16 %v3040
    %v4372 = vunpack.c.h.b16 %v3040
    %v4373 = vunpack.c.l.b16 %v3041
    %v4374 = vunpack.c.h.b16 %v3041
    %v4375 = vunpack.c.l.b16 %v3042
    %v4376 = vunpack.c.h.b16 %v3042
    %v4377 = vunpack.c.l.b16 %v3043
    %v4378 = vunpack.c.l.b16 %v3044
    %v4379 = vunpack.c.h.b16 %v3044
    %v4380 = vunpack.c.l.b16 %v3045
    %v4381 = vunpack.c.h.b16 %v3045
    %v4382 = vunpack.c.l.b16 %v3046
    %v4383 = vunpack.c.h.b16 %v3046
    %v4384 = vunpack.c.l.b16 %v3047
    %v4385 = vunpack.c.l.b16 %v3048
    %v4386 = vunpack.c.h.b16 %v3048
    %v4387 = vunpack.c.l.b16 %v3049
    %v4388 = vunpack.c.h.b16 %v3049
    %v4389 = vunpack.c.l.b16 %v3050
    %v4390 = vunpack.c.h.b16 %v3050
    %v4391 = vunpack.c.l.b16 %v3051
    %v4392 = vunpack.c.l.b16 %v3052
    %v4393 = vunpack.c.h.b16 %v3052
    %v4394 = vunpack.c.l.b16 %v3053
    %v4395 = vunpack.c.h.b16 %v3053
    %v4396 = vunpack.c.l.b16 %v3054
    %v4397 = vunpack.c.h.b16 %v3054
    %v4398 = vunpack.c.l.b16 %v3055
    %v4399 = vunpack.c.l.b16 %v3056
    %v4400 = vunpack.c.h.b16 %v3056
    %v4401 = vunpack.c.l.b16 %v3057
    %v4402 = vunpack.c.h.b16 %v3057
    %v4403 = vunpack.c.l.b16 %v3058
    %v4404 = vunpack.c.h.b16 %v3058
    %v4405 = vunpack.c.l.b16 %v3059
    %v4406 = vunpack.c.l.b16 %v3060
    %v4407 = vunpack.c.h.b16 %v3060
    %v4408 = vunpack.c.l.b16 %v3061
    %v4409 = vunpack.c.h.b16 %v3061
    %v4410 = vunpack.c.l.b16 %v3062
    %v4411 = vunpack.c.h.b16 %v3062
    %v4412 = vunpack.c.l.b16 %v3063
    %v4413 = vunpack.c.l.b16 %v3064
    %v4414 = vunpack.c.h.b16 %v3064
    %v4415 = vunpack.c.l.b16 %v3065
    %v4416 = vunpack.c.h.b16 %v3065
    %v4417 = vunpack.c.l.b16 %v3066
    %v4418 = vunpack.c.h.b16 %v3066
    %v4419 = vunpack.c.l.b16 %v3067
    %v4420 = vunpack.c.l.b16 %v3068
    %v4421 = vunpack.c.h.b16 %v3068
    %v4422 = vunpack.c.l.b16 %v3069
    %v4423 = vunpack.c.h.b16 %v3069
    %v4424 = vunpack.c.l.b16 %v3070
    %v4425 = vunpack.c.h.b16 %v3070
    %v4426 = vunpack.c.l.b16 %v3071
    %v4427 = vunpack.c.l.b16 %v3072
    %v4428 = vunpack.c.h.b16 %v3072
    %v4429 = vunpack.c.l.b16 %v3073
    %v4430 = vunpack.c.h.b16 %v3073
    %v4431 = vunpack.c.l.b16 %v3074
    %v4432 = vunpack.c.h.b16 %v3074
    %v4433 = vunpack.c.l.b16 %v3075
    %v4434 = vunpack.c.l.b16 %v3076
    %v4435 = vunpack.c.h.b16 %v3076
    %v4436 = vunpack.c.l.b16 %v3077
    %v4437 = vunpack.c.h.b16 %v3077
    %v4438 = vunpack.c.l.b16 %v3078
    %v4439 = vunpack.c.h.b16 %v3078
    %v4440 = vunpack.c.l.b16 %v3079
    %v4441 = vunpack.c.l.b16 %v3080
    %v4442 = vunpack.c.h.b16 %v3080
    %v4443 = vunpack.c.l.b16 %v3081
    %v4444 = vunpack.c.h.b16 %v3081
    %v4445 = vunpack.c.l.b16 %v3082
    %v4446 = vunpack.c.h.b16 %v3082
    %v4447 = vunpack.c.l.b16 %v3083
    %v4448 = vunpack.c.l.b16 %v3084
    %v4449 = vunpack.c.h.b16 %v3084
    %v4450 = vunpack.c.l.b16 %v3085
    %v4451 = vunpack.c.h.b16 %v3085
    %v4452 = vunpack.c.l.b16 %v3086
    %v4453 = vunpack.c.h.b16 %v3086
    %v4454 = vunpack.c.l.b16 %v3087
    %v4455 = vunpack.c.l.b16 %v3088
    %v4456 = vunpack.c.h.b16 %v3088
    %v4457 = vunpack.c.l.b16 %v3089
    %v4458 = vunpack.c.h.b16 %v3089
    %v4459 = vunpack.c.l.b16 %v3090
    %v4460 = vunpack.c.h.b16 %v3090
    %v4461 = vunpack.c.l.b16 %v3091
    %v4462 = vunpack.c.l.b16 %v3092
    %v4463 = vunpack.c.h.b16 %v3092
    %v4464 = vunpack.c.l.b16 %v3093
    %v4465 = vunpack.c.h.b16 %v3093
    %v4466 = vunpack.c.l.b16 %v3094
    %v4467 = vunpack.c.h.b16 %v3094
    %v4468 = vunpack.c.l.b16 %v3095
    %v4469 = vunpack.c.l.b16 %v3096
    %v4470 = vunpack.c.h.b16 %v3096
    %v4471 = vunpack.c.l.b16 %v3097
    %v4472 = vunpack.c.h.b16 %v3097
    %v4473 = vunpack.c.l.b16 %v3098
    %v4474 = vunpack.c.h.b16 %v3098
    %v4475 = vunpack.c.l.b16 %v3099
    %v4476 = vunpack.c.l.b16 %v3100
    %v4477 = vunpack.c.h.b16 %v3100
    %v4478 = vunpack.c.l.b16 %v3101
    %v4479 = vunpack.c.h.b16 %v3101
    %v4480 = vunpack.c.l.b16 %v3102
    %v4481 = vunpack.c.h.b16 %v3102
    %v4482 = vunpack.c.l.b16 %v3103
    %v4483 = vunpack.c.l.b16 %v3104
    %v4484 = vunpack.c.h.b16 %v3104
    %v4485 = vunpack.c.l.b16 %v3105
    %v4486 = vunpack.c.h.b16 %v3105
    %v4487 = vunpack.c.l.b16 %v3106
    %v4488 = vunpack.c.h.b16 %v3106
    %v4489 = vunpack.c.l.b16 %v3107
    %v4490 = vunpack.c.l.b16 %v3108
    %v4491 = vunpack.c.h.b16 %v3108
    %v4492 = vunpack.c.l.b16 %v3109
    %v4493 = vunpack.c.h.b16 %v3109
    %v4494 = vunpack.c.l.b16 %v3110
    %v4495 = vunpack.c.h.b16 %v3110
    %v4496 = vunpack.c.l.b16 %v3111
    %v4497 = vunpack.c.l.b16 %v3112
    %v4498 = vunpack.c.h.b16 %v3112
    %v4499 = vunpack.c.l.b16 %v3113
    %v4500 = vunpack.c.h.b16 %v3113
    %v4501 = vunpack.c.l.b16 %v3114
    %v4502 = vunpack.c.h.b16 %v3114
    %v4503 = vunpack.c.l.b16 %v3115
    %v4504 = vunpack.c.l.b16 %v3116
    %v4505 = vunpack.c.h.b16 %v3116
    %v4506 = vunpack.c.l.b16 %v3117
    %v4507 = vunpack.c.h.b16 %v3117
    %v4508 = vunpack.c.l.b16 %v3118
    %v4509 = vunpack.c.h.b16 %v3118
    %v4510 = vunpack.c.l.b16 %v3119
    %v4511 = vunpack.c.l.b16 %v3120
    %v4512 = vunpack.c.h.b16 %v3120
    %v4513 = vunpack.c.l.b16 %v3121
    %v4514 = vunpack.c.h.b16 %v3121
    %v4515 = vunpack.c.l.b16 %v3122
    %v4516 = vunpack.c.h.b16 %v3122
    %v4517 = vunpack.c.l.b16 %v3123
    %v4518 = vunpack.c.l.b16 %v3124
    %v4519 = vunpack.c.h.b16 %v3124
    %v4520 = vunpack.c.l.b16 %v3125
    %v4521 = vunpack.c.h.b16 %v3125
    %v4522 = vunpack.c.l.b16 %v3126
    %v4523 = vunpack.c.h.b16 %v3126
    %v4524 = vunpack.c.l.b16 %v3127
    %v4525 = vunpack.c.l.b16 %v3128
    %v4526 = vunpack.c.h.b16 %v3128
    %v4527 = vunpack.c.l.b16 %v3129
    %v4528 = vunpack.c.h.b16 %v3129
    %v4529 = vunpack.c.l.b16 %v3130
    %v4530 = vunpack.c.h.b16 %v3130
    %v4531 = vunpack.c.l.b16 %v3131
    %v4532 = vunpack.c.l.b16 %v3132
    %v4533 = vunpack.c.h.b16 %v3132
    %v4534 = vunpack.c.l.b16 %v3133
    %v4535 = vunpack.c.h.b16 %v3133
    %v4536 = vunpack.c.l.b16 %v3134
    %v4537 = vunpack.c.h.b16 %v3134
    %v4538 = vunpack.c.l.b16 %v3135
    %v4539 = vunpack.c.l.b16 %v3136
    %v4540 = vunpack.c.h.b16 %v3136
    %v4541 = vunpack.c.l.b16 %v3137
    %v4542 = vunpack.c.h.b16 %v3137
    %v4543 = vunpack.c.l.b16 %v3138
    %v4544 = vunpack.c.h.b16 %v3138
    %v4545 = vunpack.c.l.b16 %v3139
    %v4546 = vunpack.c.l.b16 %v3140
    %v4547 = vunpack.c.h.b16 %v3140
    %v4548 = vunpack.c.l.b16 %v3141
    %v4549 = vunpack.c.h.b16 %v3141
    %v4550 = vunpack.c.l.b16 %v3142
    %v4551 = vunpack.c.h.b16 %v3142
    %v4552 = vunpack.c.l.b16 %v3143
    %v4553 = vunpack.c.l.b16 %v3144
    %v4554 = vunpack.c.h.b16 %v3144
    %v4555 = vunpack.c.l.b16 %v3145
    %v4556 = vunpack.c.h.b16 %v3145
    %v4557 = vunpack.c.l.b16 %v3146
    %v4558 = vunpack.c.h.b16 %v3146
    %v4559 = vunpack.c.l.b16 %v3147
    %v4560 = vunpack.c.l.b16 %v3148
    %v4561 = vunpack.c.h.b16 %v3148
    %v4562 = vunpack.c.l.b16 %v3149
    %v4563 = vunpack.c.h.b16 %v3149
    %v4564 = vunpack.c.l.b16 %v3150
    %v4565 = vunpack.c.h.b16 %v3150
    %v4566 = vunpack.c.l.b16 %v3151
    %v4567 = vunpack.c.l.b16 %v3152
    %v4568 = vunpack.c.h.b16 %v3152
    %v4569 = vunpack.c.l.b16 %v3153
    %v4570 = vunpack.c.h.b16 %v3153
    %v4571 = vunpack.c.l.b16 %v3154
    %v4572 = vunpack.c.h.b16 %v3154
    %v4573 = vunpack.c.l.b16 %v3155
    %v4574 = vunpack.c.l.b16 %v3156
    %v4575 = vunpack.c.h.b16 %v3156
    %v4576 = vunpack.c.l.b16 %v3157
    %v4577 = vunpack.c.h.b16 %v3157
    %v4578 = vunpack.c.l.b16 %v3158
    %v4579 = vunpack.c.h.b16 %v3158
    %v4580 = vunpack.c.l.b16 %v3159
    %v4581 = vunpack.c.l.b16 %v3160
    %v4582 = vunpack.c.h.b16 %v3160
    %v4583 = vunpack.c.l.b16 %v3161
    %v4584 = vunpack.c.h.b16 %v3161
    %v4585 = vunpack.c.l.b16 %v3162
    %v4586 = vunpack.c.h.b16 %v3162
    %v4587 = vunpack.c.l.b16 %v3163
    %v4588 = vunpack.c.l.b16 %v3164
    %v4589 = vunpack.c.h.b16 %v3164
    %v4590 = vunpack.c.l.b16 %v3165
    %v4591 = vunpack.c.h.b16 %v3165
    %v4592 = vunpack.c.l.b16 %v3166
    %v4593 = vunpack.c.h.b16 %v3166
    %v4594 = vunpack.c.l.b16 %v3167
    %v4595 = vunpack.c.l.b16 %v3168
    %v4596 = vunpack.c.h.b16 %v3168
    %v4597 = vunpack.c.l.b16 %v3169
    %v4598 = vunpack.c.h.b16 %v3169
    %v4599 = vunpack.c.l.b16 %v3170
    %v4600 = vunpack.c.h.b16 %v3170
    %v4601 = vunpack.c.l.b16 %v3171
    %v4602 = vunpack.c.l.b16 %v3172
    %v4603 = vunpack.c.h.b16 %v3172
    %v4604 = vunpack.c.l.b16 %v3173
    %v4605 = vunpack.c.h.b16 %v3173
    %v4606 = vunpack.c.l.b16 %v3174
    %v4607 = vunpack.c.h.b16 %v3174
    %v4608 = vunpack.c.l.b16 %v3175
    %v4609 = vunpack.c.l.b16 %v3176
    %v4610 = vunpack.c.h.b16 %v3176
    %v4611 = vunpack.c.l.b16 %v3177
    %v4612 = vunpack.c.h.b16 %v3177
    %v4613 = vunpack.c.l.b16 %v3178
    %v4614 = vunpack.c.h.b16 %v3178
    %v4615 = vunpack.c.l.b16 %v3179
    %v4616 = vunpack.c.l.b16 %v3180
    %v4617 = vunpack.c.h.b16 %v3180
    %v4618 = vunpack.c.l.b16 %v3181
    %v4619 = vunpack.c.h.b16 %v3181
    %v4620 = vunpack.c.l.b16 %v3182
    %v4621 = vunpack.c.h.b16 %v3182
    %v4622 = vunpack.c.l.b16 %v3183
    %v4623 = vunpack.c.l.b16 %v3184
    %v4624 = vunpack.c.h.b16 %v3184
    %v4625 = vunpack.c.l.b16 %v3185
    %v4626 = vunpack.c.h.b16 %v3185
    %v4627 = vunpack.c.l.b16 %v3186
    %v4628 = vunpack.c.h.b16 %v3186
    %v4629 = vunpack.c.l.b16 %v3187
    %v4630 = vunpack.c.l.b16 %v3188
    %v4631 = vunpack.c.h.b16 %v3188
    %v4632 = vunpack.c.l.b16 %v3189
    %v4633 = vunpack.c.h.b16 %v3189
    %v4634 = vunpack.c.l.b16 %v3190
    %v4635 = vunpack.c.h.b16 %v3190
    %v4636 = vunpack.c.l.b16 %v3191
    %v4637 = vpack.c.b16 %v3748, %v3741
    %v4638 = vpack.c.b16 %v3749, %v3742
    %v4639 = vpack.c.b16 %v3750, %v3743
    %v4640 = vpack.c.b16 %v3751, %v3744
    %v4641 = vpack.c.b16 %v3752, %v3745
    %v4642 = vpack.c.b16 %v3753, %v3746
    %v4643 = vpack.c.b16 %v3754, %v3747
    %v4644 = vpack.c.b16 %v3762, %v3755
    %v4645 = vpack.c.b16 %v3763, %v3756
    %v4646 = vpack.c.b16 %v3764, %v3757
    %v4647 = vpack.c.b16 %v3765, %v3758
    %v4648 = vpack.c.b16 %v3766, %v3759
    %v4649 = vpack.c.b16 %v3767, %v3760
    %v4650 = vpack.c.b16 %v3768, %v3761
    %v4651 = vpack.c.b16 %v3776, %v3769
    %v4652 = vpack.c.b16 %v3777, %v3770
    %v4653 = vpack.c.b16 %v3778, %v3771
    %v4654 = vpack.c.b16 %v3779, %v3772
    %v4655 = vpack.c.b16 %v3780, %v3773
    %v4656 = vpack.c.b16 %v3781, %v3774
    %v4657 = vpack.c.b16 %v3782, %v3775
    %v4658 = vpack.c.b16 %v3790, %v3783
    %v4659 = vpack.c.b16 %v3791, %v3784
    %v4660 = vpack.c.b16 %v3792, %v3785
    %v4661 = vpack.c.b16 %v3793, %v3786
    %v4662 = vpack.c.b16 %v3794, %v3787
    %v4663 = vpack.c.b16 %v3795, %v3788
    %v4664 = vpack.c.b16 %v3796, %v3789
    %v4665 = vpack.c.b16 %v3804, %v3797
    %v4666 = vpack.c.b16 %v3805, %v3798
    %v4667 = vpack.c.b16 %v3806, %v3799
    %v4668 = vpack.c.b16 %v3807, %v3800
    %v4669 = vpack.c.b16 %v3808, %v3801
    %v4670 = vpack.c.b16 %v3809, %v3802
    %v4671 = vpack.c.b16 %v3810, %v3803
    %v4672 = vpack.c.b16 %v3818, %v3811
    %v4673 = vpack.c.b16 %v3819, %v3812
    %v4674 = vpack.c.b16 %v3820, %v3813
    %v4675 = vpack.c.b16 %v3821, %v3814
    %v4676 = vpack.c.b16 %v3822, %v3815
    %v4677 = vpack.c.b16 %v3823, %v3816
    %v4678 = vpack.c.b16 %v3824, %v3817
    %v4679 = vpack.c.b16 %v3832, %v3825
    %v4680 = vpack.c.b16 %v3833, %v3826
    %v4681 = vpack.c.b16 %v3834, %v3827
    %v4682 = vpack.c.b16 %v3835, %v3828
    %v4683 = vpack.c.b16 %v3836, %v3829
    %v4684 = vpack.c.b16 %v3837, %v3830
    %v4685 = vpack.c.b16 %v3838, %v3831
    %v4686 = vpack.c.b16 %v3846, %v3839
    %v4687 = vpack.c.b16 %v3847, %v3840
    %v4688 = vpack.c.b16 %v3848, %v3841
    %v4689 = vpack.c.b16 %v3849, %v3842
    %v4690 = vpack.c.b16 %v3850, %v3843
    %v4691 = vpack.c.b16 %v3851, %v3844
    %v4692 = vpack.c.b16 %v3852, %v3845
    %v4693 = vpack.c.b16 %v3860, %v3853
    %v4694 = vpack.c.b16 %v3861, %v3854
    %v4695 = vpack.c.b16 %v3862, %v3855
    %v4696 = vpack.c.b16 %v3863, %v3856
    %v4697 = vpack.c.b16 %v3864, %v3857
    %v4698 = vpack.c.b16 %v3865, %v3858
    %v4699 = vpack.c.b16 %v3866, %v3859
    %v4700 = vpack.c.b16 %v3874, %v3867
    %v4701 = vpack.c.b16 %v3875, %v3868
    %v4702 = vpack.c.b16 %v3876, %v3869
    %v4703 = vpack.c.b16 %v3877, %v3870
    %v4704 = vpack.c.b16 %v3878, %v3871
    %v4705 = vpack.c.b16 %v3879, %v3872
    %v4706 = vpack.c.b16 %v3880, %v3873
    %v4707 = vpack.c.b16 %v3888, %v3881
    %v4708 = vpack.c.b16 %v3889, %v3882
    %v4709 = vpack.c.b16 %v3890, %v3883
    %v4710 = vpack.c.b16 %v3891, %v3884
    %v4711 = vpack.c.b16 %v3892, %v3885
    %v4712 = vpack.c.b16 %v3893, %v3886
    %v4713 = vpack.c.b16 %v3894, %v3887
    %v4714 = vpack.c.b16 %v3902, %v3895
    %v4715 = vpack.c.b16 %v3903, %v3896
    %v4716 = vpack.c.b16 %v3904, %v3897
    %v4717 = vpack.c.b16 %v3905, %v3898
    %v4718 = vpack.c.b16 %v3906, %v3899
    %v4719 = vpack.c.b16 %v3907, %v3900
    %v4720 = vpack.c.b16 %v3908, %v3901
    %v4721 = vpack.c.b16 %v3916, %v3909
    %v4722 = vpack.c.b16 %v3917, %v3910
    %v4723 = vpack.c.b16 %v3918, %v3911
    %v4724 = vpack.c.b16 %v3919, %v3912
    %v4725 = vpack.c.b16 %v3920, %v3913
    %v4726 = vpack.c.b16 %v3921, %v3914
    %v4727 = vpack.c.b16 %v3922, %v3915
    %v4728 = vpack.c.b16 %v3930, %v3923
    %v4729 = vpack.c.b16 %v3931, %v3924
    %v4730 = vpack.c.b16 %v3932, %v3925
    %v4731 = vpack.c.b16 %v3933, %v3926
    %v4732 = vpack.c.b16 %v3934, %v3927
    %v4733 = vpack.c.b16 %v3935, %v3928
    %v4734 = vpack.c.b16 %v3936, %v3929
    %v4735 = vpack.c.b16 %v3944, %v3937
    %v4736 = vpack.c.b16 %v3945, %v3938
    %v4737 = vpack.c.b16 %v3946, %v3939
    %v4738 = vpack.c.b16 %v3947, %v3940
    %v4739 = vpack.c.b16 %v3948, %v3941
    %v4740 = vpack.c.b16 %v3949, %v3942
    %v4741 = vpack.c.b16 %v3950, %v3943
    %v4742 = vpack.c.b16 %v3958, %v3951
    %v4743 = vpack.c.b16 %v3959, %v3952
    %v4744 = vpack.c.b16 %v3960, %v3953
    %v4745 = vpack.c.b16 %v3961, %v3954
    %v4746 = vpack.c.b16 %v3962, %v3955
    %v4747 = vpack.c.b16 %v3963, %v3956
    %v4748 = vpack.c.b16 %v3964, %v3957
    %v4749 = vpack.c.b16 %v3972, %v3965
    %v4750 = vpack.c.b16 %v3973, %v3966
    %v4751 = vpack.c.b16 %v3974, %v3967
    %v4752 = vpack.c.b16 %v3975, %v3968
    %v4753 = vpack.c.b16 %v3976, %v3969
    %v4754 = vpack.c.b16 %v3977, %v3970
    %v4755 = vpack.c.b16 %v3978, %v3971
    %v4756 = vpack.c.b16 %v3986, %v3979
    %v4757 = vpack.c.b16 %v3987, %v3980
    %v4758 = vpack.c.b16 %v3988, %v3981
    %v4759 = vpack.c.b16 %v3989, %v3982
    %v4760 = vpack.c.b16 %v3990, %v3983
    %v4761 = vpack.c.b16 %v3991, %v3984
    %v4762 = vpack.c.b16 %v3992, %v3985
    %v4763 = vpack.c.b16 %v4000, %v3993
    %v4764 = vpack.c.b16 %v4001, %v3994
    %v4765 = vpack.c.b16 %v4002, %v3995
    %v4766 = vpack.c.b16 %v4003, %v3996
    %v4767 = vpack.c.b16 %v4004, %v3997
    %v4768 = vpack.c.b16 %v4005, %v3998
    %v4769 = vpack.c.b16 %v4006, %v3999
    %v4770 = vpack.c.b16 %v4014, %v4007
    %v4771 = vpack.c.b16 %v4015, %v4008
    %v4772 = vpack.c.b16 %v4016, %v4009
    %v4773 = vpack.c.b16 %v4017, %v4010
    %v4774 = vpack.c.b16 %v4018, %v4011
    %v4775 = vpack.c.b16 %v4019, %v4012
    %v4776 = vpack.c.b16 %v4020, %v4013
    %v4777 = vpack.c.b16 %v4028, %v4021
    %v4778 = vpack.c.b16 %v4029, %v4022
    %v4779 = vpack.c.b16 %v4030, %v4023
    %v4780 = vpack.c.b16 %v4031, %v4024
    %v4781 = vpack.c.b16 %v4032, %v4025
    %v4782 = vpack.c.b16 %v4033, %v4026
    %v4783 = vpack.c.b16 %v4034, %v4027
    %v4784 = vpack.c.b16 %v4042, %v4035
    %v4785 = vpack.c.b16 %v4043, %v4036
    %v4786 = vpack.c.b16 %v4044, %v4037
    %v4787 = vpack.c.b16 %v4045, %v4038
    %v4788 = vpack.c.b16 %v4046, %v4039
    %v4789 = vpack.c.b16 %v4047, %v4040
    %v4790 = vpack.c.b16 %v4048, %v4041
    %v4791 = vpack.c.b16 %v4056, %v4049
    %v4792 = vpack.c.b16 %v4057, %v4050
    %v4793 = vpack.c.b16 %v4058, %v4051
    %v4794 = vpack.c.b16 %v4059, %v4052
    %v4795 = vpack.c.b16 %v4060, %v4053
    %v4796 = vpack.c.b16 %v4061, %v4054
    %v4797 = vpack.c.b16 %v4062, %v4055
    %v4798 = vpack.c.b16 %v4070, %v4063
    %v4799 = vpack.c.b16 %v4071, %v4064
    %v4800 = vpack.c.b16 %v4072, %v4065
    %v4801 = vpack.c.b16 %v4073, %v4066
    %v4802 = vpack.c.b16 %v4074, %v4067
    %v4803 = vpack.c.b16 %v4075, %v4068
    %v4804 = vpack.c.b16 %v4076, %v4069
    %v4805 = vpack.c.b16 %v4084, %v4077
    %v4806 = vpack.c.b16 %v4085, %v4078
    %v4807 = vpack.c.b16 %v4086, %v4079
    %v4808 = vpack.c.b16 %v4087, %v4080
    %v4809 = vpack.c.b16 %v4088, %v4081
    %v4810 = vpack.c.b16 %v4089, %v4082
    %v4811 = vpack.c.b16 %v4090, %v4083
    %v4812 = vpack.c.b16 %v4098, %v4091
    %v4813 = vpack.c.b16 %v4099, %v4092
    %v4814 = vpack.c.b16 %v4100, %v4093
    %v4815 = vpack.c.b16 %v4101, %v4094
    %v4816 = vpack.c.b16 %v4102, %v4095
    %v4817 = vpack.c.b16 %v4103, %v4096
    %v4818 = vpack.c.b16 %v4104, %v4097
    %v4819 = vpack.c.b16 %v4112, %v4105
    %v4820 = vpack.c.b16 %v4113, %v4106
    %v4821 = vpack.c.b16 %v4114, %v4107
    %v4822 = vpack.c.b16 %v4115, %v4108
    %v4823 = vpack.c.b16 %v4116, %v4109
    %v4824 = vpack.c.b16 %v4117, %v4110
    %v4825 = vpack.c.b16 %v4118, %v4111
    %v4826 = vpack.c.b16 %v4126, %v4119
    %v4827 = vpack.c.b16 %v4127, %v4120
    %v4828 = vpack.c.b16 %v4128, %v4121
    %v4829 = vpack.c.b16 %v4129, %v4122
    %v4830 = vpack.c.b16 %v4130, %v4123
    %v4831 = vpack.c.b16 %v4131, %v4124
    %v4832 = vpack.c.b16 %v4132, %v4125
    %v4833 = vpack.c.b16 %v4140, %v4133
    %v4834 = vpack.c.b16 %v4141, %v4134
    %v4835 = vpack.c.b16 %v4142, %v4135
    %v4836 = vpack.c.b16 %v4143, %v4136
    %v4837 = vpack.c.b16 %v4144, %v4137
    %v4838 = vpack.c.b16 %v4145, %v4138
    %v4839 = vpack.c.b16 %v4146, %v4139
    %v4840 = vpack.c.b16 %v4154, %v4147
    %v4841 = vpack.c.b16 %v4155, %v4148
    %v4842 = vpack.c.b16 %v4156, %v4149
    %v4843 = vpack.c.b16 %v4157, %v4150
    %v4844 = vpack.c.b16 %v4158, %v4151
    %v4845 = vpack.c.b16 %v4159, %v4152
    %v4846 = vpack.c.b16 %v4160, %v4153
    %v4847 = vpack.c.b16 %v4168, %v4161
    %v4848 = vpack.c.b16 %v4169, %v4162
    %v4849 = vpack.c.b16 %v4170, %v4163
    %v4850 = vpack.c.b16 %v4171, %v4164
    %v4851 = vpack.c.b16 %v4172, %v4165
    %v4852 = vpack.c.b16 %v4173, %v4166
    %v4853 = vpack.c.b16 %v4174, %v4167
    %v4854 = vpack.c.b16 %v4182, %v4175
    %v4855 = vpack.c.b16 %v4183, %v4176
    %v4856 = vpack.c.b16 %v4184, %v4177
    %v4857 = vpack.c.b16 %v4185, %v4178
    %v4858 = vpack.c.b16 %v4186, %v4179
    %v4859 = vpack.c.b16 %v4187, %v4180
    %v4860 = vpack.c.b16 %v4188, %v4181
    %v4861 = vpack.c.b16 %v4196, %v4189
    %v4862 = vpack.c.b16 %v4197, %v4190
    %v4863 = vpack.c.b16 %v4198, %v4191
    %v4864 = vpack.c.b16 %v4199, %v4192
    %v4865 = vpack.c.b16 %v4200, %v4193
    %v4866 = vpack.c.b16 %v4201, %v4194
    %v4867 = vpack.c.b16 %v4202, %v4195
    %v4868 = vpack.c.b16 %v4210, %v4203
    %v4869 = vpack.c.b16 %v4211, %v4204
    %v4870 = vpack.c.b16 %v4212, %v4205
    %v4871 = vpack.c.b16 %v4213, %v4206
    %v4872 = vpack.c.b16 %v4214, %v4207
    %v4873 = vpack.c.b16 %v4215, %v4208
    %v4874 = vpack.c.b16 %v4216, %v4209
    %v4875 = vpack.c.b16 %v4224, %v4217
    %v4876 = vpack.c.b16 %v4225, %v4218
    %v4877 = vpack.c.b16 %v4226, %v4219
    %v4878 = vpack.c.b16 %v4227, %v4220
    %v4879 = vpack.c.b16 %v4228, %v4221
    %v4880 = vpack.c.b16 %v4229, %v4222
    %v4881 = vpack.c.b16 %v4230, %v4223
    %v4882 = vpack.c.b16 %v4238, %v4231
    %v4883 = vpack.c.b16 %v4239, %v4232
    %v4884 = vpack.c.b16 %v4240, %v4233
    %v4885 = vpack.c.b16 %v4241, %v4234
    %v4886 = vpack.c.b16 %v4242, %v4235
    %v4887 = vpack.c.b16 %v4243, %v4236
    %v4888 = vpack.c.b16 %v4244, %v4237
    %v4889 = vpack.c.b16 %v4252, %v4245
    %v4890 = vpack.c.b16 %v4253, %v4246
    %v4891 = vpack.c.b16 %v4254, %v4247
    %v4892 = vpack.c.b16 %v4255, %v4248
    %v4893 = vpack.c.b16 %v4256, %v4249
    %v4894 = vpack.c.b16 %v4257, %v4250
    %v4895 = vpack.c.b16 %v4258, %v4251
    %v4896 = vpack.c.b16 %v4266, %v4259
    %v4897 = vpack.c.b16 %v4267, %v4260
    %v4898 = vpack.c.b16 %v4268, %v4261
    %v4899 = vpack.c.b16 %v4269, %v4262
    %v4900 = vpack.c.b16 %v4270, %v4263
    %v4901 = vpack.c.b16 %v4271, %v4264
    %v4902 = vpack.c.b16 %v4272, %v4265
    %v4903 = vpack.c.b16 %v4280, %v4273
    %v4904 = vpack.c.b16 %v4281, %v4274
    %v4905 = vpack.c.b16 %v4282, %v4275
    %v4906 = vpack.c.b16 %v4283, %v4276
    %v4907 = vpack.c.b16 %v4284, %v4277
    %v4908 = vpack.c.b16 %v4285, %v4278
    %v4909 = vpack.c.b16 %v4286, %v4279
    %v4910 = vpack.c.b16 %v4294, %v4287
    %v4911 = vpack.c.b16 %v4295, %v4288
    %v4912 = vpack.c.b16 %v4296, %v4289
    %v4913 = vpack.c.b16 %v4297, %v4290
    %v4914 = vpack.c.b16 %v4298, %v4291
    %v4915 = vpack.c.b16 %v4299, %v4292
    %v4916 = vpack.c.b16 %v4300, %v4293
    %v4917 = vpack.c.b16 %v4308, %v4301
    %v4918 = vpack.c.b16 %v4309, %v4302
    %v4919 = vpack.c.b16 %v4310, %v4303
    %v4920 = vpack.c.b16 %v4311, %v4304
    %v4921 = vpack.c.b16 %v4312, %v4305
    %v4922 = vpack.c.b16 %v4313, %v4306
    %v4923 = vpack.c.b16 %v4314, %v4307
    %v4924 = vpack.c.b16 %v4322, %v4315
    %v4925 = vpack.c.b16 %v4323, %v4316
    %v4926 = vpack.c.b16 %v4324, %v4317
    %v4927 = vpack.c.b16 %v4325, %v4318
    %v4928 = vpack.c.b16 %v4326, %v4319
    %v4929 = vpack.c.b16 %v4327, %v4320
    %v4930 = vpack.c.b16 %v4328, %v4321
    %v4931 = vpack.c.b16 %v4336, %v4329
    %v4932 = vpack.c.b16 %v4337, %v4330
    %v4933 = vpack.c.b16 %v4338, %v4331
    %v4934 = vpack.c.b16 %v4339, %v4332
    %v4935 = vpack.c.b16 %v4340, %v4333
    %v4936 = vpack.c.b16 %v4341, %v4334
    %v4937 = vpack.c.b16 %v4342, %v4335
    %v4938 = vpack.c.b16 %v4350, %v4343
    %v4939 = vpack.c.b16 %v4351, %v4344
    %v4940 = vpack.c.b16 %v4352, %v4345
    %v4941 = vpack.c.b16 %v4353, %v4346
    %v4942 = vpack.c.b16 %v4354, %v4347
    %v4943 = vpack.c.b16 %v4355, %v4348
    %v4944 = vpack.c.b16 %v4356, %v4349
    %v4945 = vpack.c.b16 %v4364, %v4357
    %v4946 = vpack.c.b16 %v4365, %v4358
    %v4947 = vpack.c.b16 %v4366, %v4359
    %v4948 = vpack.c.b16 %v4367, %v4360
    %v4949 = vpack.c.b16 %v4368, %v4361
    %v4950 = vpack.c.b16 %v4369, %v4362
    %v4951 = vpack.c.b16 %v4370, %v4363
    %v4952 = vpack.c.b16 %v4378, %v4371
    %v4953 = vpack.c.b16 %v4379, %v4372
    %v4954 = vpack.c.b16 %v4380, %v4373
    %v4955 = vpack.c.b16 %v4381, %v4374
    %v4956 = vpack.c.b16 %v4382, %v4375
    %v4957 = vpack.c.b16 %v4383, %v4376
    %v4958 = vpack.c.b16 %v4384, %v4377
    %v4959 = vpack.c.b16 %v4392, %v4385
    %v4960 = vpack.c.b16 %v4393, %v4386
    %v4961 = vpack.c.b16 %v4394, %v4387
    %v4962 = vpack.c.b16 %v4395, %v4388
    %v4963 = vpack.c.b16 %v4396, %v4389
    %v4964 = vpack.c.b16 %v4397, %v4390
    %v4965 = vpack.c.b16 %v4398, %v4391
    %v4966 = vpack.c.b16 %v4406, %v4399
    %v4967 = vpack.c.b16 %v4407, %v4400
    %v4968 = vpack.c.b16 %v4408, %v4401
    %v4969 = vpack.c.b16 %v4409, %v4402
    %v4970 = vpack.c.b16 %v4410, %v4403
    %v4971 = vpack.c.b16 %v4411, %v4404
    %v4972 = vpack.c.b16 %v4412, %v4405
    %v4973 = vpack.c.b16 %v4420, %v4413
    %v4974 = vpack.c.b16 %v4421, %v4414
    %v4975 = vpack.c.b16 %v4422, %v4415
    %v4976 = vpack.c.b16 %v4423, %v4416
    %v4977 = vpack.c.b16 %v4424, %v4417
    %v4978 = vpack.c.b16 %v4425, %v4418
    %v4979 = vpack.c.b16 %v4426, %v4419
    %v4980 = vpack.c.b16 %v4434, %v4427
    %v4981 = vpack.c.b16 %v4435, %v4428
    %v4982 = vpack.c.b16 %v4436, %v4429
    %v4983 = vpack.c.b16 %v4437, %v4430
    %v4984 = vpack.c.b16 %v4438, %v4431
    %v4985 = vpack.c.b16 %v4439, %v4432
    %v4986 = vpack.c.b16 %v4440, %v4433
    %v4987 = vpack.c.b16 %v4448, %v4441
    %v4988 = vpack.c.b16 %v4449, %v4442
    %v4989 = vpack.c.b16 %v4450, %v4443
    %v4990 = vpack.c.b16 %v4451, %v4444
    %v4991 = vpack.c.b16 %v4452, %v4445
    %v4992 = vpack.c.b16 %v4453, %v4446
    %v4993 = vpack.c.b16 %v4454, %v4447
    %v4994 = vpack.c.b16 %v4462, %v4455
    %v4995 = vpack.c.b16 %v4463, %v4456
    %v4996 = vpack.c.b16 %v4464, %v4457
    %v4997 = vpack.c.b16 %v4465, %v4458
    %v4998 = vpack.c.b16 %v4466, %v4459
    %v4999 = vpack.c.b16 %v4467, %v4460
    %v5000 = vpack.c.b16 %v4468, %v4461
    %v5001 = vpack.c.b16 %v4476, %v4469
    %v5002 = vpack.c.b16 %v4477, %v4470
    %v5003 = vpack.c.b16 %v4478, %v4471
    %v5004 = vpack.c.b16 %v4479, %v4472
    %v5005 = vpack.c.b16 %v4480, %v4473
    %v5006 = vpack.c.b16 %v4481, %v4474
    %v5007 = vpack.c.b16 %v4482, %v4475
    %v5008 = vpack.c.b16 %v4490, %v4483
    %v5009 = vpack.c.b16 %v4491, %v4484
    %v5010 = vpack.c.b16 %v4492, %v4485
    %v5011 = vpack.c.b16 %v4493, %v4486
    %v5012 = vpack.c.b16 %v4494, %v4487
    %v5013 = vpack.c.b16 %v4495, %v4488
    %v5014 = vpack.c.b16 %v4496, %v4489
    %v5015 = vpack.c.b16 %v4504, %v4497
    %v5016 = vpack.c.b16 %v4505, %v4498
    %v5017 = vpack.c.b16 %v4506, %v4499
    %v5018 = vpack.c.b16 %v4507, %v4500
    %v5019 = vpack.c.b16 %v4508, %v4501
    %v5020 = vpack.c.b16 %v4509, %v4502
    %v5021 = vpack.c.b16 %v4510, %v4503
    %v5022 = vpack.c.b16 %v4518, %v4511
    %v5023 = vpack.c.b16 %v4519, %v4512
    %v5024 = vpack.c.b16 %v4520, %v4513
    %v5025 = vpack.c.b16 %v4521, %v4514
    %v5026 = vpack.c.b16 %v4522, %v4515
    %v5027 = vpack.c.b16 %v4523, %v4516
    %v5028 = vpack.c.b16 %v4524, %v4517
    %v5029 = vpack.c.b16 %v4532, %v4525
    %v5030 = vpack.c.b16 %v4533, %v4526
    %v5031 = vpack.c.b16 %v4534, %v4527
    %v5032 = vpack.c.b16 %v4535, %v4528
    %v5033 = vpack.c.b16 %v4536, %v4529
    %v5034 = vpack.c.b16 %v4537, %v4530
    %v5035 = vpack.c.b16 %v4538, %v4531
    %v5036 = vpack.c.b16 %v4546, %v4539
    %v5037 = vpack.c.b16 %v4547, %v4540
    %v5038 = vpack.c.b16 %v4548, %v4541
    %v5039 = vpack.c.b16 %v4549, %v4542
    %v5040 = vpack.c.b16 %v4550, %v4543
    %v5041 = vpack.c.b16 %v4551, %v4544
    %v5042 = vpack.c.b16 %v4552, %v4545
    %v5043 = vpack.c.b16 %v4560, %v4553
    %v5044 = vpack.c.b16 %v4561, %v4554
    %v5045 = vpack.c.b16 %v4562, %v4555
    %v5046 = vpack.c.b16 %v4563, %v4556
    %v5047 = vpack.c.b16 %v4564, %v4557
    %v5048 = vpack.c.b16 %v4565, %v4558
    %v5049 = vpack.c.b16 %v4566, %v4559
    %v5050 = vpack.c.b16 %v4574, %v4567
    %v5051 = vpack.c.b16 %v4575, %v4568
    %v5052 = vpack.c.b16 %v4576, %v4569
    %v5053 = vpack.c.b16 %v4577, %v4570
    %v5054 = vpack.c.b16 %v4578, %v4571
    %v5055 = vpack.c.b16 %v4579, %v4572
    %v5056 = vpack.c.b16 %v4580, %v4573
    %v5057 = vpack.c.b16 %v4588, %v4581
    %v5058 = vpack.c.b16 %v4589, %v4582
    %v5059 = vpack.c.b16 %v4590, %v4583
    %v5060 = vpack.c.b16 %v4591, %v4584
    %v5061 = vpack.c.b16 %v4592, %v4585
    %v5062 = vpack.c.b16 %v4593, %v4586
    %v5063 = vpack.c.b16 %v4594, %v4587
    %v5064 = vpack.c.b16 %v4602, %v4595
    %v5065 = vpack.c.b16 %v4603, %v4596
    %v5066 = vpack.c.b16 %v4604, %v4597
    %v5067 = vpack.c.b16 %v4605, %v4598
    %v5068 = vpack.c.b16 %v4606, %v4599
    %v5069 = vpack.c.b16 %v4607, %v4600
    %v5070 = vpack.c.b16 %v4608, %v4601
    %v5071 = vpack.c.b16 %v4616, %v4609
    %v5072 = vpack.c.b16 %v4617, %v4610
    %v5073 = vpack.c.b16 %v4618, %v4611
    %v5074 = vpack.c.b16 %v4619, %v4612
    %v5075 = vpack.c.b16 %v4620, %v4613
    %v5076 = vpack.c.b16 %v4621, %v4614
    %v5077 = vpack.c.b16 %v4622, %v4615
    %v5078 = vpack.c.b16 %v4630, %v4623
    %v5079 = vpack.c.b16 %v4631, %v4624
    %v5080 = vpack.c.b16 %v4632, %v4625
    %v5081 = vpack.c.b16 %v4633, %v4626
    %v5082 = vpack.c.b16 %v4634, %v4627
    %v5083 = vpack.c.b16 %v4635, %v4628
    %v5084 = vpack.c.b16 %v4636, %v4629
    %5533 = vmatprep.subr.bf16.mxu0 %v4638
    %5534 = vmatpush1.bf16.msra.mxu0 %v4637
    %5535 = vmatprep.subr.bf16.mxu0 %v4645
    %5536 = vmatpush1.bf16.msra.mxu0 %v4644
    %5537 = vmatprep.subr.bf16.mxu0 %v4652
    %5538 = vmatpush1.bf16.msra.mxu0 %v4651
    %5539 = vmatprep.subr.bf16.mxu0 %v4659
    %5540 = vmatpush1.bf16.msra.mxu0 %v4658
    %5541 = vmatprep.subr.bf16.mxu0 %v4666
    %5542 = vmatpush1.bf16.msra.mxu0 %v4665
    %5543 = vmatprep.subr.bf16.mxu0 %v4673
    %5544 = vmatpush1.bf16.msra.mxu0 %v4672
    %5545 = vmatprep.subr.bf16.mxu0 %v4680
    %5546 = vmatpush1.bf16.msra.mxu0 %v4679
    %5547 = vmatprep.subr.bf16.mxu0 %v4687
    %5548 = vmatpush1.bf16.msra.mxu0 %v4686
    %5549 = vmatprep.subr.bf16.mxu0 %v4694
    %5550 = vmatpush1.bf16.msra.mxu0 %v4693
    %5551 = vmatprep.subr.bf16.mxu0 %v4701
    %5552 = vmatpush1.bf16.msra.mxu0 %v4700
    %5553 = vmatprep.subr.bf16.mxu0 %v4708
    %5554 = vmatpush1.bf16.msra.mxu0 %v4707
    %5555 = vmatprep.subr.bf16.mxu0 %v4715
    %5556 = vmatpush1.bf16.msra.mxu0 %v4714
    %5557 = vmatprep.subr.bf16.mxu0 %v4722
    %5558 = vmatpush1.bf16.msra.mxu0 %v4721
    %5559 = vmatprep.subr.bf16.mxu0 %v4729
    %5560 = vmatpush1.bf16.msra.mxu0 %v4728
    %5561 = vmatprep.subr.bf16.mxu0 %v4736
    %5562 = vmatpush1.bf16.msra.mxu0 %v4735
    %5563 = vmatprep.subr.bf16.mxu0 %v4743
    %5564 = vmatpush1.bf16.msra.mxu0 %v4742
    %5565 = vmatprep.mubr.bf16.mxu0 %v2673
    %5566 = vmatmul.mubr.bf16.gmra.mrb[0].mxu0 %v2672
    %v5567 = vpop.f32.mrb[0].mxu0
    %v5568 = vadd.f32 %v3197, %v5567
    %v5569 = vpop.f32.mrb[0].mxu0
    %v5570 = vadd.f32 %v3201, %v5569
    %v5571 = vpop.f32.mrb[0].mxu0
    %v5572 = vadd.f32 %v3197, %v5571
    %v5573 = vpop.f32.mrb[0].mxu0
    %v5574 = vadd.f32 %v3201, %v5573
    %5575 = vdwg.mxu0
    %5576 = vmatprep.subr.bf16.mxu0 %v4750
    %5577 = vmatpush1.bf16.msra.mxu0 %v4749
    %5578 = vmatprep.subr.bf16.mxu0 %v4757
    %5579 = vmatpush1.bf16.msra.mxu0 %v4756
    %5580 = vmatprep.subr.bf16.mxu0 %v4764
    %5581 = vmatpush1.bf16.msra.mxu0 %v4763
    %5582 = vmatprep.subr.bf16.mxu0 %v4771
    %5583 = vmatpush1.bf16.msra.mxu0 %v4770
    %5584 = vmatprep.subr.bf16.mxu0 %v4778
    %5585 = vmatpush1.bf16.msra.mxu0 %v4777
    %5586 = vmatprep.subr.bf16.mxu0 %v4785
    %5587 = vmatpush1.bf16.msra.mxu0 %v4784
    %5588 = vmatprep.subr.bf16.mxu0 %v4792
    %5589 = vmatpush1.bf16.msra.mxu0 %v4791
    %5590 = vmatprep.subr.bf16.mxu0 %v4799
    %5591 = vmatpush1.bf16.msra.mxu0 %v4798
    %5592 = vmatprep.subr.bf16.mxu0 %v4806
    %5593 = vmatpush1.bf16.msra.mxu0 %v4805
    %5594 = vmatprep.subr.bf16.mxu0 %v4813
    %5595 = vmatpush1.bf16.msra.mxu0 %v4812
    %5596 = vmatprep.subr.bf16.mxu0 %v4820
    %5597 = vmatpush1.bf16.msra.mxu0 %v4819
    %5598 = vmatprep.subr.bf16.mxu0 %v4827
    %5599 = vmatpush1.bf16.msra.mxu0 %v4826
    %5600 = vmatprep.subr.bf16.mxu0 %v4834
    %5601 = vmatpush1.bf16.msra.mxu0 %v4833
    %5602 = vmatprep.subr.bf16.mxu0 %v4841
    %5603 = vmatpush1.bf16.msra.mxu0 %v4840
    %5604 = vmatprep.subr.bf16.mxu0 %v4848
    %5605 = vmatpush1.bf16.msra.mxu0 %v4847
    %5606 = vmatprep.subr.bf16.mxu0 %v4855
    %5607 = vmatpush1.bf16.msra.mxu0 %v4854
    %5608 = vmatprep.mubr.bf16.mxu0 %v2675
    %5609 = vmatmul.mubr.bf16.gmra.mrb[0].mxu0 %v2674
    %v5610 = vpop.f32.mrb[0].mxu0
    %v5611 = vadd.f32 %v5568, %v5610
    %v5612 = vpop.f32.mrb[0].mxu0
    %v5613 = vadd.f32 %v5570, %v5612
    %v5614 = vpop.f32.mrb[0].mxu0
    %v5615 = vadd.f32 %v5572, %v5614
    %v5616 = vpop.f32.mrb[0].mxu0
    %v5617 = vadd.f32 %v5574, %v5616
    %5618 = vdwg.mxu0
    %5619 = vmatprep.subr.bf16.mxu0 %v4862
    %5620 = vmatpush1.bf16.msra.mxu0 %v4861
    %5621 = vmatprep.subr.bf16.mxu0 %v4869
    %5622 = vmatpush1.bf16.msra.mxu0 %v4868
    %5623 = vmatprep.subr.bf16.mxu0 %v4876
    %5624 = vmatpush1.bf16.msra.mxu0 %v4875
    %5625 = vmatprep.subr.bf16.mxu0 %v4883
    %5626 = vmatpush1.bf16.msra.mxu0 %v4882
    %5627 = vmatprep.subr.bf16.mxu0 %v4890
    %5628 = vmatpush1.bf16.msra.mxu0 %v4889
    %5629 = vmatprep.subr.bf16.mxu0 %v4897
    %5630 = vmatpush1.bf16.msra.mxu0 %v4896
    %5631 = vmatprep.subr.bf16.mxu0 %v4904
    %5632 = vmatpush1.bf16.msra.mxu0 %v4903
    %5633 = vmatprep.subr.bf16.mxu0 %v4911
    %5634 = vmatpush1.bf16.msra.mxu0 %v4910
    %5635 = vmatprep.subr.bf16.mxu0 %v4918
    %5636 = vmatpush1.bf16.msra.mxu0 %v4917
    %5637 = vmatprep.subr.bf16.mxu0 %v4925
    %5638 = vmatpush1.bf16.msra.mxu0 %v4924
    %5639 = vmatprep.subr.bf16.mxu0 %v4932
    %5640 = vmatpush1.bf16.msra.mxu0 %v4931
    %5641 = vmatprep.subr.bf16.mxu0 %v4939
    %5642 = vmatpush1.bf16.msra.mxu0 %v4938
    %5643 = vmatprep.subr.bf16.mxu0 %v4946
    %5644 = vmatpush1.bf16.msra.mxu0 %v4945
    %5645 = vmatprep.subr.bf16.mxu0 %v4953
    %5646 = vmatpush1.bf16.msra.mxu0 %v4952
    %5647 = vmatprep.subr.bf16.mxu0 %v4960
    %5648 = vmatpush1.bf16.msra.mxu0 %v4959
    %5649 = vmatprep.subr.bf16.mxu0 %v4967
    %5650 = vmatpush1.bf16.msra.mxu0 %v4966
    %5651 = vmatprep.mubr.bf16.mxu0 %v2677
    %5652 = vmatmul.mubr.bf16.gmra.mrb[0].mxu0 %v2676
    %v5653 = vpop.f32.mrb[0].mxu0
    %v5654 = vadd.f32 %v5611, %v5653
    %v5655 = vpop.f32.mrb[0].mxu0
    %v5656 = vadd.f32 %v5613, %v5655
    %v5657 = vpop.f32.mrb[0].mxu0
    %v5658 = vadd.f32 %v5615, %v5657
    %v5659 = vpop.f32.mrb[0].mxu0
    %v5660 = vadd.f32 %v5617, %v5659
    %5661 = vdwg.mxu0
    %5662 = vmatprep.subr.bf16.mxu0 %v4974
    %5663 = vmatpush1.bf16.msra.mxu0 %v4973
    %5664 = vmatprep.subr.bf16.mxu0 %v4981
    %5665 = vmatpush1.bf16.msra.mxu0 %v4980
    %5666 = vmatprep.subr.bf16.mxu0 %v4988
    %5667 = vmatpush1.bf16.msra.mxu0 %v4987
    %5668 = vmatprep.subr.bf16.mxu0 %v4995
    %5669 = vmatpush1.bf16.msra.mxu0 %v4994
    %5670 = vmatprep.subr.bf16.mxu0 %v5002
    %5671 = vmatpush1.bf16.msra.mxu0 %v5001
    %5672 = vmatprep.subr.bf16.mxu0 %v5009
    %5673 = vmatpush1.bf16.msra.mxu0 %v5008
    %5674 = vmatprep.subr.bf16.mxu0 %v5016
    %5675 = vmatpush1.bf16.msra.mxu0 %v5015
    %5676 = vmatprep.subr.bf16.mxu0 %v5023
    %5677 = vmatpush1.bf16.msra.mxu0 %v5022
    %5678 = vmatprep.subr.bf16.mxu0 %v5030
    %5679 = vmatpush1.bf16.msra.mxu0 %v5029
    %5680 = vmatprep.subr.bf16.mxu0 %v5037
    %5681 = vmatpush1.bf16.msra.mxu0 %v5036
    %5682 = vmatprep.subr.bf16.mxu0 %v5044
    %5683 = vmatpush1.bf16.msra.mxu0 %v5043
    %5684 = vmatprep.subr.bf16.mxu0 %v5051
    %5685 = vmatpush1.bf16.msra.mxu0 %v5050
    %5686 = vmatprep.subr.bf16.mxu0 %v5058
    %5687 = vmatpush1.bf16.msra.mxu0 %v5057
    %5688 = vmatprep.subr.bf16.mxu0 %v5065
    %5689 = vmatpush1.bf16.msra.mxu0 %v5064
    %5690 = vmatprep.subr.bf16.mxu0 %v5072
    %5691 = vmatpush1.bf16.msra.mxu0 %v5071
    %5692 = vmatprep.subr.bf16.mxu0 %v5079
    %5693 = vmatpush1.bf16.msra.mxu0 %v5078
    %5694 = vmatprep.mubr.bf16.mxu0 %v2679
    %5695 = vmatmul.mubr.bf16.gmra.mrb[0].mxu0 %v2678
    %v5696 = vpop.f32.mrb[0].mxu0
    %v5697 = vadd.f32 %v5654, %v5696
    %v5698 = vpop.f32.mrb[0].mxu0
    %v5699 = vadd.f32 %v5656, %v5698
    %v5700 = vpop.f32.mrb[0].mxu0
    %v5701 = vadd.f32 %v5658, %v5700
    %v5702 = vpop.f32.mrb[0].mxu0
    %v5703 = vadd.f32 %v5660, %v5702
    %5704 = vdwg.mxu0
    %5705 = vmatprep.subr.bf16.mxu0 %v4640
    %5706 = vmatpush1.bf16.msra.mxu0 %v4639
    %5707 = vmatprep.subr.bf16.mxu0 %v4647
    %5708 = vmatpush1.bf16.msra.mxu0 %v4646
    %5709 = vmatprep.subr.bf16.mxu0 %v4654
    %5710 = vmatpush1.bf16.msra.mxu0 %v4653
    %5711 = vmatprep.subr.bf16.mxu0 %v4661
    %5712 = vmatpush1.bf16.msra.mxu0 %v4660
    %5713 = vmatprep.subr.bf16.mxu0 %v4668
    %5714 = vmatpush1.bf16.msra.mxu0 %v4667
    %5715 = vmatprep.subr.bf16.mxu0 %v4675
    %5716 = vmatpush1.bf16.msra.mxu0 %v4674
    %5717 = vmatprep.subr.bf16.mxu0 %v4682
    %5718 = vmatpush1.bf16.msra.mxu0 %v4681
    %5719 = vmatprep.subr.bf16.mxu0 %v4689
    %5720 = vmatpush1.bf16.msra.mxu0 %v4688
    %5721 = vmatprep.subr.bf16.mxu0 %v4696
    %5722 = vmatpush1.bf16.msra.mxu0 %v4695
    %5723 = vmatprep.subr.bf16.mxu0 %v4703
    %5724 = vmatpush1.bf16.msra.mxu0 %v4702
    %5725 = vmatprep.subr.bf16.mxu0 %v4710
    %5726 = vmatpush1.bf16.msra.mxu0 %v4709
    %5727 = vmatprep.subr.bf16.mxu0 %v4717
    %5728 = vmatpush1.bf16.msra.mxu0 %v4716
    %5729 = vmatprep.subr.bf16.mxu0 %v4724
    %5730 = vmatpush1.bf16.msra.mxu0 %v4723
    %5731 = vmatprep.subr.bf16.mxu0 %v4731
    %5732 = vmatpush1.bf16.msra.mxu0 %v4730
    %5733 = vmatprep.subr.bf16.mxu0 %v4738
    %5734 = vmatpush1.bf16.msra.mxu0 %v4737
    %5735 = vmatprep.subr.bf16.mxu0 %v4745
    %5736 = vmatpush1.bf16.msra.mxu0 %v4744
    %5737 = vmatprep.mubr.bf16.mxu0 %v2673
    %5738 = vmatmul.mubr.bf16.gmra.mrb[0].mxu0 %v2672
    %v5739 = vpop.f32.mrb[0].mxu0
    %v5740 = vadd.f32 %v3205, %v5739
    %v5741 = vpop.f32.mrb[0].mxu0
    %v5742 = vadd.f32 %v3209, %v5741
    %v5743 = vpop.f32.mrb[0].mxu0
    %v5744 = vadd.f32 %v3205, %v5743
    %v5745 = vpop.f32.mrb[0].mxu0
    %v5746 = vadd.f32 %v3209, %v5745
    %5747 = vdwg.mxu0
    %5748 = vmatprep.subr.bf16.mxu0 %v4752
    %5749 = vmatpush1.bf16.msra.mxu0 %v4751
    %5750 = vmatprep.subr.bf16.mxu0 %v4759
    %5751 = vmatpush1.bf16.msra.mxu0 %v4758
    %5752 = vmatprep.subr.bf16.mxu0 %v4766
    %5753 = vmatpush1.bf16.msra.mxu0 %v4765
    %5754 = vmatprep.subr.bf16.mxu0 %v4773
    %5755 = vmatpush1.bf16.msra.mxu0 %v4772
    %5756 = vmatprep.subr.bf16.mxu0 %v4780
    %5757 = vmatpush1.bf16.msra.mxu0 %v4779
    %5758 = vmatprep.subr.bf16.mxu0 %v4787
    %5759 = vmatpush1.bf16.msra.mxu0 %v4786
    %5760 = vmatprep.subr.bf16.mxu0 %v4794
    %5761 = vmatpush1.bf16.msra.mxu0 %v4793
    %5762 = vmatprep.subr.bf16.mxu0 %v4801
    %5763 = vmatpush1.bf16.msra.mxu0 %v4800
    %5764 = vmatprep.subr.bf16.mxu0 %v4808
    %5765 = vmatpush1.bf16.msra.mxu0 %v4807
    %5766 = vmatprep.subr.bf16.mxu0 %v4815
    %5767 = vmatpush1.bf16.msra.mxu0 %v4814
    %5768 = vmatprep.subr.bf16.mxu0 %v4822
    %5769 = vmatpush1.bf16.msra.mxu0 %v4821
    %5770 = vmatprep.subr.bf16.mxu0 %v4829
    %5771 = vmatpush1.bf16.msra.mxu0 %v4828
    %5772 = vmatprep.subr.bf16.mxu0 %v4836
    %5773 = vmatpush1.bf16.msra.mxu0 %v4835
    %5774 = vmatprep.subr.bf16.mxu0 %v4843
    %5775 = vmatpush1.bf16.msra.mxu0 %v4842
    %5776 = vmatprep.subr.bf16.mxu0 %v4850
    %5777 = vmatpush1.bf16.msra.mxu0 %v4849
    %5778 = vmatprep.subr.bf16.mxu0 %v4857
    %5779 = vmatpush1.bf16.msra.mxu0 %v4856
    %5780 = vmatprep.mubr.bf16.mxu0 %v2675
    %5781 = vmatmul.mubr.bf16.gmra.mrb[0].mxu0 %v2674
    %v5782 = vpop.f32.mrb[0].mxu0
    %v5783 = vadd.f32 %v5740, %v5782
    %v5784 = vpop.f32.mrb[0].mxu0
    %v5785 = vadd.f32 %v5742, %v5784
    %v5786 = vpop.f32.mrb[0].mxu0
    %v5787 = vadd.f32 %v5744, %v5786
    %v5788 = vpop.f32.mrb[0].mxu0
    %v5789 = vadd.f32 %v5746, %v5788
    %5790 = vdwg.mxu0
    %5791 = vmatprep.subr.bf16.mxu0 %v4864
    %5792 = vmatpush1.bf16.msra.mxu0 %v4863
    %5793 = vmatprep.subr.bf16.mxu0 %v4871
    %5794 = vmatpush1.bf16.msra.mxu0 %v4870
    %5795 = vmatprep.subr.bf16.mxu0 %v4878
    %5796 = vmatpush1.bf16.msra.mxu0 %v4877
    %5797 = vmatprep.subr.bf16.mxu0 %v4885
    %5798 = vmatpush1.bf16.msra.mxu0 %v4884
    %5799 = vmatprep.subr.bf16.mxu0 %v4892
    %5800 = vmatpush1.bf16.msra.mxu0 %v4891
    %5801 = vmatprep.subr.bf16.mxu0 %v4899
    %5802 = vmatpush1.bf16.msra.mxu0 %v4898
    %5803 = vmatprep.subr.bf16.mxu0 %v4906
    %5804 = vmatpush1.bf16.msra.mxu0 %v4905
    %5805 = vmatprep.subr.bf16.mxu0 %v4913
    %5806 = vmatpush1.bf16.msra.mxu0 %v4912
    %5807 = vmatprep.subr.bf16.mxu0 %v4920
    %5808 = vmatpush1.bf16.msra.mxu0 %v4919
    %5809 = vmatprep.subr.bf16.mxu0 %v4927
    %5810 = vmatpush1.bf16.msra.mxu0 %v4926
    %5811 = vmatprep.subr.bf16.mxu0 %v4934
    %5812 = vmatpush1.bf16.msra.mxu0 %v4933
    %5813 = vmatprep.subr.bf16.mxu0 %v4941
    %5814 = vmatpush1.bf16.msra.mxu0 %v4940
    %5815 = vmatprep.subr.bf16.mxu0 %v4948
    %5816 = vmatpush1.bf16.msra.mxu0 %v4947
    %5817 = vmatprep.subr.bf16.mxu0 %v4955
    %5818 = vmatpush1.bf16.msra.mxu0 %v4954
    %5819 = vmatprep.subr.bf16.mxu0 %v4962
    %5820 = vmatpush1.bf16.msra.mxu0 %v4961
    %5821 = vmatprep.subr.bf16.mxu0 %v4969
    %5822 = vmatpush1.bf16.msra.mxu0 %v4968
    %5823 = vmatprep.mubr.bf16.mxu0 %v2677
    %5824 = vmatmul.mubr.bf16.gmra.mrb[0].mxu0 %v2676
    %v5825 = vpop.f32.mrb[0].mxu0
    %v5826 = vadd.f32 %v5783, %v5825
    %v5827 = vpop.f32.mrb[0].mxu0
    %v5828 = vadd.f32 %v5785, %v5827
    %v5829 = vpop.f32.mrb[0].mxu0
    %v5830 = vadd.f32 %v5787, %v5829
    %v5831 = vpop.f32.mrb[0].mxu0
    %v5832 = vadd.f32 %v5789, %v5831
    %5833 = vdwg.mxu0
    %5834 = vmatprep.subr.bf16.mxu0 %v4976
    %5835 = vmatpush1.bf16.msra.mxu0 %v4975
    %5836 = vmatprep.subr.bf16.mxu0 %v4983
    %5837 = vmatpush1.bf16.msra.mxu0 %v4982
    %5838 = vmatprep.subr.bf16.mxu0 %v4990
    %5839 = vmatpush1.bf16.msra.mxu0 %v4989
    %5840 = vmatprep.subr.bf16.mxu0 %v4997
    %5841 = vmatpush1.bf16.msra.mxu0 %v4996
    %5842 = vmatprep.subr.bf16.mxu0 %v5004
    %5843 = vmatpush1.bf16.msra.mxu0 %v5003
    %5844 = vmatprep.subr.bf16.mxu0 %v5011
    %5845 = vmatpush1.bf16.msra.mxu0 %v5010
    %5846 = vmatprep.subr.bf16.mxu0 %v5018
    %5847 = vmatpush1.bf16.msra.mxu0 %v5017
    %5848 = vmatprep.subr.bf16.mxu0 %v5025
    %5849 = vmatpush1.bf16.msra.mxu0 %v5024
    %5850 = vmatprep.subr.bf16.mxu0 %v5032
    %5851 = vmatpush1.bf16.msra.mxu0 %v5031
    %5852 = vmatprep.subr.bf16.mxu0 %v5039
    %5853 = vmatpush1.bf16.msra.mxu0 %v5038
    %5854 = vmatprep.subr.bf16.mxu0 %v5046
    %5855 = vmatpush1.bf16.msra.mxu0 %v5045
    %5856 = vmatprep.subr.bf16.mxu0 %v5053
    %5857 = vmatpush1.bf16.msra.mxu0 %v5052
    %5858 = vmatprep.subr.bf16.mxu0 %v5060
    %5859 = vmatpush1.bf16.msra.mxu0 %v5059
    %5860 = vmatprep.subr.bf16.mxu0 %v5067
    %5861 = vmatpush1.bf16.msra.mxu0 %v5066
    %5862 = vmatprep.subr.bf16.mxu0 %v5074
    %5863 = vmatpush1.bf16.msra.mxu0 %v5073
    %5864 = vmatprep.subr.bf16.mxu0 %v5081
    %5865 = vmatpush1.bf16.msra.mxu0 %v5080
    %5866 = vmatprep.mubr.bf16.mxu0 %v2679
    %5867 = vmatmul.mubr.bf16.gmra.mrb[0].mxu0 %v2678
    %v5868 = vpop.f32.mrb[0].mxu0
    %v5869 = vadd.f32 %v5826, %v5868
    %v5870 = vpop.f32.mrb[0].mxu0
    %v5871 = vadd.f32 %v5828, %v5870
    %v5872 = vpop.f32.mrb[0].mxu0
    %v5873 = vadd.f32 %v5830, %v5872
    %v5874 = vpop.f32.mrb[0].mxu0
    %v5875 = vadd.f32 %v5832, %v5874
    %5876 = vdwg.mxu0
    %5877 = vmatprep.subr.bf16.mxu0 %v4642
    %5878 = vmatpush1.bf16.msra.mxu0 %v4641
    %5879 = vmatprep.subr.bf16.mxu0 %v4649
    %5880 = vmatpush1.bf16.msra.mxu0 %v4648
    %5881 = vmatprep.subr.bf16.mxu0 %v4656
    %5882 = vmatpush1.bf16.msra.mxu0 %v4655
    %5883 = vmatprep.subr.bf16.mxu0 %v4663
    %5884 = vmatpush1.bf16.msra.mxu0 %v4662
    %5885 = vmatprep.subr.bf16.mxu0 %v4670
    %5886 = vmatpush1.bf16.msra.mxu0 %v4669
    %5887 = vmatprep.subr.bf16.mxu0 %v4677
    %5888 = vmatpush1.bf16.msra.mxu0 %v4676
    %5889 = vmatprep.subr.bf16.mxu0 %v4684
    %5890 = vmatpush1.bf16.msra.mxu0 %v4683
    %5891 = vmatprep.subr.bf16.mxu0 %v4691
    %5892 = vmatpush1.bf16.msra.mxu0 %v4690
    %5893 = vmatprep.subr.bf16.mxu0 %v4698
    %5894 = vmatpush1.bf16.msra.mxu0 %v4697
    %5895 = vmatprep.subr.bf16.mxu0 %v4705
    %5896 = vmatpush1.bf16.msra.mxu0 %v4704
    %5897 = vmatprep.subr.bf16.mxu0 %v4712
    %5898 = vmatpush1.bf16.msra.mxu0 %v4711
    %5899 = vmatprep.subr.bf16.mxu0 %v4719
    %5900 = vmatpush1.bf16.msra.mxu0 %v4718
    %5901 = vmatprep.subr.bf16.mxu0 %v4726
    %5902 = vmatpush1.bf16.msra.mxu0 %v4725
    %5903 = vmatprep.subr.bf16.mxu0 %v4733
    %5904 = vmatpush1.bf16.msra.mxu0 %v4732
    %5905 = vmatprep.subr.bf16.mxu0 %v4740
    %5906 = vmatpush1.bf16.msra.mxu0 %v4739
    %5907 = vmatprep.subr.bf16.mxu0 %v4747
    %5908 = vmatpush1.bf16.msra.mxu0 %v4746
    %5909 = vmatprep.mubr.bf16.mxu0 %v2673
    %5910 = vmatmul.mubr.bf16.gmra.mrb[0].mxu0 %v2672
    %v5911 = vpop.f32.mrb[0].mxu0
    %v5912 = vadd.f32 %v3213, %v5911
    %v5913 = vpop.f32.mrb[0].mxu0
    %v5914 = vadd.f32 %v3217, %v5913
    %v5915 = vpop.f32.mrb[0].mxu0
    %v5916 = vadd.f32 %v3213, %v5915
    %v5917 = vpop.f32.mrb[0].mxu0
    %v5918 = vadd.f32 %v3217, %v5917
    %5919 = vdwg.mxu0
    %5920 = vmatprep.subr.bf16.mxu0 %v4754
    %5921 = vmatpush1.bf16.msra.mxu0 %v4753
    %5922 = vmatprep.subr.bf16.mxu0 %v4761
    %5923 = vmatpush1.bf16.msra.mxu0 %v4760
    %5924 = vmatprep.subr.bf16.mxu0 %v4768
    %5925 = vmatpush1.bf16.msra.mxu0 %v4767
    %5926 = vmatprep.subr.bf16.mxu0 %v4775
    %5927 = vmatpush1.bf16.msra.mxu0 %v4774
    %5928 = vmatprep.subr.bf16.mxu0 %v4782
    %5929 = vmatpush1.bf16.msra.mxu0 %v4781
    %5930 = vmatprep.subr.bf16.mxu0 %v4789
    %5931 = vmatpush1.bf16.msra.mxu0 %v4788
    %5932 = vmatprep.subr.bf16.mxu0 %v4796
    %5933 = vmatpush1.bf16.msra.mxu0 %v4795
    %5934 = vmatprep.subr.bf16.mxu0 %v4803
    %5935 = vmatpush1.bf16.msra.mxu0 %v4802
    %5936 = vmatprep.subr.bf16.mxu0 %v4810
    %5937 = vmatpush1.bf16.msra.mxu0 %v4809
    %5938 = vmatprep.subr.bf16.mxu0 %v4817
    %5939 = vmatpush1.bf16.msra.mxu0 %v4816
    %5940 = vmatprep.subr.bf16.mxu0 %v4824
    %5941 = vmatpush1.bf16.msra.mxu0 %v4823
    %5942 = vmatprep.subr.bf16.mxu0 %v4831
    %5943 = vmatpush1.bf16.msra.mxu0 %v4830
    %5944 = vmatprep.subr.bf16.mxu0 %v4838
    %5945 = vmatpush1.bf16.msra.mxu0 %v4837
    %5946 = vmatprep.subr.bf16.mxu0 %v4845
    %5947 = vmatpush1.bf16.msra.mxu0 %v4844
    %5948 = vmatprep.subr.bf16.mxu0 %v4852
    %5949 = vmatpush1.bf16.msra.mxu0 %v4851
    %5950 = vmatprep.subr.bf16.mxu0 %v4859
    %5951 = vmatpush1.bf16.msra.mxu0 %v4858
    %5952 = vmatprep.mubr.bf16.mxu0 %v2675
    %5953 = vmatmul.mubr.bf16.gmra.mrb[0].mxu0 %v2674
    %v5954 = vpop.f32.mrb[0].mxu0
    %v5955 = vadd.f32 %v5912, %v5954
    %v5956 = vpop.f32.mrb[0].mxu0
    %v5957 = vadd.f32 %v5914, %v5956
    %v5958 = vpop.f32.mrb[0].mxu0
    %v5959 = vadd.f32 %v5916, %v5958
    %v5960 = vpop.f32.mrb[0].mxu0
    %v5961 = vadd.f32 %v5918, %v5960
    %5962 = vdwg.mxu0
    %5963 = vmatprep.subr.bf16.mxu0 %v4866
    %5964 = vmatpush1.bf16.msra.mxu0 %v4865
    %5965 = vmatprep.subr.bf16.mxu0 %v4873
    %5966 = vmatpush1.bf16.msra.mxu0 %v4872
    %5967 = vmatprep.subr.bf16.mxu0 %v4880
    %5968 = vmatpush1.bf16.msra.mxu0 %v4879
    %5969 = vmatprep.subr.bf16.mxu0 %v4887
    %5970 = vmatpush1.bf16.msra.mxu0 %v4886
    %5971 = vmatprep.subr.bf16.mxu0 %v4894
    %5972 = vmatpush1.bf16.msra.mxu0 %v4893
    %5973 = vmatprep.subr.bf16.mxu0 %v4901
    %5974 = vmatpush1.bf16.msra.mxu0 %v4900
    %5975 = vmatprep.subr.bf16.mxu0 %v4908
    %5976 = vmatpush1.bf16.msra.mxu0 %v4907
    %5977 = vmatprep.subr.bf16.mxu0 %v4915
    %5978 = vmatpush1.bf16.msra.mxu0 %v4914
    %5979 = vmatprep.subr.bf16.mxu0 %v4922
    %5980 = vmatpush1.bf16.msra.mxu0 %v4921
    %5981 = vmatprep.subr.bf16.mxu0 %v4929
    %5982 = vmatpush1.bf16.msra.mxu0 %v4928
    %5983 = vmatprep.subr.bf16.mxu0 %v4936
    %5984 = vmatpush1.bf16.msra.mxu0 %v4935
    %5985 = vmatprep.subr.bf16.mxu0 %v4943
    %5986 = vmatpush1.bf16.msra.mxu0 %v4942
    %5987 = vmatprep.subr.bf16.mxu0 %v4950
    %5988 = vmatpush1.bf16.msra.mxu0 %v4949
    %5989 = vmatprep.subr.bf16.mxu0 %v4957
    %5990 = vmatpush1.bf16.msra.mxu0 %v4956
    %5991 = vmatprep.subr.bf16.mxu0 %v4964
    %5992 = vmatpush1.bf16.msra.mxu0 %v4963
    %5993 = vmatprep.subr.bf16.mxu0 %v4971
    %5994 = vmatpush1.bf16.msra.mxu0 %v4970
    %5995 = vmatprep.mubr.bf16.mxu0 %v2677
    %5996 = vmatmul.mubr.bf16.gmra.mrb[0].mxu0 %v2676
    %v5997 = vpop.f32.mrb[0].mxu0
    %v5998 = vadd.f32 %v5955, %v5997
    %v5999 = vpop.f32.mrb[0].mxu0
    %v6000 = vadd.f32 %v5957, %v5999
    %v6001 = vpop.f32.mrb[0].mxu0
    %v6002 = vadd.f32 %v5959, %v6001
    %v6003 = vpop.f32.mrb[0].mxu0
    %v6004 = vadd.f32 %v5961, %v6003
    %6005 = vdwg.mxu0
    %6006 = vmatprep.subr.bf16.mxu0 %v4978
    %6007 = vmatpush1.bf16.msra.mxu0 %v4977
    %6008 = vmatprep.subr.bf16.mxu0 %v4985
    %6009 = vmatpush1.bf16.msra.mxu0 %v4984
    %6010 = vmatprep.subr.bf16.mxu0 %v4992
    %6011 = vmatpush1.bf16.msra.mxu0 %v4991
    %6012 = vmatprep.subr.bf16.mxu0 %v4999
    %6013 = vmatpush1.bf16.msra.mxu0 %v4998
    %6014 = vmatprep.subr.bf16.mxu0 %v5006
    %6015 = vmatpush1.bf16.msra.mxu0 %v5005
    %6016 = vmatprep.subr.bf16.mxu0 %v5013
    %6017 = vmatpush1.bf16.msra.mxu0 %v5012
    %6018 = vmatprep.subr.bf16.mxu0 %v5020
    %6019 = vmatpush1.bf16.msra.mxu0 %v5019
    %6020 = vmatprep.subr.bf16.mxu0 %v5027
    %6021 = vmatpush1.bf16.msra.mxu0 %v5026
    %6022 = vmatprep.subr.bf16.mxu0 %v5034
    %6023 = vmatpush1.bf16.msra.mxu0 %v5033
    %6024 = vmatprep.subr.bf16.mxu0 %v5041
    %6025 = vmatpush1.bf16.msra.mxu0 %v5040
    %6026 = vmatprep.subr.bf16.mxu0 %v5048
    %6027 = vmatpush1.bf16.msra.mxu0 %v5047
    %6028 = vmatprep.subr.bf16.mxu0 %v5055
    %6029 = vmatpush1.bf16.msra.mxu0 %v5054
    %6030 = vmatprep.subr.bf16.mxu0 %v5062
    %6031 = vmatpush1.bf16.msra.mxu0 %v5061
    %6032 = vmatprep.subr.bf16.mxu0 %v5069
    %6033 = vmatpush1.bf16.msra.mxu0 %v5068
    %6034 = vmatprep.subr.bf16.mxu0 %v5076
    %6035 = vmatpush1.bf16.msra.mxu0 %v5075
    %6036 = vmatprep.subr.bf16.mxu0 %v5083
    %6037 = vmatpush1.bf16.msra.mxu0 %v5082
    %6038 = vmatprep.mubr.bf16.mxu0 %v2679
    %6039 = vmatmul.mubr.bf16.gmra.mrb[0].mxu0 %v2678
    %v6040 = vpop.f32.mrb[0].mxu0
    %v6041 = vadd.f32 %v5998, %v6040
    %v6042 = vpop.f32.mrb[0].mxu0
    %v6043 = vadd.f32 %v6000, %v6042
    %v6044 = vpop.f32.mrb[0].mxu0
    %v6045 = vadd.f32 %v6002, %v6044
    %v6046 = vpop.f32.mrb[0].mxu0
    %v6047 = vadd.f32 %v6004, %v6046
    %6048 = vdwg.mxu0
    %6049 = vmatprep.subr.bf16.mxu0 0
    %6050 = vmatpush1.bf16.msra.mxu0 %v4643
    %6051 = vmatprep.subr.bf16.mxu0 0
    %6052 = vmatpush1.bf16.msra.mxu0 %v4650
    %6053 = vmatprep.subr.bf16.mxu0 0
    %6054 = vmatpush1.bf16.msra.mxu0 %v4657
    %6055 = vmatprep.subr.bf16.mxu0 0
    %6056 = vmatpush1.bf16.msra.mxu0 %v4664
    %6057 = vmatprep.subr.bf16.mxu0 0
    %6058 = vmatpush1.bf16.msra.mxu0 %v4671
    %6059 = vmatprep.subr.bf16.mxu0 0
    %6060 = vmatpush1.bf16.msra.mxu0 %v4678
    %6061 = vmatprep.subr.bf16.mxu0 0
    %6062 = vmatpush1.bf16.msra.mxu0 %v4685
    %6063 = vmatprep.subr.bf16.mxu0 0
    %6064 = vmatpush1.bf16.msra.mxu0 %v4692
    %6065 = vmatprep.subr.bf16.mxu0 0
    %6066 = vmatpush1.bf16.msra.mxu0 %v4699
    %6067 = vmatprep.subr.bf16.mxu0 0
    %6068 = vmatpush1.bf16.msra.mxu0 %v4706
    %6069 = vmatprep.subr.bf16.mxu0 0
    %6070 = vmatpush1.bf16.msra.mxu0 %v4713
    %6071 = vmatprep.subr.bf16.mxu0 0
    %6072 = vmatpush1.bf16.msra.mxu0 %v4720
    %6073 = vmatprep.subr.bf16.mxu0 0
    %6074 = vmatpush1.bf16.msra.mxu0 %v4727
    %6075 = vmatprep.subr.bf16.mxu0 0
    %6076 = vmatpush1.bf16.msra.mxu0 %v4734
    %6077 = vmatprep.subr.bf16.mxu0 0
    %6078 = vmatpush1.bf16.msra.mxu0 %v4741
    %6079 = vmatprep.subr.bf16.mxu0 0
    %6080 = vmatpush1.bf16.msra.mxu0 %v4748
    %6081 = vmatprep.mubr.bf16.mxu0 %v2673
    %6082 = vmatmul.mubr.bf16.gmra.mrb[0].mxu0 %v2672
    %v6083 = vpop.f32.mrb[0].mxu0
    %v6084 = vadd.f32 %v3221, %v6083
    %v6085 = vpop.f32.mrb[0].mxu0
    %v6086 = vpop.f32.mrb[0].mxu0
    %v6087 = vadd.f32 %v3221, %v6086
    %v6088 = vpop.f32.mrb[0].mxu0
    %6089 = vdwg.mxu0
    %6090 = vmatprep.subr.bf16.mxu0 0
    %6091 = vmatpush1.bf16.msra.mxu0 %v4755
    %6092 = vmatprep.subr.bf16.mxu0 0
    %6093 = vmatpush1.bf16.msra.mxu0 %v4762
    %6094 = vmatprep.subr.bf16.mxu0 0
    %6095 = vmatpush1.bf16.msra.mxu0 %v4769
    %6096 = vmatprep.subr.bf16.mxu0 0
    %6097 = vmatpush1.bf16.msra.mxu0 %v4776
    %6098 = vmatprep.subr.bf16.mxu0 0
    %6099 = vmatpush1.bf16.msra.mxu0 %v4783
    %6100 = vmatprep.subr.bf16.mxu0 0
    %6101 = vmatpush1.bf16.msra.mxu0 %v4790
    %6102 = vmatprep.subr.bf16.mxu0 0
    %6103 = vmatpush1.bf16.msra.mxu0 %v4797
    %6104 = vmatprep.subr.bf16.mxu0 0
    %6105 = vmatpush1.bf16.msra.mxu0 %v4804
    %6106 = vmatprep.subr.bf16.mxu0 0
    %6107 = vmatpush1.bf16.msra.mxu0 %v4811
    %6108 = vmatprep.subr.bf16.mxu0 0
    %6109 = vmatpush1.bf16.msra.mxu0 %v4818
    %6110 = vmatprep.subr.bf16.mxu0 0
    %6111 = vmatpush1.bf16.msra.mxu0 %v4825
    %6112 = vmatprep.subr.bf16.mxu0 0
    %6113 = vmatpush1.bf16.msra.mxu0 %v4832
    %6114 = vmatprep.subr.bf16.mxu0 0
    %6115 = vmatpush1.bf16.msra.mxu0 %v4839
    %6116 = vmatprep.subr.bf16.mxu0 0
    %6117 = vmatpush1.bf16.msra.mxu0 %v4846
    %6118 = vmatprep.subr.bf16.mxu0 0
    %6119 = vmatpush1.bf16.msra.mxu0 %v4853
    %6120 = vmatprep.subr.bf16.mxu0 0
    %6121 = vmatpush1.bf16.msra.mxu0 %v4860
    %6122 = vmatprep.mubr.bf16.mxu0 %v2675
    %6123 = vmatmul.mubr.bf16.gmra.mrb[0].mxu0 %v2674
    %v6124 = vpop.f32.mrb[0].mxu0
    %v6125 = vadd.f32 %v6084, %v6124
    %v6126 = vpop.f32.mrb[0].mxu0
    %v6127 = vpop.f32.mrb[0].mxu0
    %v6128 = vadd.f32 %v6087, %v6127
    %v6129 = vpop.f32.mrb[0].mxu0
    %6130 = vdwg.mxu0
    %6131 = vmatprep.subr.bf16.mxu0 0
    %6132 = vmatpush1.bf16.msra.mxu0 %v4867
    %6133 = vmatprep.subr.bf16.mxu0 0
    %6134 = vmatpush1.bf16.msra.mxu0 %v4874
    %6135 = vmatprep.subr.bf16.mxu0 0
    %6136 = vmatpush1.bf16.msra.mxu0 %v4881
    %6137 = vmatprep.subr.bf16.mxu0 0
    %6138 = vmatpush1.bf16.msra.mxu0 %v4888
    %6139 = vmatprep.subr.bf16.mxu0 0
    %6140 = vmatpush1.bf16.msra.mxu0 %v4895
    %6141 = vmatprep.subr.bf16.mxu0 0
    %6142 = vmatpush1.bf16.msra.mxu0 %v4902
    %6143 = vmatprep.subr.bf16.mxu0 0
    %6144 = vmatpush1.bf16.msra.mxu0 %v4909
    %6145 = vmatprep.subr.bf16.mxu0 0
    %6146 = vmatpush1.bf16.msra.mxu0 %v4916
    %6147 = vmatprep.subr.bf16.mxu0 0
    %6148 = vmatpush1.bf16.msra.mxu0 %v4923
    %6149 = vmatprep.subr.bf16.mxu0 0
    %6150 = vmatpush1.bf16.msra.mxu0 %v4930
    %6151 = vmatprep.subr.bf16.mxu0 0
    %6152 = vmatpush1.bf16.msra.mxu0 %v4937
    %6153 = vmatprep.subr.bf16.mxu0 0
    %6154 = vmatpush1.bf16.msra.mxu0 %v4944
    %6155 = vmatprep.subr.bf16.mxu0 0
    %6156 = vmatpush1.bf16.msra.mxu0 %v4951
    %6157 = vmatprep.subr.bf16.mxu0 0
    %6158 = vmatpush1.bf16.msra.mxu0 %v4958
    %6159 = vmatprep.subr.bf16.mxu0 0
    %6160 = vmatpush1.bf16.msra.mxu0 %v4965
    %6161 = vmatprep.subr.bf16.mxu0 0
    %6162 = vmatpush1.bf16.msra.mxu0 %v4972
    %6163 = vmatprep.mubr.bf16.mxu0 %v2677
    %6164 = vmatmul.mubr.bf16.gmra.mrb[0].mxu0 %v2676
    %v6165 = vpop.f32.mrb[0].mxu0
    %v6166 = vadd.f32 %v6125, %v6165
    %v6167 = vpop.f32.mrb[0].mxu0
    %v6168 = vpop.f32.mrb[0].mxu0
    %v6169 = vadd.f32 %v6128, %v6168
    %v6170 = vpop.f32.mrb[0].mxu0
    %6171 = vdwg.mxu0
    %6172 = vmatprep.subr.bf16.mxu0 0
    %6173 = vmatpush1.bf16.msra.mxu0 %v4979
    %6174 = vmatprep.subr.bf16.mxu0 0
    %6175 = vmatpush1.bf16.msra.mxu0 %v4986
    %6176 = vmatprep.subr.bf16.mxu0 0
    %6177 = vmatpush1.bf16.msra.mxu0 %v4993
    %6178 = vmatprep.subr.bf16.mxu0 0
    %6179 = vmatpush1.bf16.msra.mxu0 %v5000
    %6180 = vmatprep.subr.bf16.mxu0 0
    %6181 = vmatpush1.bf16.msra.mxu0 %v5007
    %6182 = vmatprep.subr.bf16.mxu0 0
    %6183 = vmatpush1.bf16.msra.mxu0 %v5014
    %6184 = vmatprep.subr.bf16.mxu0 0
    %6185 = vmatpush1.bf16.msra.mxu0 %v5021
    %6186 = vmatprep.subr.bf16.mxu0 0
    %6187 = vmatpush1.bf16.msra.mxu0 %v5028
    %6188 = vmatprep.subr.bf16.mxu0 0
    %6189 = vmatpush1.bf16.msra.mxu0 %v5035
    %6190 = vmatprep.subr.bf16.mxu0 0
    %6191 = vmatpush1.bf16.msra.mxu0 %v5042
    %6192 = vmatprep.subr.bf16.mxu0 0
    %6193 = vmatpush1.bf16.msra.mxu0 %v5049
    %6194 = vmatprep.subr.bf16.mxu0 0
    %6195 = vmatpush1.bf16.msra.mxu0 %v5056
    %6196 = vmatprep.subr.bf16.mxu0 0
    %6197 = vmatpush1.bf16.msra.mxu0 %v5063
    %6198 = vmatprep.subr.bf16.mxu0 0
    %6199 = vmatpush1.bf16.msra.mxu0 %v5070
    %6200 = vmatprep.subr.bf16.mxu0 0
    %6201 = vmatpush1.bf16.msra.mxu0 %v5077
    %6202 = vmatprep.subr.bf16.mxu0 0
    %6203 = vmatpush1.bf16.msra.mxu0 %v5084
    %6204 = vmatprep.mubr.bf16.mxu0 %v2679
    %6205 = vmatmul.mubr.bf16.gmra.mrb[0].mxu0 %v2678
    %v6206 = vpop.f32.mrb[0].mxu0
    %v6207 = vadd.f32 %v6166, %v6206
    %v6208 = vpop.f32.mrb[0].mxu0
    %v6209 = vpop.f32.mrb[0].mxu0
    %v6210 = vadd.f32 %v6169, %v6209
    %v6211 = vpop.f32.mrb[0].mxu0
    %6212 = vdwg.mxu0
    %v6213 = vtanh.pop %v5697
    %v6214 = vtanh.pop %v5699
    %v6215 = vtanh.pop %v5869
    %v6216 = vtanh.pop %v5871
    %v6217 = vtanh.pop %v6041
    %v6218 = vtanh.pop %v6043
    %v6219 = vtanh.pop %v6207
    %v6220 = vtanh.pop %v5701
    %v6221 = vtanh.pop %v5703
    %v6222 = vtanh.pop %v5873
    %v6223 = vtanh.pop %v5875
    %v6224 = vtanh.pop %v6045
    %v6225 = vtanh.pop %v6047
    %v6226 = vtanh.pop %v6210
    %v6227 = vpack.c.bf16 %v6220, %v6213
    %v6228 = vpack.c.bf16 %v6221, %v6214
    %v6229 = vpack.c.bf16 %v6222, %v6215
    %v6230 = vpack.c.bf16 %v6223, %v6216
    %v6231 = vpack.c.bf16 %v6224, %v6217
    %v6232 = vpack.c.bf16 %v6225, %v6218
    %v6233 = vpack.c.bf16 %v6226, %v6219
    %v6241 = vunpack.c.l.b16 %v6227
    %v6242 = vunpack.c.l.b16 %v6228
    %v6243 = vunpack.c.l.b16 %v6229
    %v6244 = vunpack.c.l.b16 %v6230
    %v6245 = vunpack.c.l.b16 %v6231
    %v6246 = vunpack.c.l.b16 %v6232
    %v6247 = vunpack.c.l.b16 %v6233
    %v6248 = vunpack.c.h.b16 %v6227
    %v6249 = vunpack.c.h.b16 %v6228
    %v6250 = vunpack.c.h.b16 %v6229
    %v6251 = vunpack.c.h.b16 %v6230
    %v6252 = vunpack.c.h.b16 %v6231
    %v6253 = vunpack.c.h.b16 %v6232
    %v6254 = vunpack.c.h.b16 %v6233
    %v6255 = vpack.c.b16 %v6242, %v6241
    %v6256 = vpack.c.b16 %v6244, %v6243
    %v6257 = vpack.c.b16 %v6246, %v6245
    %v6258 = vpack.c.b16 %v6247, %v6247
    %v6259 = vpack.c.b16 %v6249, %v6248
    %v6260 = vpack.c.b16 %v6251, %v6250
    %v6261 = vpack.c.b16 %v6253, %v6252
    %v6262 = vpack.c.b16 %v6254, %v6254
    %6271 = vst [vmem:[#allocation2] sm:$0xff] %v6255
    %6272 = vst [vmem:[#allocation2 + $0x8] sm:$0xff] %v6256
    %6273 = vst [vmem:[#allocation2 + $0x10] sm:$0xff] %v6257
    %vm6274 = vcmask 125952
    %6275 = vst.msk [vmem:[#allocation2 + $0x18] sm:$0xf] %vm6274, %v6258
    %6276 = vst [vmem:[#allocation2 + $0x1c] sm:$0xff] %v6259
    %6277 = vst [vmem:[#allocation2 + $0x24] sm:$0xff] %v6260
    %6278 = vst [vmem:[#allocation2 + $0x2c] sm:$0xff] %v6261
    %6279 = vst.msk [vmem:[#allocation2 + $0x34] sm:$0xf] %vm6274, %v6262
    // Predicated region
    $region42: #{tpu_custom_call.1} parent=1 // pred_check
      _
    $region43: #{tpu_custom_call.1} parent=1 // pred_check_branch
      %6281 = sbr.rel (0) target = $region45
    $region44: #{tpu_custom_call.1} parent=1 // pred_region
      %s6283 = ssub.s32 896, 896
      %6284 = vsyncadd [#allocation3], %s6283
      %s6285 = sshll.u32 [#allocation2], 4
      %s6286 = int_to_ptr.vmem [resolvable:$true] %s6285
      %6291 = dma.vmem_to_hbm [thread:$0]  %s6286, 896, %s10, [#allocation3], 448, 448, 28
    $region45: #{tpu_custom_call.1} parent=1 // pred_fallthru
      _
    // Predicated region
    $region46: #{tpu_custom_call.1} parent=1 // pred_check
      _
    $region47: #{tpu_custom_call.1} parent=1 // pred_check_branch
      %6293 = sbr.rel (0) target = $region49
    $region48: #{tpu_custom_call.1} parent=1 // pred_region
      %6294 = dma.done [#allocation3], 896
    $region49: #{tpu_custom_call.1} parent=1 // pred_fallthru
      _
    %6295 = vsyncpa [#allocation3], 1

</llo_original>
